<compile_context>
chip_gen: v5e
topology: v5e:2x2
jax: 0.10.0
libtpu: 0.0.40
codegen_flags: <defaults>
</compile_context>

<pallas_src>
import math

import jax
import jax.numpy as jnp
from jax.experimental import pallas as pl
from jax.experimental.pallas import tpu as pltpu

B = 10          # batch_size hard-coded in the reference forward()
H = 30          # num_heads (acts as the attention sequence axis here)
D = 128         # head_dim
HID = 128       # fc1 output features
OUT = 6         # fc2 output features
_INV_SQRT_D = 1.0 / math.sqrt(D)


def _mha_kernel(q_ref, k_ref, v_ref, w1_ref, b1_ref, w2_ref, b2_ref,
                out_ref, vflat):
    # Cast to bf16 in-kernel (MXU-native inputs, half the vreg pressure).
    q = q_ref[...].astype(jnp.bfloat16)        # (B, H, D)
    k = k_ref[...].astype(jnp.bfloat16)        # (B, H, D)
    v = v_ref[...].astype(jnp.bfloat16)        # (B, H, D)

    # ---- scaled dot-product attention over the 30 head tokens ----
    logits = jnp.einsum('bqd,bkd->bqk', q, k,
                        preferred_element_type=jnp.float32) * _INV_SQRT_D
    m = jnp.max(logits, axis=-1, keepdims=True)
    e = jnp.exp(logits - m)
    inv = pl.reciprocal(jnp.sum(e, axis=-1, keepdims=True), approx=True)
    attn = (e * inv).astype(jnp.bfloat16)

    values = jnp.einsum('bqk,bkd->bqd', attn, v,
                        preferred_element_type=jnp.float32).astype(jnp.bfloat16)

    # ---- flatten (B, H, D) -> (B, H*D) in torch reshape order (h*D + d) ----
    # Done via a bf16 VMEM scratch with static lane-tile stores; a fused
    # 'bhd,hdf->bf' contraction does not lower on Mosaic (2 contracting dims).
    for h in range(H):
        vflat[:, h * D:(h + 1) * D] = values[:, h, :]

    # ---- fc1: single MXU matmul, K = H*D = 3840, f32 accumulation ----
    hidden = jnp.dot(vflat[...], w1_ref[...],
                     preferred_element_type=jnp.float32) + b1_ref[...]
    hidden = jnp.maximum(hidden, 0.0)

    # ---- fc2 (bf16 inputs, f32 accumulation) + exact softmax ----
    logits2 = jnp.dot(hidden.astype(jnp.bfloat16), w2_ref[...],
                      preferred_element_type=jnp.float32) + b2_ref[...]
    m2 = jnp.max(logits2, axis=-1, keepdims=True)
    e2 = jnp.exp(logits2 - m2)
    out_ref[...] = (e2 / jnp.sum(e2, axis=-1, keepdims=True)).astype(out_ref.dtype)


def prepare_params(w1, b1, w2, b2):
    """One-time (parameter-load time) weight preprocessing — hoisted out of the
    per-call path.  w1: (HID, H*D) torch layout; w2: (OUT, HID) torch layout."""
    w1_slab = jnp.asarray(w1).T.astype(jnp.bfloat16)            # (H*D, HID), rows ordered h*D+d
    b1_2d = jnp.asarray(b1, jnp.float32).reshape(1, HID)
    w2_t = jnp.asarray(w2).T.astype(jnp.bfloat16)               # (HID, OUT)
    b2_2d = jnp.asarray(b2, jnp.float32).reshape(1, OUT)
    return w1_slab, b1_2d, w2_t, b2_2d


@jax.jit
def multihead_attention_forward(q, k, v, w1_slab, b1_2d, w2_t, b2_2d):
    """q, k, v: (B, H, D) f32.  Weights already preprocessed by prepare_params.
    Returns softmax output (B, OUT) f32."""
    grid_spec = pltpu.PrefetchScalarGridSpec(
        num_scalar_prefetch=0,
        grid=(1,),
        in_specs=[
            pl.BlockSpec((B, H, D), lambda s: (0, 0, 0)),        # q (full block)
            pl.BlockSpec((B, H, D), lambda s: (0, 0, 0)),        # k
            pl.BlockSpec((B, H, D), lambda s: (0, 0, 0)),        # v
            pl.BlockSpec((H * D, HID), lambda s: (0, 0)),        # fc1 weight slab
            pl.BlockSpec((1, HID), lambda s: (0, 0)),            # b1
            pl.BlockSpec((HID, OUT), lambda s: (0, 0)),          # fc2 weight
            pl.BlockSpec((1, OUT), lambda s: (0, 0)),            # b2
        ],
        out_specs=pl.BlockSpec((B, OUT), lambda s: (0, 0)),
        scratch_shapes=[
            pltpu.VMEM((B, H * D), jnp.bfloat16),                # flattened attention values
        ],
    )
    # TODO(synk): on v7x a 2-way 'parallel' batch-half grid axis would engage the second
    # TensorCore; skipped here because on single-TC v5e/v6e it only adds a grid step.
    return pl.pallas_call(
        _mha_kernel,
        out_shape=jax.ShapeDtypeStruct((B, OUT), jnp.float32),
        grid_spec=grid_spec,
        compiler_params=pltpu.CompilerParams(
            dimension_semantics=("arbitrary",)),
    )(q, k, v, w1_slab, b1_2d, w2_t, b2_2d)


def _xavier_uniform(key, fan_in, fan_out, shape):
    limit = math.sqrt(6.0 / (fan_in + fan_out))
    return jax.random.uniform(key, shape, jnp.float32, -limit, limit)


if __name__ == "__main__":
    key = jax.random.PRNGKey(0)
    kx, kq, kk, kv, kw1, kw2 = jax.random.split(key, 6)

    # Input image, NCHW, like the PyTorch module would receive (forward hard-codes batch=10).
    x = jax.random.normal(kx, (B, 4, 16, 16), jnp.float32)

    # TODO(synk): ParallelCNN and QKVMatrix are not defined in the reference source;
    # use a deterministic flatten + linear-projection stand-in producing the
    # (B, 30, 128) q/k/v tensors the rest of the forward pass requires.
    feat = x.reshape(B, -1)                                     # (B, 1024)
    fdim = feat.shape[1]
    wq = _xavier_uniform(kq, fdim, H * D, (fdim, H * D))
    wk = _xavier_uniform(kk, fdim, H * D, (fdim, H * D))
    wv = _xavier_uniform(kv, fdim, H * D, (fdim, H * D))
    q = (feat @ wq).reshape(B, H, D)
    k = (feat @ wk).reshape(B, H, D)
    v = (feat @ wv).reshape(B, H, D)

    # fullyConnectedLayer1: Linear(128*30, 128), xavier_uniform weight, zero bias.
    w1 = _xavier_uniform(kw1, H * D, HID, (HID, H * D))         # torch layout (out, in)
    b1 = jnp.zeros((HID,), jnp.float32)
    # fullyConnectedLayer2: Linear(128, 6), xavier_uniform weight, zero bias.
    w2 = _xavier_uniform(kw2, HID, OUT, (OUT, HID))             # torch layout (out, in)
    b2 = jnp.zeros((OUT,), jnp.float32)

    # Weight prep happens ONCE here (not inside the forward call).
    params = prepare_params(w1, b1, w2, b2)

    out = multihead_attention_forward(q, k, v, *params)
    out = jax.block_until_ready(out)

    # Pure-JAX f32 reference check (kernel computes in bf16 -> looser tolerance).
    logits = jnp.einsum('bqd,bkd->bqk', q, k) / math.sqrt(D)
    attn = jax.nn.softmax(logits, axis=-1)
    vals = jnp.einsum('bqk,bkd->bqd', attn, v).reshape(B, H * D)
    ref = jax.nn.softmax(jnp.maximum(vals @ w1.T + b1, 0.0) @ w2.T + b2, axis=-1)
    assert out.shape == (B, OUT)
    assert jnp.allclose(out, ref, atol=2e-2, rtol=2e-2), \
        float(jnp.max(jnp.abs(out - ref)))

    print("KERNEL_OK")
</pallas_src>

<mosaic_0001>
module attributes {stable_mosaic.version = 11 : i64} {
  func.func @_mha_kernel(%arg0: i32, %arg1: memref<10x30x128xf32, #tpu.memory_space<vmem>>, %arg2: memref<10x30x128xf32, #tpu.memory_space<vmem>>, %arg3: memref<10x30x128xf32, #tpu.memory_space<vmem>>, %arg4: memref<3840x128xbf16, #tpu.memory_space<vmem>>, %arg5: memref<1x128xf32, #tpu.memory_space<vmem>>, %arg6: memref<128x6xbf16, #tpu.memory_space<vmem>>, %arg7: memref<1x6xf32, #tpu.memory_space<vmem>>, %arg8: memref<10x6xf32, #tpu.memory_space<vmem>>, %arg9: memref<10x3840xbf16, #tpu.memory_space<vmem>>) attributes {dimension_semantics = [#tpu.dimension_semantics<arbitrary>], iteration_bounds = array<i64: 1>, scalar_prefetch = 0 : i64, scratch_operands = 1 : i64, tpu.core_type = #tpu.core_type<tc>, window_params = [{pipeline_mode = #tpu.pipeline_mode<synchronous>, transform_indices = @transform_0, window_bounds = array<i64: 10, 30, 128>}, {pipeline_mode = #tpu.pipeline_mode<synchronous>, transform_indices = @transform_1, window_bounds = array<i64: 10, 30, 128>}, {pipeline_mode = #tpu.pipeline_mode<synchronous>, transform_indices = @transform_2, window_bounds = array<i64: 10, 30, 128>}, {pipeline_mode = #tpu.pipeline_mode<synchronous>, transform_indices = @transform_3, window_bounds = array<i64: 3840, 128>}, {pipeline_mode = #tpu.pipeline_mode<synchronous>, transform_indices = @transform_4, window_bounds = array<i64: 1, 128>}, {pipeline_mode = #tpu.pipeline_mode<synchronous>, transform_indices = @transform_5, window_bounds = array<i64: 128, 6>}, {pipeline_mode = #tpu.pipeline_mode<synchronous>, transform_indices = @transform_6, window_bounds = array<i64: 1, 6>}, {pipeline_mode = #tpu.pipeline_mode<synchronous>, transform_indices = @transform_7, window_bounds = array<i64: 10, 6>}]} {
    %c0 = arith.constant 0 : index
    %c0_0 = arith.constant 0 : index
    %c0_1 = arith.constant 0 : index
    %0 = vector.load %arg1[%c0, %c0_0, %c0_1] : memref<10x30x128xf32, #tpu.memory_space<vmem>>, vector<10x30x128xf32>
    %1 = arith.truncf %0 : vector<10x30x128xf32> to vector<10x30x128xbf16>
    %c0_2 = arith.constant 0 : index
    %c0_3 = arith.constant 0 : index
    %c0_4 = arith.constant 0 : index
    %2 = vector.load %arg2[%c0_2, %c0_3, %c0_4] : memref<10x30x128xf32, #tpu.memory_space<vmem>>, vector<10x30x128xf32>
    %3 = arith.truncf %2 : vector<10x30x128xf32> to vector<10x30x128xbf16>
    %c0_5 = arith.constant 0 : index
    %c0_6 = arith.constant 0 : index
    %c0_7 = arith.constant 0 : index
    %4 = vector.load %arg3[%c0_5, %c0_6, %c0_7] : memref<10x30x128xf32, #tpu.memory_space<vmem>>, vector<10x30x128xf32>
    %5 = arith.truncf %4 : vector<10x30x128xf32> to vector<10x30x128xbf16>
    "tpu.trace_start"() <{level = 10 : i32, message = "bqd,bkd->bqk"}> : () -> ()
    %cst = arith.constant dense<0.000000e+00> : vector<10x30x30xf32>
    %6 = tpu.matmul %1, %3, %cst {dimension_numbers = #tpu.dot_dimension_numbers<[2], [2], [1], [1], [0, 0, 0, 1, 1, 1], [0], [0]>} : vector<10x30x128xbf16>, vector<10x30x128xbf16>, vector<10x30x30xf32> -> vector<10x30x30xf32>
    "tpu.trace_stop"() : () -> ()
    %cst_8 = arith.constant 0.0883883461 : f32
    %7 = vector.broadcast %cst_8 : f32 to vector<10x30x30xf32>
    %8 = arith.mulf %6, %7 : vector<10x30x30xf32>
    %cst_9 = arith.constant dense<0xFF800000> : vector<10x30xf32>
    %9 = vector.multi_reduction <maximumf>, %8, %cst_9 [2] : vector<10x30x30xf32> to vector<10x30xf32>
    %10 = vector.shape_cast %9 : vector<10x30xf32> to vector<10x30x1xf32>
    %11 = vector.broadcast %10 : vector<10x30x1xf32> to vector<10x30x30xf32>
    %12 = arith.subf %8, %11 : vector<10x30x30xf32>
    %13 = math.exp %12 : vector<10x30x30xf32>
    %cst_10 = arith.constant dense<0.000000e+00> : vector<10x30xf32>
    %14 = vector.multi_reduction <add>, %13, %cst_10 [2] : vector<10x30x30xf32> to vector<10x30xf32>
    %15 = vector.shape_cast %14 : vector<10x30xf32> to vector<10x30x1xf32>
    %16 = tpu.reciprocal %15 {approx = true} : vector<10x30x1xf32> -> vector<10x30x1xf32>
    %17 = vector.broadcast %16 : vector<10x30x1xf32> to vector<10x30x30xf32>
    %18 = arith.mulf %13, %17 : vector<10x30x30xf32>
    %19 = arith.truncf %18 : vector<10x30x30xf32> to vector<10x30x30xbf16>
    "tpu.trace_start"() <{level = 10 : i32, message = "bqk,bkd->bqd"}> : () -> ()
    %cst_11 = arith.constant dense<0.000000e+00> : vector<10x30x128xf32>
    %20 = tpu.matmul %19, %5, %cst_11 {dimension_numbers = #tpu.dot_dimension_numbers<[2], [1], [1], [2], [0, 0, 0, 1, 1, 2], [0], [0]>} : vector<10x30x30xbf16>, vector<10x30x128xbf16>, vector<10x30x128xf32> -> vector<10x30x128xf32>
    "tpu.trace_stop"() : () -> ()
    %21 = arith.truncf %20 : vector<10x30x128xf32> to vector<10x30x128xbf16>
    %22 = vector.extract_strided_slice %21 {offsets = [0, 0, 0], sizes = [10, 1, 128], strides = [1, 1, 1]} : vector<10x30x128xbf16> to vector<10x1x128xbf16>
    %23 = vector.shape_cast %22 : vector<10x1x128xbf16> to vector<10x128xbf16>
    %c0_12 = arith.constant 0 : index
    %c0_13 = arith.constant 0 : index
    %24 = vector.load %arg9[%c0_12, %c0_13] : memref<10x3840xbf16, #tpu.memory_space<vmem>>, vector<10x128xbf16>
    tpu.vector_store %arg9[%c0_12, %c0_13], %23 {strides = array<i32>} : memref<10x3840xbf16, #tpu.memory_space<vmem>>, vector<10x128xbf16>,
    %25 = vector.extract_strided_slice %21 {offsets = [0, 1, 0], sizes = [10, 1, 128], strides = [1, 1, 1]} : vector<10x30x128xbf16> to vector<10x1x128xbf16>
    %26 = vector.shape_cast %25 : vector<10x1x128xbf16> to vector<10x128xbf16>
    %c0_14 = arith.constant 0 : index
    %c128 = arith.constant 128 : index
    %27 = vector.load %arg9[%c0_14, %c128] : memref<10x3840xbf16, #tpu.memory_space<vmem>>, vector<10x128xbf16>
    tpu.vector_store %arg9[%c0_14, %c128], %26 {strides = array<i32>} : memref<10x3840xbf16, #tpu.memory_space<vmem>>, vector<10x128xbf16>,
    %28 = vector.extract_strided_slice %21 {offsets = [0, 2, 0], sizes = [10, 1, 128], strides = [1, 1, 1]} : vector<10x30x128xbf16> to vector<10x1x128xbf16>
    %29 = vector.shape_cast %28 : vector<10x1x128xbf16> to vector<10x128xbf16>
    %c0_15 = arith.constant 0 : index
    %c256 = arith.constant 256 : index
    %30 = vector.load %arg9[%c0_15, %c256] : memref<10x3840xbf16, #tpu.memory_space<vmem>>, vector<10x128xbf16>
    tpu.vector_store %arg9[%c0_15, %c256], %29 {strides = array<i32>} : memref<10x3840xbf16, #tpu.memory_space<vmem>>, vector<10x128xbf16>,
    %31 = vector.extract_strided_slice %21 {offsets = [0, 3, 0], sizes = [10, 1, 128], strides = [1, 1, 1]} : vector<10x30x128xbf16> to vector<10x1x128xbf16>
    %32 = vector.shape_cast %31 : vector<10x1x128xbf16> to vector<10x128xbf16>
    %c0_16 = arith.constant 0 : index
    %c384 = arith.constant 384 : index
    %33 = vector.load %arg9[%c0_16, %c384] : memref<10x3840xbf16, #tpu.memory_space<vmem>>, vector<10x128xbf16>
    tpu.vector_store %arg9[%c0_16, %c384], %32 {strides = array<i32>} : memref<10x3840xbf16, #tpu.memory_space<vmem>>, vector<10x128xbf16>,
    %34 = vector.extract_strided_slice %21 {offsets = [0, 4, 0], sizes = [10, 1, 128], strides = [1, 1, 1]} : vector<10x30x128xbf16> to vector<10x1x128xbf16>
    %35 = vector.shape_cast %34 : vector<10x1x128xbf16> to vector<10x128xbf16>
    %c0_17 = arith.constant 0 : index
    %c512 = arith.constant 512 : index
    %36 = vector.load %arg9[%c0_17, %c512] : memref<10x3840xbf16, #tpu.memory_space<vmem>>, vector<10x128xbf16>
    tpu.vector_store %arg9[%c0_17, %c512], %35 {strides = array<i32>} : memref<10x3840xbf16, #tpu.memory_space<vmem>>, vector<10x128xbf16>,
    %37 = vector.extract_strided_slice %21 {offsets = [0, 5, 0], sizes = [10, 1, 128], strides = [1, 1, 1]} : vector<10x30x128xbf16> to vector<10x1x128xbf16>
    %38 = vector.shape_cast %37 : vector<10x1x128xbf16> to vector<10x128xbf16>
    %c0_18 = arith.constant 0 : index
    %c640 = arith.constant 640 : index
    %39 = vector.load %arg9[%c0_18, %c640] : memref<10x3840xbf16, #tpu.memory_space<vmem>>, vector<10x128xbf16>
    tpu.vector_store %arg9[%c0_18, %c640], %38 {strides = array<i32>} : memref<10x3840xbf16, #tpu.memory_space<vmem>>, vector<10x128xbf16>,
    %40 = vector.extract_strided_slice %21 {offsets = [0, 6, 0], sizes = [10, 1, 128], strides = [1, 1, 1]} : vector<10x30x128xbf16> to vector<10x1x128xbf16>
    %41 = vector.shape_cast %40 : vector<10x1x128xbf16> to vector<10x128xbf16>
    %c0_19 = arith.constant 0 : index
    %c768 = arith.constant 768 : index
    %42 = vector.load %arg9[%c0_19, %c768] : memref<10x3840xbf16, #tpu.memory_space<vmem>>, vector<10x128xbf16>
    tpu.vector_store %arg9[%c0_19, %c768], %41 {strides = array<i32>} : memref<10x3840xbf16, #tpu.memory_space<vmem>>, vector<10x128xbf16>,
    %43 = vector.extract_strided_slice %21 {offsets = [0, 7, 0], sizes = [10, 1, 128], strides = [1, 1, 1]} : vector<10x30x128xbf16> to vector<10x1x128xbf16>
    %44 = vector.shape_cast %43 : vector<10x1x128xbf16> to vector<10x128xbf16>
    %c0_20 = arith.constant 0 : index
    %c896 = arith.constant 896 : index
    %45 = vector.load %arg9[%c0_20, %c896] : memref<10x3840xbf16, #tpu.memory_space<vmem>>, vector<10x128xbf16>
    tpu.vector_store %arg9[%c0_20, %c896], %44 {strides = array<i32>} : memref<10x3840xbf16, #tpu.memory_space<vmem>>, vector<10x128xbf16>,
    %46 = vector.extract_strided_slice %21 {offsets = [0, 8, 0], sizes = [10, 1, 128], strides = [1, 1, 1]} : vector<10x30x128xbf16> to vector<10x1x128xbf16>
    %47 = vector.shape_cast %46 : vector<10x1x128xbf16> to vector<10x128xbf16>
    %c0_21 = arith.constant 0 : index
    %c1024 = arith.constant 1024 : index
    %48 = vector.load %arg9[%c0_21, %c1024] : memref<10x3840xbf16, #tpu.memory_space<vmem>>, vector<10x128xbf16>
    tpu.vector_store %arg9[%c0_21, %c1024], %47 {strides = array<i32>} : memref<10x3840xbf16, #tpu.memory_space<vmem>>, vector<10x128xbf16>,
    %49 = vector.extract_strided_slice %21 {offsets = [0, 9, 0], sizes = [10, 1, 128], strides = [1, 1, 1]} : vector<10x30x128xbf16> to vector<10x1x128xbf16>
    %50 = vector.shape_cast %49 : vector<10x1x128xbf16> to vector<10x128xbf16>
    %c0_22 = arith.constant 0 : index
    %c1152 = arith.constant 1152 : index
    %51 = vector.load %arg9[%c0_22, %c1152] : memref<10x3840xbf16, #tpu.memory_space<vmem>>, vector<10x128xbf16>
    tpu.vector_store %arg9[%c0_22, %c1152], %50 {strides = array<i32>} : memref<10x3840xbf16, #tpu.memory_space<vmem>>, vector<10x128xbf16>,
    %52 = vector.extract_strided_slice %21 {offsets = [0, 10, 0], sizes = [10, 1, 128], strides = [1, 1, 1]} : vector<10x30x128xbf16> to vector<10x1x128xbf16>
    %53 = vector.shape_cast %52 : vector<10x1x128xbf16> to vector<10x128xbf16>
    %c0_23 = arith.constant 0 : index
    %c1280 = arith.constant 1280 : index
    %54 = vector.load %arg9[%c0_23, %c1280] : memref<10x3840xbf16, #tpu.memory_space<vmem>>, vector<10x128xbf16>
    tpu.vector_store %arg9[%c0_23, %c1280], %53 {strides = array<i32>} : memref<10x3840xbf16, #tpu.memory_space<vmem>>, vector<10x128xbf16>,
    %55 = vector.extract_strided_slice %21 {offsets = [0, 11, 0], sizes = [10, 1, 128], strides = [1, 1, 1]} : vector<10x30x128xbf16> to vector<10x1x128xbf16>
    %56 = vector.shape_cast %55 : vector<10x1x128xbf16> to vector<10x128xbf16>
    %c0_24 = arith.constant 0 : index
    %c1408 = arith.constant 1408 : index
    %57 = vector.load %arg9[%c0_24, %c1408] : memref<10x3840xbf16, #tpu.memory_space<vmem>>, vector<10x128xbf16>
    tpu.vector_store %arg9[%c0_24, %c1408], %56 {strides = array<i32>} : memref<10x3840xbf16, #tpu.memory_space<vmem>>, vector<10x128xbf16>,
    %58 = vector.extract_strided_slice %21 {offsets = [0, 12, 0], sizes = [10, 1, 128], strides = [1, 1, 1]} : vector<10x30x128xbf16> to vector<10x1x128xbf16>
    %59 = vector.shape_cast %58 : vector<10x1x128xbf16> to vector<10x128xbf16>
    %c0_25 = arith.constant 0 : index
    %c1536 = arith.constant 1536 : index
    %60 = vector.load %arg9[%c0_25, %c1536] : memref<10x3840xbf16, #tpu.memory_space<vmem>>, vector<10x128xbf16>
    tpu.vector_store %arg9[%c0_25, %c1536], %59 {strides = array<i32>} : memref<10x3840xbf16, #tpu.memory_space<vmem>>, vector<10x128xbf16>,
    %61 = vector.extract_strided_slice %21 {offsets = [0, 13, 0], sizes = [10, 1, 128], strides = [1, 1, 1]} : vector<10x30x128xbf16> to vector<10x1x128xbf16>
    %62 = vector.shape_cast %61 : vector<10x1x128xbf16> to vector<10x128xbf16>
    %c0_26 = arith.constant 0 : index
    %c1664 = arith.constant 1664 : index
    %63 = vector.load %arg9[%c0_26, %c1664] : memref<10x3840xbf16, #tpu.memory_space<vmem>>, vector<10x128xbf16>
    tpu.vector_store %arg9[%c0_26, %c1664], %62 {strides = array<i32>} : memref<10x3840xbf16, #tpu.memory_space<vmem>>, vector<10x128xbf16>,
    %64 = vector.extract_strided_slice %21 {offsets = [0, 14, 0], sizes = [10, 1, 128], strides = [1, 1, 1]} : vector<10x30x128xbf16> to vector<10x1x128xbf16>
    %65 = vector.shape_cast %64 : vector<10x1x128xbf16> to vector<10x128xbf16>
    %c0_27 = arith.constant 0 : index
    %c1792 = arith.constant 1792 : index
    %66 = vector.load %arg9[%c0_27, %c1792] : memref<10x3840xbf16, #tpu.memory_space<vmem>>, vector<10x128xbf16>
    tpu.vector_store %arg9[%c0_27, %c1792], %65 {strides = array<i32>} : memref<10x3840xbf16, #tpu.memory_space<vmem>>, vector<10x128xbf16>,
    %67 = vector.extract_strided_slice %21 {offsets = [0, 15, 0], sizes = [10, 1, 128], strides = [1, 1, 1]} : vector<10x30x128xbf16> to vector<10x1x128xbf16>
    %68 = vector.shape_cast %67 : vector<10x1x128xbf16> to vector<10x128xbf16>
    %c0_28 = arith.constant 0 : index
    %c1920 = arith.constant 1920 : index
    %69 = vector.load %arg9[%c0_28, %c1920] : memref<10x3840xbf16, #tpu.memory_space<vmem>>, vector<10x128xbf16>
    tpu.vector_store %arg9[%c0_28, %c1920], %68 {strides = array<i32>} : memref<10x3840xbf16, #tpu.memory_space<vmem>>, vector<10x128xbf16>,
    %70 = vector.extract_strided_slice %21 {offsets = [0, 16, 0], sizes = [10, 1, 128], strides = [1, 1, 1]} : vector<10x30x128xbf16> to vector<10x1x128xbf16>
    %71 = vector.shape_cast %70 : vector<10x1x128xbf16> to vector<10x128xbf16>
    %c0_29 = arith.constant 0 : index
    %c2048 = arith.constant 2048 : index
    %72 = vector.load %arg9[%c0_29, %c2048] : memref<10x3840xbf16, #tpu.memory_space<vmem>>, vector<10x128xbf16>
    tpu.vector_store %arg9[%c0_29, %c2048], %71 {strides = array<i32>} : memref<10x3840xbf16, #tpu.memory_space<vmem>>, vector<10x128xbf16>,
    %73 = vector.extract_strided_slice %21 {offsets = [0, 17, 0], sizes = [10, 1, 128], strides = [1, 1, 1]} : vector<10x30x128xbf16> to vector<10x1x128xbf16>
    %74 = vector.shape_cast %73 : vector<10x1x128xbf16> to vector<10x128xbf16>
    %c0_30 = arith.constant 0 : index
    %c2176 = arith.constant 2176 : index
    %75 = vector.load %arg9[%c0_30, %c2176] : memref<10x3840xbf16, #tpu.memory_space<vmem>>, vector<10x128xbf16>
    tpu.vector_store %arg9[%c0_30, %c2176], %74 {strides = array<i32>} : memref<10x3840xbf16, #tpu.memory_space<vmem>>, vector<10x128xbf16>,
    %76 = vector.extract_strided_slice %21 {offsets = [0, 18, 0], sizes = [10, 1, 128], strides = [1, 1, 1]} : vector<10x30x128xbf16> to vector<10x1x128xbf16>
    %77 = vector.shape_cast %76 : vector<10x1x128xbf16> to vector<10x128xbf16>
    %c0_31 = arith.constant 0 : index
    %c2304 = arith.constant 2304 : index
    %78 = vector.load %arg9[%c0_31, %c2304] : memref<10x3840xbf16, #tpu.memory_space<vmem>>, vector<10x128xbf16>
    tpu.vector_store %arg9[%c0_31, %c2304], %77 {strides = array<i32>} : memref<10x3840xbf16, #tpu.memory_space<vmem>>, vector<10x128xbf16>,
    %79 = vector.extract_strided_slice %21 {offsets = [0, 19, 0], sizes = [10, 1, 128], strides = [1, 1, 1]} : vector<10x30x128xbf16> to vector<10x1x128xbf16>
    %80 = vector.shape_cast %79 : vector<10x1x128xbf16> to vector<10x128xbf16>
    %c0_32 = arith.constant 0 : index
    %c2432 = arith.constant 2432 : index
    %81 = vector.load %arg9[%c0_32, %c2432] : memref<10x3840xbf16, #tpu.memory_space<vmem>>, vector<10x128xbf16>
    tpu.vector_store %arg9[%c0_32, %c2432], %80 {strides = array<i32>} : memref<10x3840xbf16, #tpu.memory_space<vmem>>, vector<10x128xbf16>,
    %82 = vector.extract_strided_slice %21 {offsets = [0, 20, 0], sizes = [10, 1, 128], strides = [1, 1, 1]} : vector<10x30x128xbf16> to vector<10x1x128xbf16>
    %83 = vector.shape_cast %82 : vector<10x1x128xbf16> to vector<10x128xbf16>
    %c0_33 = arith.constant 0 : index
    %c2560 = arith.constant 2560 : index
    %84 = vector.load %arg9[%c0_33, %c2560] : memref<10x3840xbf16, #tpu.memory_space<vmem>>, vector<10x128xbf16>
    tpu.vector_store %arg9[%c0_33, %c2560], %83 {strides = array<i32>} : memref<10x3840xbf16, #tpu.memory_space<vmem>>, vector<10x128xbf16>,
    %85 = vector.extract_strided_slice %21 {offsets = [0, 21, 0], sizes = [10, 1, 128], strides = [1, 1, 1]} : vector<10x30x128xbf16> to vector<10x1x128xbf16>
    %86 = vector.shape_cast %85 : vector<10x1x128xbf16> to vector<10x128xbf16>
    %c0_34 = arith.constant 0 : index
    %c2688 = arith.constant 2688 : index
    %87 = vector.load %arg9[%c0_34, %c2688] : memref<10x3840xbf16, #tpu.memory_space<vmem>>, vector<10x128xbf16>
    tpu.vector_store %arg9[%c0_34, %c2688], %86 {strides = array<i32>} : memref<10x3840xbf16, #tpu.memory_space<vmem>>, vector<10x128xbf16>,
    %88 = vector.extract_strided_slice %21 {offsets = [0, 22, 0], sizes = [10, 1, 128], strides = [1, 1, 1]} : vector<10x30x128xbf16> to vector<10x1x128xbf16>
    %89 = vector.shape_cast %88 : vector<10x1x128xbf16> to vector<10x128xbf16>
    %c0_35 = arith.constant 0 : index
    %c2816 = arith.constant 2816 : index
    %90 = vector.load %arg9[%c0_35, %c2816] : memref<10x3840xbf16, #tpu.memory_space<vmem>>, vector<10x128xbf16>
    tpu.vector_store %arg9[%c0_35, %c2816], %89 {strides = array<i32>} : memref<10x3840xbf16, #tpu.memory_space<vmem>>, vector<10x128xbf16>,
    %91 = vector.extract_strided_slice %21 {offsets = [0, 23, 0], sizes = [10, 1, 128], strides = [1, 1, 1]} : vector<10x30x128xbf16> to vector<10x1x128xbf16>
    %92 = vector.shape_cast %91 : vector<10x1x128xbf16> to vector<10x128xbf16>
    %c0_36 = arith.constant 0 : index
    %c2944 = arith.constant 2944 : index
    %93 = vector.load %arg9[%c0_36, %c2944] : memref<10x3840xbf16, #tpu.memory_space<vmem>>, vector<10x128xbf16>
    tpu.vector_store %arg9[%c0_36, %c2944], %92 {strides = array<i32>} : memref<10x3840xbf16, #tpu.memory_space<vmem>>, vector<10x128xbf16>,
    %94 = vector.extract_strided_slice %21 {offsets = [0, 24, 0], sizes = [10, 1, 128], strides = [1, 1, 1]} : vector<10x30x128xbf16> to vector<10x1x128xbf16>
    %95 = vector.shape_cast %94 : vector<10x1x128xbf16> to vector<10x128xbf16>
    %c0_37 = arith.constant 0 : index
    %c3072 = arith.constant 3072 : index
    %96 = vector.load %arg9[%c0_37, %c3072] : memref<10x3840xbf16, #tpu.memory_space<vmem>>, vector<10x128xbf16>
    tpu.vector_store %arg9[%c0_37, %c3072], %95 {strides = array<i32>} : memref<10x3840xbf16, #tpu.memory_space<vmem>>, vector<10x128xbf16>,
    %97 = vector.extract_strided_slice %21 {offsets = [0, 25, 0], sizes = [10, 1, 128], strides = [1, 1, 1]} : vector<10x30x128xbf16> to vector<10x1x128xbf16>
    %98 = vector.shape_cast %97 : vector<10x1x128xbf16> to vector<10x128xbf16>
    %c0_38 = arith.constant 0 : index
    %c3200 = arith.constant 3200 : index
    %99 = vector.load %arg9[%c0_38, %c3200] : memref<10x3840xbf16, #tpu.memory_space<vmem>>, vector<10x128xbf16>
    tpu.vector_store %arg9[%c0_38, %c3200], %98 {strides = array<i32>} : memref<10x3840xbf16, #tpu.memory_space<vmem>>, vector<10x128xbf16>,
    %100 = vector.extract_strided_slice %21 {offsets = [0, 26, 0], sizes = [10, 1, 128], strides = [1, 1, 1]} : vector<10x30x128xbf16> to vector<10x1x128xbf16>
    %101 = vector.shape_cast %100 : vector<10x1x128xbf16> to vector<10x128xbf16>
    %c0_39 = arith.constant 0 : index
    %c3328 = arith.constant 3328 : index
    %102 = vector.load %arg9[%c0_39, %c3328] : memref<10x3840xbf16, #tpu.memory_space<vmem>>, vector<10x128xbf16>
    tpu.vector_store %arg9[%c0_39, %c3328], %101 {strides = array<i32>} : memref<10x3840xbf16, #tpu.memory_space<vmem>>, vector<10x128xbf16>,
    %103 = vector.extract_strided_slice %21 {offsets = [0, 27, 0], sizes = [10, 1, 128], strides = [1, 1, 1]} : vector<10x30x128xbf16> to vector<10x1x128xbf16>
    %104 = vector.shape_cast %103 : vector<10x1x128xbf16> to vector<10x128xbf16>
    %c0_40 = arith.constant 0 : index
    %c3456 = arith.constant 3456 : index
    %105 = vector.load %arg9[%c0_40, %c3456] : memref<10x3840xbf16, #tpu.memory_space<vmem>>, vector<10x128xbf16>
    tpu.vector_store %arg9[%c0_40, %c3456], %104 {strides = array<i32>} : memref<10x3840xbf16, #tpu.memory_space<vmem>>, vector<10x128xbf16>,
    %106 = vector.extract_strided_slice %21 {offsets = [0, 28, 0], sizes = [10, 1, 128], strides = [1, 1, 1]} : vector<10x30x128xbf16> to vector<10x1x128xbf16>
    %107 = vector.shape_cast %106 : vector<10x1x128xbf16> to vector<10x128xbf16>
    %c0_41 = arith.constant 0 : index
    %c3584 = arith.constant 3584 : index
    %108 = vector.load %arg9[%c0_41, %c3584] : memref<10x3840xbf16, #tpu.memory_space<vmem>>, vector<10x128xbf16>
    tpu.vector_store %arg9[%c0_41, %c3584], %107 {strides = array<i32>} : memref<10x3840xbf16, #tpu.memory_space<vmem>>, vector<10x128xbf16>,
    %109 = vector.extract_strided_slice %21 {offsets = [0, 29, 0], sizes = [10, 1, 128], strides = [1, 1, 1]} : vector<10x30x128xbf16> to vector<10x1x128xbf16>
    %110 = vector.shape_cast %109 : vector<10x1x128xbf16> to vector<10x128xbf16>
    %c0_42 = arith.constant 0 : index
    %c3712 = arith.constant 3712 : index
    %111 = vector.load %arg9[%c0_42, %c3712] : memref<10x3840xbf16, #tpu.memory_space<vmem>>, vector<10x128xbf16>
    tpu.vector_store %arg9[%c0_42, %c3712], %110 {strides = array<i32>} : memref<10x3840xbf16, #tpu.memory_space<vmem>>, vector<10x128xbf16>,
    %c0_43 = arith.constant 0 : index
    %c0_44 = arith.constant 0 : index
    %112 = vector.load %arg9[%c0_43, %c0_44] : memref<10x3840xbf16, #tpu.memory_space<vmem>>, vector<10x3840xbf16>
    %c0_45 = arith.constant 0 : index
    %c0_46 = arith.constant 0 : index
    %113 = vector.load %arg4[%c0_45, %c0_46] : memref<3840x128xbf16, #tpu.memory_space<vmem>>, vector<3840x128xbf16>
    %cst_47 = arith.constant dense<0.000000e+00> : vector<10x128xf32>
    %114 = tpu.matmul %112, %113, %cst_47 {dimension_numbers = #tpu.dot_dimension_numbers<[1], [0], [0], [1], [0, 0, 1, 1], [], []>} : vector<10x3840xbf16>, vector<3840x128xbf16>, vector<10x128xf32> -> vector<10x128xf32>
    %c0_48 = arith.constant 0 : index
    %c0_49 = arith.constant 0 : index
    %115 = vector.load %arg5[%c0_48, %c0_49] : memref<1x128xf32, #tpu.memory_space<vmem>>, vector<1x128xf32>
    %116 = vector.broadcast %115 : vector<1x128xf32> to vector<10x128xf32>
    %117 = arith.addf %114, %116 : vector<10x128xf32>
    %cst_50 = arith.constant 0.000000e+00 : f32
    %118 = vector.broadcast %cst_50 : f32 to vector<10x128xf32>
    %119 = arith.maximumf %117, %118 : vector<10x128xf32>
    %120 = arith.truncf %119 : vector<10x128xf32> to vector<10x128xbf16>
    %c0_51 = arith.constant 0 : index
    %c0_52 = arith.constant 0 : index
    %121 = vector.load %arg6[%c0_51, %c0_52] : memref<128x6xbf16, #tpu.memory_space<vmem>>, vector<128x6xbf16>
    %cst_53 = arith.constant dense<0.000000e+00> : vector<10x6xf32>
    %122 = tpu.matmul %120, %121, %cst_53 {dimension_numbers = #tpu.dot_dimension_numbers<[1], [0], [0], [1], [0, 0, 1, 1], [], []>} : vector<10x128xbf16>, vector<128x6xbf16>, vector<10x6xf32> -> vector<10x6xf32>
    %c0_54 = arith.constant 0 : index
    %c0_55 = arith.constant 0 : index
    %123 = vector.load %arg7[%c0_54, %c0_55] : memref<1x6xf32, #tpu.memory_space<vmem>>, vector<1x6xf32>
    %124 = vector.broadcast %123 : vector<1x6xf32> to vector<10x6xf32>
    %125 = arith.addf %122, %124 : vector<10x6xf32>
    %cst_56 = arith.constant dense<0xFF800000> : vector<10xf32>
    %126 = vector.multi_reduction <maximumf>, %125, %cst_56 [1] : vector<10x6xf32> to vector<10xf32>
    %127 = vector.shape_cast %126 : vector<10xf32> to vector<10x1xf32>
    %128 = vector.broadcast %127 : vector<10x1xf32> to vector<10x6xf32>
    %129 = arith.subf %125, %128 : vector<10x6xf32>
    %130 = math.exp %129 : vector<10x6xf32>
    %cst_57 = arith.constant dense<0.000000e+00> : vector<10xf32>
    %131 = vector.multi_reduction <add>, %130, %cst_57 [1] : vector<10x6xf32> to vector<10xf32>
    %132 = vector.shape_cast %131 : vector<10xf32> to vector<10x1xf32>
    %133 = vector.broadcast %132 : vector<10x1xf32> to vector<10x6xf32>
    %134 = arith.divf %130, %133 : vector<10x6xf32>
    %c0_58 = arith.constant 0 : index
    %c0_59 = arith.constant 0 : index
    %135 = vector.load %arg8[%c0_58, %c0_59] : memref<10x6xf32, #tpu.memory_space<vmem>>, vector<10x6xf32>
    tpu.vector_store %arg8[%c0_58, %c0_59], %134 {strides = array<i32>} : memref<10x6xf32, #tpu.memory_space<vmem>>, vector<10x6xf32>,
    return
  }
  func.func @transform_0(%arg0: i32) -> (i32, i32, i32) {
    %c0_i32 = arith.constant 0 : i32
    %c0_i32_0 = arith.constant 0 : i32
    %c0_i32_1 = arith.constant 0 : i32
    %c0_i32_2 = arith.constant 0 : i32
    return %c0_i32, %c0_i32_0, %c0_i32_1 : i32, i32, i32
  }
  func.func @transform_1(%arg0: i32) -> (i32, i32, i32) {
    %c0_i32 = arith.constant 0 : i32
    %c0_i32_0 = arith.constant 0 : i32
    %c0_i32_1 = arith.constant 0 : i32
    %c0_i32_2 = arith.constant 0 : i32
    return %c0_i32, %c0_i32_0, %c0_i32_1 : i32, i32, i32
  }
  func.func @transform_2(%arg0: i32) -> (i32, i32, i32) {
    %c0_i32 = arith.constant 0 : i32
    %c0_i32_0 = arith.constant 0 : i32
    %c0_i32_1 = arith.constant 0 : i32
    %c0_i32_2 = arith.constant 0 : i32
    return %c0_i32, %c0_i32_0, %c0_i32_1 : i32, i32, i32
  }
  func.func @transform_3(%arg0: i32) -> (i32, i32) {
    %c0_i32 = arith.constant 0 : i32
    %c0_i32_0 = arith.constant 0 : i32
    %c0_i32_1 = arith.constant 0 : i32
    return %c0_i32, %c0_i32_0 : i32, i32
  }
  func.func @transform_4(%arg0: i32) -> (i32, i32) {
    %c0_i32 = arith.constant 0 : i32
    %c0_i32_0 = arith.constant 0 : i32
    %c0_i32_1 = arith.constant 0 : i32
    return %c0_i32, %c0_i32_0 : i32, i32
  }
  func.func @transform_5(%arg0: i32) -> (i32, i32) {
    %c0_i32 = arith.constant 0 : i32
    %c0_i32_0 = arith.constant 0 : i32
    %c0_i32_1 = arith.constant 0 : i32
    return %c0_i32, %c0_i32_0 : i32, i32
  }
  func.func @transform_6(%arg0: i32) -> (i32, i32) {
    %c0_i32 = arith.constant 0 : i32
    %c0_i32_0 = arith.constant 0 : i32
    %c0_i32_1 = arith.constant 0 : i32
    return %c0_i32, %c0_i32_0 : i32, i32
  }
  func.func @transform_7(%arg0: i32) -> (i32, i32) {
    %c0_i32 = arith.constant 0 : i32
    %c0_i32_0 = arith.constant 0 : i32
    %c0_i32_1 = arith.constant 0 : i32
    return %c0_i32, %c0_i32_0 : i32, i32
  }
}

</mosaic_0001>

<llo_original>
// kernel: multihead_attention_forward.1
$region0: #{multihead_attention_forward.1}
  #allocation0 [shape = 'u32[]', space=smem, size = 0x4, offset = 0x4, fixed_abs, tag = 'smem constant byte address 0x4 - core index']
  #allocation1 [shape = 'u32[72,128]{1,0:T(1,128)}', space=vmem, size = 0x9000, scoped, tag = 'internal scratch']
  #allocation2 [shape = 'bf16[10,3840]{1,0:T(8,128)(2,1)}', space=vmem, size = 0x1e000, scoped, tag = 'scratch operand']
  %s0 = inlined_call_operand.hbm [shape: f32[10,30,128], index: 0, kind: input, shape index: {}]
  %s1 = inlined_call_operand.hbm [shape: f32[10,30,128], index: 1, kind: input, shape index: {}]
  %s2 = inlined_call_operand.hbm [shape: f32[10,30,128], index: 2, kind: input, shape index: {}]
  %s3 = inlined_call_operand.hbm [shape: bf16[3840,128], index: 3, kind: input, shape index: {}]
  %s4 = inlined_call_operand.vmem [shape: f32[1,128], index: 4, kind: input, shape index: {}]
  %s5 = inlined_call_operand.vmem [shape: bf16[128,6], index: 5, kind: input, shape index: {}]
  %s6 = inlined_call_operand.vmem [shape: f32[1,6], index: 6, kind: input, shape index: {}]
  %s7 = inlined_call_operand.vmem [shape: f32[10,6], index: 7, kind: output, shape index: {}]
  %s8 = sld [smem:[#allocation0]]
  $region54: #{multihead_attention_forward.1} parent=0
    _
  %s10 = ssub.s32 1, %s8
  %s11 = scalar_select 0, %s10, %s8
  $region1: #{multihead_attention_forward.1} parent=0
    #allocation3 [shape = 'u8[163840]{0}', space=vmem, size = 0x28000, scoped, tag = 'input window, operand 0, single buffered']
    #allocation4 [shape = 's32[1]{0}', space=sflag, size = 0x4, scoped, tag = 'scoped memory for multihead_attention_forward.1']
    #allocation5 [shape = 'u8[163840]{0}', space=vmem, size = 0x28000, scoped, tag = 'input window, operand 1, single buffered']
    #allocation6 [shape = 's32[1]{0}', space=sflag, size = 0x4, scoped, tag = 'scoped memory for multihead_attention_forward.1']
    #allocation7 [shape = 'u8[163840]{0}', space=vmem, size = 0x28000, scoped, tag = 'input window, operand 2, single buffered']
    #allocation8 [shape = 'u8[983040]{0}', space=vmem, size = 0xf0000, scoped, tag = 'input window, operand 3, single buffered']
    #allocation9 [shape = 's32[1]{0}', space=sflag, size = 0x4, scoped, tag = 'scoped memory for multihead_attention_forward.1']
    %12 = vsyncpa [#allocation4], 0
    %13 = vsyncpa [#allocation6], 0
    %14 = vsyncpa [#allocation9], 0
    // Predicated region
    $region2: #{multihead_attention_forward.1} parent=1 // pred_check
      _
    $region3: #{multihead_attention_forward.1} parent=1 // pred_check_branch
      %16 = sbr.rel (0) target = $region5
    $region4: #{multihead_attention_forward.1} parent=1 // pred_region
      %18 = vsyncadd [#allocation4], 0
      %s19 = sshll.u32 %s0, 4
      %s20 = int_to_ptr.hbm [resolvable:$true] %s19
      %s21 = sshll.u32 [#allocation3], 4
      %s22 = int_to_ptr.vmem [resolvable:$true] %s21
      %27 = dma.hbm_to_vmem [thread:$0]  %s20, 5120, %s22, [#allocation4], 128, 128, 8
    $region5: #{multihead_attention_forward.1} parent=1 // pred_fallthru
      _
    // Predicated region
    $region6: #{multihead_attention_forward.1} parent=1 // pred_check
      _
    $region7: #{multihead_attention_forward.1} parent=1 // pred_check_branch
      %29 = sbr.rel (0) target = $region9
    $region8: #{multihead_attention_forward.1} parent=1 // pred_region
      %31 = vsyncadd [#allocation6], 0
      %s32 = sshll.u32 %s1, 4
      %s33 = int_to_ptr.hbm [resolvable:$true] %s32
      %s34 = sshll.u32 [#allocation5], 4
      %s35 = int_to_ptr.vmem [resolvable:$true] %s34
      %40 = dma.hbm_to_vmem [thread:$0]  %s33, 5120, %s35, [#allocation6], 128, 128, 8
    $region9: #{multihead_attention_forward.1} parent=1 // pred_fallthru
      _
    // Predicated region
    $region10: #{multihead_attention_forward.1} parent=1 // pred_check
      _
    $region11: #{multihead_attention_forward.1} parent=1 // pred_check_branch
      %42 = sbr.rel (0) target = $region13
    $region12: #{multihead_attention_forward.1} parent=1 // pred_region
      %44 = vsyncadd [#allocation6], 0
      %s45 = sshll.u32 %s2, 4
      %s46 = int_to_ptr.hbm [resolvable:$true] %s45
      %s47 = sshll.u32 [#allocation7], 4
      %s48 = int_to_ptr.vmem [resolvable:$true] %s47
      %53 = dma.hbm_to_vmem [thread:$0]  %s46, 5120, %s48, [#allocation6], 128, 128, 8
    $region13: #{multihead_attention_forward.1} parent=1 // pred_fallthru
      _
    // Predicated region
    $region14: #{multihead_attention_forward.1} parent=1 // pred_check
      _
    $region15: #{multihead_attention_forward.1} parent=1 // pred_check_branch
      %55 = sbr.rel (0) target = $region17
    $region16: #{multihead_attention_forward.1} parent=1 // pred_region
      %57 = vsyncadd [#allocation9], 0
      %s58 = sshll.u32 %s3, 4
      %s59 = int_to_ptr.hbm [resolvable:$true] %s58
      %s60 = sshll.u32 [#allocation8], 4
      %s61 = int_to_ptr.vmem [resolvable:$true] %s60
      %66 = dma.hbm_to_vmem [thread:$0]  %s59, 30720, %s61, [#allocation9], 64, 64, 4
    $region17: #{multihead_attention_forward.1} parent=1 // pred_fallthru
      _
    // Predicated region
    $region18: #{multihead_attention_forward.1} parent=1 // pred_check
      _
    $region19: #{multihead_attention_forward.1} parent=1 // pred_check_branch
      %68 = sbr.rel (0) target = $region21
    $region20: #{multihead_attention_forward.1} parent=1 // pred_region
      _
    $region21: #{multihead_attention_forward.1} parent=1 // pred_fallthru
      _
    // Predicated region
    $region22: #{multihead_attention_forward.1} parent=1 // pred_check
      _
    $region23: #{multihead_attention_forward.1} parent=1 // pred_check_branch
      %70 = sbr.rel (0) target = $region25
    $region24: #{multihead_attention_forward.1} parent=1 // pred_region
      _
    $region25: #{multihead_attention_forward.1} parent=1 // pred_fallthru
      _
    // Predicated region
    $region26: #{multihead_attention_forward.1} parent=1 // pred_check
      _
    $region27: #{multihead_attention_forward.1} parent=1 // pred_check_branch
      %72 = sbr.rel (0) target = $region29
    $region28: #{multihead_attention_forward.1} parent=1 // pred_region
      _
    $region29: #{multihead_attention_forward.1} parent=1 // pred_fallthru
      _
    // Predicated region
    $region30: #{multihead_attention_forward.1} parent=1 // pred_check
      _
    $region31: #{multihead_attention_forward.1} parent=1 // pred_check_branch
      %74 = sbr.rel (0) target = $region33
    $region32: #{multihead_attention_forward.1} parent=1 // pred_region
      %76 = dma.done [#allocation4], 5120
    $region33: #{multihead_attention_forward.1} parent=1 // pred_fallthru
      _
    // Predicated region
    $region34: #{multihead_attention_forward.1} parent=1 // pred_check
      _
    $region35: #{multihead_attention_forward.1} parent=1 // pred_check_branch
      %78 = sbr.rel (0) target = $region37
    $region36: #{multihead_attention_forward.1} parent=1 // pred_region
      %80 = dma.done [#allocation6], 5120
    $region37: #{multihead_attention_forward.1} parent=1 // pred_fallthru
      _
    // Predicated region
    $region38: #{multihead_attention_forward.1} parent=1 // pred_check
      _
    $region39: #{multihead_attention_forward.1} parent=1 // pred_check_branch
      %82 = sbr.rel (0) target = $region41
    $region40: #{multihead_attention_forward.1} parent=1 // pred_region
      %84 = dma.done [#allocation6], 5120
    $region41: #{multihead_attention_forward.1} parent=1 // pred_fallthru
      _
    // Predicated region
    $region42: #{multihead_attention_forward.1} parent=1 // pred_check
      _
    $region43: #{multihead_attention_forward.1} parent=1 // pred_check_branch
      %86 = sbr.rel (0) target = $region45
    $region44: #{multihead_attention_forward.1} parent=1 // pred_region
      %88 = dma.done [#allocation9], 30720
    $region45: #{multihead_attention_forward.1} parent=1 // pred_fallthru
      _
    %v90 = vld [vmem:[#allocation3] sm:$0xff]
    %v91 = vld [vmem:[#allocation3 + $0x8] sm:$0xff]
    %v92 = vld [vmem:[#allocation3 + $0x10] sm:$0xff]
    %v93 = vld [vmem:[#allocation3 + $0x18] sm:$0x3f]
    %v94 = vld [vmem:[#allocation3 + $0x20] sm:$0xff]
    %v95 = vld [vmem:[#allocation3 + $0x28] sm:$0xff]
    %v96 = vld [vmem:[#allocation3 + $0x30] sm:$0xff]
    %v97 = vld [vmem:[#allocation3 + $0x38] sm:$0x3f]
    %v98 = vld [vmem:[#allocation3 + $0x40] sm:$0xff]
    %v99 = vld [vmem:[#allocation3 + $0x48] sm:$0xff]
    %v100 = vld [vmem:[#allocation3 + $0x50] sm:$0xff]
    %v101 = vld [vmem:[#allocation3 + $0x58] sm:$0x3f]
    %v102 = vld [vmem:[#allocation3 + $0x60] sm:$0xff]
    %v103 = vld [vmem:[#allocation3 + $0x68] sm:$0xff]
    %v104 = vld [vmem:[#allocation3 + $0x70] sm:$0xff]
    %v105 = vld [vmem:[#allocation3 + $0x78] sm:$0x3f]
    %v106 = vld [vmem:[#allocation3 + $0x80] sm:$0xff]
    %v107 = vld [vmem:[#allocation3 + $0x88] sm:$0xff]
    %v108 = vld [vmem:[#allocation3 + $0x90] sm:$0xff]
    %v109 = vld [vmem:[#allocation3 + $0x98] sm:$0x3f]
    %v110 = vld [vmem:[#allocation3 + $0xa0] sm:$0xff]
    %v111 = vld [vmem:[#allocation3 + $0xa8] sm:$0xff]
    %v112 = vld [vmem:[#allocation3 + $0xb0] sm:$0xff]
    %v113 = vld [vmem:[#allocation3 + $0xb8] sm:$0x3f]
    %v114 = vld [vmem:[#allocation3 + $0xc0] sm:$0xff]
    %v115 = vld [vmem:[#allocation3 + $0xc8] sm:$0xff]
    %v116 = vld [vmem:[#allocation3 + $0xd0] sm:$0xff]
    %v117 = vld [vmem:[#allocation3 + $0xd8] sm:$0x3f]
    %v118 = vld [vmem:[#allocation3 + $0xe0] sm:$0xff]
    %v119 = vld [vmem:[#allocation3 + $0xe8] sm:$0xff]
    %v120 = vld [vmem:[#allocation3 + $0xf0] sm:$0xff]
    %v121 = vld [vmem:[#allocation3 + $0xf8] sm:$0x3f]
    %v122 = vld [vmem:[#allocation3 + $0x100] sm:$0xff]
    %v123 = vld [vmem:[#allocation3 + $0x108] sm:$0xff]
    %v124 = vld [vmem:[#allocation3 + $0x110] sm:$0xff]
    %v125 = vld [vmem:[#allocation3 + $0x118] sm:$0x3f]
    %v126 = vld [vmem:[#allocation3 + $0x120] sm:$0xff]
    %v127 = vld [vmem:[#allocation3 + $0x128] sm:$0xff]
    %v128 = vld [vmem:[#allocation3 + $0x130] sm:$0xff]
    %v129 = vld [vmem:[#allocation3 + $0x138] sm:$0x3f]
    %v130 = vpack.c.bf16 %v90, %v90
    %v131 = vpack.c.bf16 %v91, %v91
    %v132 = vpack.c.bf16 %v92, %v92
    %v133 = vpack.c.bf16 %v93, %v93
    %v134 = vpack.c.bf16 %v94, %v94
    %v135 = vpack.c.bf16 %v95, %v95
    %v136 = vpack.c.bf16 %v96, %v96
    %v137 = vpack.c.bf16 %v97, %v97
    %v138 = vpack.c.bf16 %v98, %v98
    %v139 = vpack.c.bf16 %v99, %v99
    %v140 = vpack.c.bf16 %v100, %v100
    %v141 = vpack.c.bf16 %v101, %v101
    %v142 = vpack.c.bf16 %v102, %v102
    %v143 = vpack.c.bf16 %v103, %v103
    %v144 = vpack.c.bf16 %v104, %v104
    %v145 = vpack.c.bf16 %v105, %v105
    %v146 = vpack.c.bf16 %v106, %v106
    %v147 = vpack.c.bf16 %v107, %v107
    %v148 = vpack.c.bf16 %v108, %v108
    %v149 = vpack.c.bf16 %v109, %v109
    %v150 = vpack.c.bf16 %v110, %v110
    %v151 = vpack.c.bf16 %v111, %v111
    %v152 = vpack.c.bf16 %v112, %v112
    %v153 = vpack.c.bf16 %v113, %v113
    %v154 = vpack.c.bf16 %v114, %v114
    %v155 = vpack.c.bf16 %v115, %v115
    %v156 = vpack.c.bf16 %v116, %v116
    %v157 = vpack.c.bf16 %v117, %v117
    %v158 = vpack.c.bf16 %v118, %v118
    %v159 = vpack.c.bf16 %v119, %v119
    %v160 = vpack.c.bf16 %v120, %v120
    %v161 = vpack.c.bf16 %v121, %v121
    %v162 = vpack.c.bf16 %v122, %v122
    %v163 = vpack.c.bf16 %v123, %v123
    %v164 = vpack.c.bf16 %v124, %v124
    %v165 = vpack.c.bf16 %v125, %v125
    %v166 = vpack.c.bf16 %v126, %v126
    %v167 = vpack.c.bf16 %v127, %v127
    %v168 = vpack.c.bf16 %v128, %v128
    %v169 = vpack.c.bf16 %v129, %v129
    %v170 = vld [vmem:[#allocation5] sm:$0xff]
    %v171 = vld [vmem:[#allocation5 + $0x8] sm:$0xff]
    %v172 = vld [vmem:[#allocation5 + $0x10] sm:$0xff]
    %v173 = vld [vmem:[#allocation5 + $0x18] sm:$0x3f]
    %v174 = vld [vmem:[#allocation5 + $0x20] sm:$0xff]
    %v175 = vld [vmem:[#allocation5 + $0x28] sm:$0xff]
    %v176 = vld [vmem:[#allocation5 + $0x30] sm:$0xff]
    %v177 = vld [vmem:[#allocation5 + $0x38] sm:$0x3f]
    %v178 = vld [vmem:[#allocation5 + $0x40] sm:$0xff]
    %v179 = vld [vmem:[#allocation5 + $0x48] sm:$0xff]
    %v180 = vld [vmem:[#allocation5 + $0x50] sm:$0xff]
    %v181 = vld [vmem:[#allocation5 + $0x58] sm:$0x3f]
    %v182 = vld [vmem:[#allocation5 + $0x60] sm:$0xff]
    %v183 = vld [vmem:[#allocation5 + $0x68] sm:$0xff]
    %v184 = vld [vmem:[#allocation5 + $0x70] sm:$0xff]
    %v185 = vld [vmem:[#allocation5 + $0x78] sm:$0x3f]
    %v186 = vld [vmem:[#allocation5 + $0x80] sm:$0xff]
    %v187 = vld [vmem:[#allocation5 + $0x88] sm:$0xff]
    %v188 = vld [vmem:[#allocation5 + $0x90] sm:$0xff]
    %v189 = vld [vmem:[#allocation5 + $0x98] sm:$0x3f]
    %v190 = vld [vmem:[#allocation5 + $0xa0] sm:$0xff]
    %v191 = vld [vmem:[#allocation5 + $0xa8] sm:$0xff]
    %v192 = vld [vmem:[#allocation5 + $0xb0] sm:$0xff]
    %v193 = vld [vmem:[#allocation5 + $0xb8] sm:$0x3f]
    %v194 = vld [vmem:[#allocation5 + $0xc0] sm:$0xff]
    %v195 = vld [vmem:[#allocation5 + $0xc8] sm:$0xff]
    %v196 = vld [vmem:[#allocation5 + $0xd0] sm:$0xff]
    %v197 = vld [vmem:[#allocation5 + $0xd8] sm:$0x3f]
    %v198 = vld [vmem:[#allocation5 + $0xe0] sm:$0xff]
    %v199 = vld [vmem:[#allocation5 + $0xe8] sm:$0xff]
    %v200 = vld [vmem:[#allocation5 + $0xf0] sm:$0xff]
    %v201 = vld [vmem:[#allocation5 + $0xf8] sm:$0x3f]
    %v202 = vld [vmem:[#allocation5 + $0x100] sm:$0xff]
    %v203 = vld [vmem:[#allocation5 + $0x108] sm:$0xff]
    %v204 = vld [vmem:[#allocation5 + $0x110] sm:$0xff]
    %v205 = vld [vmem:[#allocation5 + $0x118] sm:$0x3f]
    %v206 = vld [vmem:[#allocation5 + $0x120] sm:$0xff]
    %v207 = vld [vmem:[#allocation5 + $0x128] sm:$0xff]
    %v208 = vld [vmem:[#allocation5 + $0x130] sm:$0xff]
    %v209 = vld [vmem:[#allocation5 + $0x138] sm:$0x3f]
    %v210 = vpack.c.bf16 %v170, %v170
    %v211 = vpack.c.bf16 %v171, %v171
    %v212 = vpack.c.bf16 %v172, %v172
    %v213 = vpack.c.bf16 %v173, %v173
    %v214 = vpack.c.bf16 %v174, %v174
    %v215 = vpack.c.bf16 %v175, %v175
    %v216 = vpack.c.bf16 %v176, %v176
    %v217 = vpack.c.bf16 %v177, %v177
    %v218 = vpack.c.bf16 %v178, %v178
    %v219 = vpack.c.bf16 %v179, %v179
    %v220 = vpack.c.bf16 %v180, %v180
    %v221 = vpack.c.bf16 %v181, %v181
    %v222 = vpack.c.bf16 %v182, %v182
    %v223 = vpack.c.bf16 %v183, %v183
    %v224 = vpack.c.bf16 %v184, %v184
    %v225 = vpack.c.bf16 %v185, %v185
    %v226 = vpack.c.bf16 %v186, %v186
    %v227 = vpack.c.bf16 %v187, %v187
    %v228 = vpack.c.bf16 %v188, %v188
    %v229 = vpack.c.bf16 %v189, %v189
    %v230 = vpack.c.bf16 %v190, %v190
    %v231 = vpack.c.bf16 %v191, %v191
    %v232 = vpack.c.bf16 %v192, %v192
    %v233 = vpack.c.bf16 %v193, %v193
    %v234 = vpack.c.bf16 %v194, %v194
    %v235 = vpack.c.bf16 %v195, %v195
    %v236 = vpack.c.bf16 %v196, %v196
    %v237 = vpack.c.bf16 %v197, %v197
    %v238 = vpack.c.bf16 %v198, %v198
    %v239 = vpack.c.bf16 %v199, %v199
    %v240 = vpack.c.bf16 %v200, %v200
    %v241 = vpack.c.bf16 %v201, %v201
    %v242 = vpack.c.bf16 %v202, %v202
    %v243 = vpack.c.bf16 %v203, %v203
    %v244 = vpack.c.bf16 %v204, %v204
    %v245 = vpack.c.bf16 %v205, %v205
    %v246 = vpack.c.bf16 %v206, %v206
    %v247 = vpack.c.bf16 %v207, %v207
    %v248 = vpack.c.bf16 %v208, %v208
    %v249 = vpack.c.bf16 %v209, %v209
    %v250 = vld [vmem:[#allocation7] sm:$0xff]
    %v251 = vld [vmem:[#allocation7 + $0x8] sm:$0xff]
    %v252 = vld [vmem:[#allocation7 + $0x10] sm:$0xff]
    %v253 = vld [vmem:[#allocation7 + $0x18] sm:$0x3f]
    %v254 = vld [vmem:[#allocation7 + $0x20] sm:$0xff]
    %v255 = vld [vmem:[#allocation7 + $0x28] sm:$0xff]
    %v256 = vld [vmem:[#allocation7 + $0x30] sm:$0xff]
    %v257 = vld [vmem:[#allocation7 + $0x38] sm:$0x3f]
    %v258 = vld [vmem:[#allocation7 + $0x40] sm:$0xff]
    %v259 = vld [vmem:[#allocation7 + $0x48] sm:$0xff]
    %v260 = vld [vmem:[#allocation7 + $0x50] sm:$0xff]
    %v261 = vld [vmem:[#allocation7 + $0x58] sm:$0x3f]
    %v262 = vld [vmem:[#allocation7 + $0x60] sm:$0xff]
    %v263 = vld [vmem:[#allocation7 + $0x68] sm:$0xff]
    %v264 = vld [vmem:[#allocation7 + $0x70] sm:$0xff]
    %v265 = vld [vmem:[#allocation7 + $0x78] sm:$0x3f]
    %v266 = vld [vmem:[#allocation7 + $0x80] sm:$0xff]
    %v267 = vld [vmem:[#allocation7 + $0x88] sm:$0xff]
    %v268 = vld [vmem:[#allocation7 + $0x90] sm:$0xff]
    %v269 = vld [vmem:[#allocation7 + $0x98] sm:$0x3f]
    %v270 = vld [vmem:[#allocation7 + $0xa0] sm:$0xff]
    %v271 = vld [vmem:[#allocation7 + $0xa8] sm:$0xff]
    %v272 = vld [vmem:[#allocation7 + $0xb0] sm:$0xff]
    %v273 = vld [vmem:[#allocation7 + $0xb8] sm:$0x3f]
    %v274 = vld [vmem:[#allocation7 + $0xc0] sm:$0xff]
    %v275 = vld [vmem:[#allocation7 + $0xc8] sm:$0xff]
    %v276 = vld [vmem:[#allocation7 + $0xd0] sm:$0xff]
    %v277 = vld [vmem:[#allocation7 + $0xd8] sm:$0x3f]
    %v278 = vld [vmem:[#allocation7 + $0xe0] sm:$0xff]
    %v279 = vld [vmem:[#allocation7 + $0xe8] sm:$0xff]
    %v280 = vld [vmem:[#allocation7 + $0xf0] sm:$0xff]
    %v281 = vld [vmem:[#allocation7 + $0xf8] sm:$0x3f]
    %v282 = vld [vmem:[#allocation7 + $0x100] sm:$0xff]
    %v283 = vld [vmem:[#allocation7 + $0x108] sm:$0xff]
    %v284 = vld [vmem:[#allocation7 + $0x110] sm:$0xff]
    %v285 = vld [vmem:[#allocation7 + $0x118] sm:$0x3f]
    %v286 = vld [vmem:[#allocation7 + $0x120] sm:$0xff]
    %v287 = vld [vmem:[#allocation7 + $0x128] sm:$0xff]
    %v288 = vld [vmem:[#allocation7 + $0x130] sm:$0xff]
    %v289 = vld [vmem:[#allocation7 + $0x138] sm:$0x3f]
    %v290 = vpack.c.bf16 %v250, %v250
    %v291 = vpack.c.bf16 %v251, %v251
    %v292 = vpack.c.bf16 %v252, %v252
    %v293 = vpack.c.bf16 %v253, %v253
    %v294 = vpack.c.bf16 %v254, %v254
    %v295 = vpack.c.bf16 %v255, %v255
    %v296 = vpack.c.bf16 %v256, %v256
    %v297 = vpack.c.bf16 %v257, %v257
    %v298 = vpack.c.bf16 %v258, %v258
    %v299 = vpack.c.bf16 %v259, %v259
    %v300 = vpack.c.bf16 %v260, %v260
    %v301 = vpack.c.bf16 %v261, %v261
    %v302 = vpack.c.bf16 %v262, %v262
    %v303 = vpack.c.bf16 %v263, %v263
    %v304 = vpack.c.bf16 %v264, %v264
    %v305 = vpack.c.bf16 %v265, %v265
    %v306 = vpack.c.bf16 %v266, %v266
    %v307 = vpack.c.bf16 %v267, %v267
    %v308 = vpack.c.bf16 %v268, %v268
    %v309 = vpack.c.bf16 %v269, %v269
    %v310 = vpack.c.bf16 %v270, %v270
    %v311 = vpack.c.bf16 %v271, %v271
    %v312 = vpack.c.bf16 %v272, %v272
    %v313 = vpack.c.bf16 %v273, %v273
    %v314 = vpack.c.bf16 %v274, %v274
    %v315 = vpack.c.bf16 %v275, %v275
    %v316 = vpack.c.bf16 %v276, %v276
    %v317 = vpack.c.bf16 %v277, %v277
    %v318 = vpack.c.bf16 %v278, %v278
    %v319 = vpack.c.bf16 %v279, %v279
    %v320 = vpack.c.bf16 %v280, %v280
    %v321 = vpack.c.bf16 %v281, %v281
    %v322 = vpack.c.bf16 %v282, %v282
    %v323 = vpack.c.bf16 %v283, %v283
    %v324 = vpack.c.bf16 %v284, %v284
    %v325 = vpack.c.bf16 %v285, %v285
    %v326 = vpack.c.bf16 %v286, %v286
    %v327 = vpack.c.bf16 %v287, %v287
    %v328 = vpack.c.bf16 %v288, %v288
    %v329 = vpack.c.bf16 %v289, %v289
    %v334 = vunpack.c.l.b16 %v130
    %v335 = vunpack.c.l.b16 %v131
    %v336 = vunpack.c.l.b16 %v132
    %v337 = vunpack.c.l.b16 %v133
    %v338 = vpack.c.b16 %v335, %v334
    %v339 = vpack.c.b16 %v337, %v336
    %v346 = vunpack.c.l.b16 %v210
    %v347 = vunpack.c.l.b16 %v211
    %v348 = vunpack.c.l.b16 %v212
    %v349 = vunpack.c.l.b16 %v213
    %v350 = vpack.c.b16 %v347, %v346
    %v351 = vpack.c.b16 %v349, %v348
    %354 = vmatpush.bf16.xpose.msra.mxu0 0
    %355 = vmatpush.bf16.xpose.msra.mxu0 0
    %356 = vmatpush.bf16.xpose.msra.mxu0 0
    %357 = vmatpush.bf16.xpose.msra.mxu0 0
    %358 = vmatpush.bf16.xpose.msra.mxu0 0
    %359 = vmatpush.bf16.xpose.msra.mxu0 0
    %360 = vmatpush.bf16.xpose.msra.mxu0 %v351
    %361 = vmatpush.bf16.xpose.msra.mxu0 %v350
    %362 = vmatmul.bf16.gmra.mxu0 %v338
    %v363 = vpop.f32.mrf.mxu0
    %v364 = vadd.f32 0.0, %v363
    %v365 = vpop.f32.mrf.mxu0
    %v366 = vadd.f32 0.0, %v365
    %367 = vmatmul.bf16.gmra.mxu0 %v339
    %v368 = vpop.f32.mrf.mxu0
    %v369 = vadd.f32 0.0, %v368
    %v370 = vpop.f32.mrf.mxu0
    %v371 = vadd.f32 0.0, %v370
    %372 = vdwg.mxu0
    %v377 = vunpack.c.l.b16 %v134
    %v378 = vunpack.c.l.b16 %v135
    %v379 = vunpack.c.l.b16 %v136
    %v380 = vunpack.c.l.b16 %v137
    %v381 = vpack.c.b16 %v378, %v377
    %v382 = vpack.c.b16 %v380, %v379
    %v389 = vunpack.c.l.b16 %v214
    %v390 = vunpack.c.l.b16 %v215
    %v391 = vunpack.c.l.b16 %v216
    %v392 = vunpack.c.l.b16 %v217
    %v393 = vpack.c.b16 %v390, %v389
    %v394 = vpack.c.b16 %v392, %v391
    %397 = vmatpush.bf16.xpose.msra.mxu0 0
    %398 = vmatpush.bf16.xpose.msra.mxu0 0
    %399 = vmatpush.bf16.xpose.msra.mxu0 0
    %400 = vmatpush.bf16.xpose.msra.mxu0 0
    %401 = vmatpush.bf16.xpose.msra.mxu0 0
    %402 = vmatpush.bf16.xpose.msra.mxu0 0
    %403 = vmatpush.bf16.xpose.msra.mxu0 %v394
    %404 = vmatpush.bf16.xpose.msra.mxu0 %v393
    %405 = vmatmul.bf16.gmra.mxu0 %v381
    %v406 = vpop.f32.mrf.mxu0
    %v407 = vadd.f32 0.0, %v406
    %v408 = vpop.f32.mrf.mxu0
    %v409 = vadd.f32 0.0, %v408
    %410 = vmatmul.bf16.gmra.mxu0 %v382
    %v411 = vpop.f32.mrf.mxu0
    %v412 = vadd.f32 0.0, %v411
    %v413 = vpop.f32.mrf.mxu0
    %v414 = vadd.f32 0.0, %v413
    %415 = vdwg.mxu0
    %v420 = vunpack.c.l.b16 %v138
    %v421 = vunpack.c.l.b16 %v139
    %v422 = vunpack.c.l.b16 %v140
    %v423 = vunpack.c.l.b16 %v141
    %v424 = vpack.c.b16 %v421, %v420
    %v425 = vpack.c.b16 %v423, %v422
    %v432 = vunpack.c.l.b16 %v218
    %v433 = vunpack.c.l.b16 %v219
    %v434 = vunpack.c.l.b16 %v220
    %v435 = vunpack.c.l.b16 %v221
    %v436 = vpack.c.b16 %v433, %v432
    %v437 = vpack.c.b16 %v435, %v434
    %440 = vmatpush.bf16.xpose.msra.mxu0 0
    %441 = vmatpush.bf16.xpose.msra.mxu0 0
    %442 = vmatpush.bf16.xpose.msra.mxu0 0
    %443 = vmatpush.bf16.xpose.msra.mxu0 0
    %444 = vmatpush.bf16.xpose.msra.mxu0 0
    %445 = vmatpush.bf16.xpose.msra.mxu0 0
    %446 = vmatpush.bf16.xpose.msra.mxu0 %v437
    %447 = vmatpush.bf16.xpose.msra.mxu0 %v436
    %448 = vmatmul.bf16.gmra.mxu0 %v424
    %v449 = vpop.f32.mrf.mxu0
    %v450 = vadd.f32 0.0, %v449
    %v451 = vpop.f32.mrf.mxu0
    %v452 = vadd.f32 0.0, %v451
    %453 = vmatmul.bf16.gmra.mxu0 %v425
    %v454 = vpop.f32.mrf.mxu0
    %v455 = vadd.f32 0.0, %v454
    %v456 = vpop.f32.mrf.mxu0
    %v457 = vadd.f32 0.0, %v456
    %458 = vdwg.mxu0
    %v463 = vunpack.c.l.b16 %v142
    %v464 = vunpack.c.l.b16 %v143
    %v465 = vunpack.c.l.b16 %v144
    %v466 = vunpack.c.l.b16 %v145
    %v467 = vpack.c.b16 %v464, %v463
    %v468 = vpack.c.b16 %v466, %v465
    %v475 = vunpack.c.l.b16 %v222
    %v476 = vunpack.c.l.b16 %v223
    %v477 = vunpack.c.l.b16 %v224
    %v478 = vunpack.c.l.b16 %v225
    %v479 = vpack.c.b16 %v476, %v475
    %v480 = vpack.c.b16 %v478, %v477
    %483 = vmatpush.bf16.xpose.msra.mxu0 0
    %484 = vmatpush.bf16.xpose.msra.mxu0 0
    %485 = vmatpush.bf16.xpose.msra.mxu0 0
    %486 = vmatpush.bf16.xpose.msra.mxu0 0
    %487 = vmatpush.bf16.xpose.msra.mxu0 0
    %488 = vmatpush.bf16.xpose.msra.mxu0 0
    %489 = vmatpush.bf16.xpose.msra.mxu0 %v480
    %490 = vmatpush.bf16.xpose.msra.mxu0 %v479
    %491 = vmatmul.bf16.gmra.mxu0 %v467
    %v492 = vpop.f32.mrf.mxu0
    %v493 = vadd.f32 0.0, %v492
    %v494 = vpop.f32.mrf.mxu0
    %v495 = vadd.f32 0.0, %v494
    %496 = vmatmul.bf16.gmra.mxu0 %v468
    %v497 = vpop.f32.mrf.mxu0
    %v498 = vadd.f32 0.0, %v497
    %v499 = vpop.f32.mrf.mxu0
    %v500 = vadd.f32 0.0, %v499
    %501 = vdwg.mxu0
    %v506 = vunpack.c.l.b16 %v146
    %v507 = vunpack.c.l.b16 %v147
    %v508 = vunpack.c.l.b16 %v148
    %v509 = vunpack.c.l.b16 %v149
    %v510 = vpack.c.b16 %v507, %v506
    %v511 = vpack.c.b16 %v509, %v508
    %v518 = vunpack.c.l.b16 %v226
    %v519 = vunpack.c.l.b16 %v227
    %v520 = vunpack.c.l.b16 %v228
    %v521 = vunpack.c.l.b16 %v229
    %v522 = vpack.c.b16 %v519, %v518
    %v523 = vpack.c.b16 %v521, %v520
    %526 = vmatpush.bf16.xpose.msra.mxu0 0
    %527 = vmatpush.bf16.xpose.msra.mxu0 0
    %528 = vmatpush.bf16.xpose.msra.mxu0 0
    %529 = vmatpush.bf16.xpose.msra.mxu0 0
    %530 = vmatpush.bf16.xpose.msra.mxu0 0
    %531 = vmatpush.bf16.xpose.msra.mxu0 0
    %532 = vmatpush.bf16.xpose.msra.mxu0 %v523
    %533 = vmatpush.bf16.xpose.msra.mxu0 %v522
    %534 = vmatmul.bf16.gmra.mxu0 %v510
    %v535 = vpop.f32.mrf.mxu0
    %v536 = vadd.f32 0.0, %v535
    %v537 = vpop.f32.mrf.mxu0
    %v538 = vadd.f32 0.0, %v537
    %539 = vmatmul.bf16.gmra.mxu0 %v511
    %v540 = vpop.f32.mrf.mxu0
    %v541 = vadd.f32 0.0, %v540
    %v542 = vpop.f32.mrf.mxu0
    %v543 = vadd.f32 0.0, %v542
    %544 = vdwg.mxu0
    %v549 = vunpack.c.l.b16 %v150
    %v550 = vunpack.c.l.b16 %v151
    %v551 = vunpack.c.l.b16 %v152
    %v552 = vunpack.c.l.b16 %v153
    %v553 = vpack.c.b16 %v550, %v549
    %v554 = vpack.c.b16 %v552, %v551
    %v561 = vunpack.c.l.b16 %v230
    %v562 = vunpack.c.l.b16 %v231
    %v563 = vunpack.c.l.b16 %v232
    %v564 = vunpack.c.l.b16 %v233
    %v565 = vpack.c.b16 %v562, %v561
    %v566 = vpack.c.b16 %v564, %v563
    %569 = vmatpush.bf16.xpose.msra.mxu0 0
    %570 = vmatpush.bf16.xpose.msra.mxu0 0
    %571 = vmatpush.bf16.xpose.msra.mxu0 0
    %572 = vmatpush.bf16.xpose.msra.mxu0 0
    %573 = vmatpush.bf16.xpose.msra.mxu0 0
    %574 = vmatpush.bf16.xpose.msra.mxu0 0
    %575 = vmatpush.bf16.xpose.msra.mxu0 %v566
    %576 = vmatpush.bf16.xpose.msra.mxu0 %v565
    %577 = vmatmul.bf16.gmra.mxu0 %v553
    %v578 = vpop.f32.mrf.mxu0
    %v579 = vadd.f32 0.0, %v578
    %v580 = vpop.f32.mrf.mxu0
    %v581 = vadd.f32 0.0, %v580
    %582 = vmatmul.bf16.gmra.mxu0 %v554
    %v583 = vpop.f32.mrf.mxu0
    %v584 = vadd.f32 0.0, %v583
    %v585 = vpop.f32.mrf.mxu0
    %v586 = vadd.f32 0.0, %v585
    %587 = vdwg.mxu0
    %v592 = vunpack.c.l.b16 %v154
    %v593 = vunpack.c.l.b16 %v155
    %v594 = vunpack.c.l.b16 %v156
    %v595 = vunpack.c.l.b16 %v157
    %v596 = vpack.c.b16 %v593, %v592
    %v597 = vpack.c.b16 %v595, %v594
    %v604 = vunpack.c.l.b16 %v234
    %v605 = vunpack.c.l.b16 %v235
    %v606 = vunpack.c.l.b16 %v236
    %v607 = vunpack.c.l.b16 %v237
    %v608 = vpack.c.b16 %v605, %v604
    %v609 = vpack.c.b16 %v607, %v606
    %612 = vmatpush.bf16.xpose.msra.mxu0 0
    %613 = vmatpush.bf16.xpose.msra.mxu0 0
    %614 = vmatpush.bf16.xpose.msra.mxu0 0
    %615 = vmatpush.bf16.xpose.msra.mxu0 0
    %616 = vmatpush.bf16.xpose.msra.mxu0 0
    %617 = vmatpush.bf16.xpose.msra.mxu0 0
    %618 = vmatpush.bf16.xpose.msra.mxu0 %v609
    %619 = vmatpush.bf16.xpose.msra.mxu0 %v608
    %620 = vmatmul.bf16.gmra.mxu0 %v596
    %v621 = vpop.f32.mrf.mxu0
    %v622 = vadd.f32 0.0, %v621
    %v623 = vpop.f32.mrf.mxu0
    %v624 = vadd.f32 0.0, %v623
    %625 = vmatmul.bf16.gmra.mxu0 %v597
    %v626 = vpop.f32.mrf.mxu0
    %v627 = vadd.f32 0.0, %v626
    %v628 = vpop.f32.mrf.mxu0
    %v629 = vadd.f32 0.0, %v628
    %630 = vdwg.mxu0
    %v635 = vunpack.c.l.b16 %v158
    %v636 = vunpack.c.l.b16 %v159
    %v637 = vunpack.c.l.b16 %v160
    %v638 = vunpack.c.l.b16 %v161
    %v639 = vpack.c.b16 %v636, %v635
    %v640 = vpack.c.b16 %v638, %v637
    %v647 = vunpack.c.l.b16 %v238
    %v648 = vunpack.c.l.b16 %v239
    %v649 = vunpack.c.l.b16 %v240
    %v650 = vunpack.c.l.b16 %v241
    %v651 = vpack.c.b16 %v648, %v647
    %v652 = vpack.c.b16 %v650, %v649
    %655 = vmatpush.bf16.xpose.msra.mxu0 0
    %656 = vmatpush.bf16.xpose.msra.mxu0 0
    %657 = vmatpush.bf16.xpose.msra.mxu0 0
    %658 = vmatpush.bf16.xpose.msra.mxu0 0
    %659 = vmatpush.bf16.xpose.msra.mxu0 0
    %660 = vmatpush.bf16.xpose.msra.mxu0 0
    %661 = vmatpush.bf16.xpose.msra.mxu0 %v652
    %662 = vmatpush.bf16.xpose.msra.mxu0 %v651
    %663 = vmatmul.bf16.gmra.mxu0 %v639
    %v664 = vpop.f32.mrf.mxu0
    %v665 = vadd.f32 0.0, %v664
    %v666 = vpop.f32.mrf.mxu0
    %v667 = vadd.f32 0.0, %v666
    %668 = vmatmul.bf16.gmra.mxu0 %v640
    %v669 = vpop.f32.mrf.mxu0
    %v670 = vadd.f32 0.0, %v669
    %v671 = vpop.f32.mrf.mxu0
    %v672 = vadd.f32 0.0, %v671
    %673 = vdwg.mxu0
    %v678 = vunpack.c.l.b16 %v162
    %v679 = vunpack.c.l.b16 %v163
    %v680 = vunpack.c.l.b16 %v164
    %v681 = vunpack.c.l.b16 %v165
    %v682 = vpack.c.b16 %v679, %v678
    %v683 = vpack.c.b16 %v681, %v680
    %v690 = vunpack.c.l.b16 %v242
    %v691 = vunpack.c.l.b16 %v243
    %v692 = vunpack.c.l.b16 %v244
    %v693 = vunpack.c.l.b16 %v245
    %v694 = vpack.c.b16 %v691, %v690
    %v695 = vpack.c.b16 %v693, %v692
    %698 = vmatpush.bf16.xpose.msra.mxu0 0
    %699 = vmatpush.bf16.xpose.msra.mxu0 0
    %700 = vmatpush.bf16.xpose.msra.mxu0 0
    %701 = vmatpush.bf16.xpose.msra.mxu0 0
    %702 = vmatpush.bf16.xpose.msra.mxu0 0
    %703 = vmatpush.bf16.xpose.msra.mxu0 0
    %704 = vmatpush.bf16.xpose.msra.mxu0 %v695
    %705 = vmatpush.bf16.xpose.msra.mxu0 %v694
    %706 = vmatmul.bf16.gmra.mxu0 %v682
    %v707 = vpop.f32.mrf.mxu0
    %v708 = vadd.f32 0.0, %v707
    %v709 = vpop.f32.mrf.mxu0
    %v710 = vadd.f32 0.0, %v709
    %711 = vmatmul.bf16.gmra.mxu0 %v683
    %v712 = vpop.f32.mrf.mxu0
    %v713 = vadd.f32 0.0, %v712
    %v714 = vpop.f32.mrf.mxu0
    %v715 = vadd.f32 0.0, %v714
    %716 = vdwg.mxu0
    %v721 = vunpack.c.l.b16 %v166
    %v722 = vunpack.c.l.b16 %v167
    %v723 = vunpack.c.l.b16 %v168
    %v724 = vunpack.c.l.b16 %v169
    %v725 = vpack.c.b16 %v722, %v721
    %v726 = vpack.c.b16 %v724, %v723
    %v733 = vunpack.c.l.b16 %v246
    %v734 = vunpack.c.l.b16 %v247
    %v735 = vunpack.c.l.b16 %v248
    %v736 = vunpack.c.l.b16 %v249
    %v737 = vpack.c.b16 %v734, %v733
    %v738 = vpack.c.b16 %v736, %v735
    %741 = vmatpush.bf16.xpose.msra.mxu0 0
    %742 = vmatpush.bf16.xpose.msra.mxu0 0
    %743 = vmatpush.bf16.xpose.msra.mxu0 0
    %744 = vmatpush.bf16.xpose.msra.mxu0 0
    %745 = vmatpush.bf16.xpose.msra.mxu0 0
    %746 = vmatpush.bf16.xpose.msra.mxu0 0
    %747 = vmatpush.bf16.xpose.msra.mxu0 %v738
    %748 = vmatpush.bf16.xpose.msra.mxu0 %v737
    %749 = vmatmul.bf16.gmra.mxu0 %v725
    %v750 = vpop.f32.mrf.mxu0
    %v751 = vadd.f32 0.0, %v750
    %v752 = vpop.f32.mrf.mxu0
    %v753 = vadd.f32 0.0, %v752
    %754 = vmatmul.bf16.gmra.mxu0 %v726
    %v755 = vpop.f32.mrf.mxu0
    %v756 = vadd.f32 0.0, %v755
    %v757 = vpop.f32.mrf.mxu0
    %v758 = vadd.f32 0.0, %v757
    %759 = vdwg.mxu0
    %v760 = vmul.f32 %v364, 0.088388346
    %v761 = vmul.f32 %v366, 0.088388346
    %v762 = vmul.f32 %v369, 0.088388346
    %v763 = vmul.f32 %v371, 0.088388346
    %v764 = vmul.f32 %v407, 0.088388346
    %v765 = vmul.f32 %v409, 0.088388346
    %v766 = vmul.f32 %v412, 0.088388346
    %v767 = vmul.f32 %v414, 0.088388346
    %v768 = vmul.f32 %v450, 0.088388346
    %v769 = vmul.f32 %v452, 0.088388346
    %v770 = vmul.f32 %v455, 0.088388346
    %v771 = vmul.f32 %v457, 0.088388346
    %v772 = vmul.f32 %v493, 0.088388346
    %v773 = vmul.f32 %v495, 0.088388346
    %v774 = vmul.f32 %v498, 0.088388346
    %v775 = vmul.f32 %v500, 0.088388346
    %v776 = vmul.f32 %v536, 0.088388346
    %v777 = vmul.f32 %v538, 0.088388346
    %v778 = vmul.f32 %v541, 0.088388346
    %v779 = vmul.f32 %v543, 0.088388346
    %v780 = vmul.f32 %v579, 0.088388346
    %v781 = vmul.f32 %v581, 0.088388346
    %v782 = vmul.f32 %v584, 0.088388346
    %v783 = vmul.f32 %v586, 0.088388346
    %v784 = vmul.f32 %v622, 0.088388346
    %v785 = vmul.f32 %v624, 0.088388346
    %v786 = vmul.f32 %v627, 0.088388346
    %v787 = vmul.f32 %v629, 0.088388346
    %v788 = vmul.f32 %v665, 0.088388346
    %v789 = vmul.f32 %v667, 0.088388346
    %v790 = vmul.f32 %v670, 0.088388346
    %v791 = vmul.f32 %v672, 0.088388346
    %v792 = vmul.f32 %v708, 0.088388346
    %v793 = vmul.f32 %v710, 0.088388346
    %v794 = vmul.f32 %v713, 0.088388346
    %v795 = vmul.f32 %v715, 0.088388346
    %v796 = vmul.f32 %v751, 0.088388346
    %v797 = vmul.f32 %v753, 0.088388346
    %v798 = vmul.f32 %v756, 0.088388346
    %v799 = vmul.f32 %v758, 0.088388346
    %vm800 = vcmask 244736
    %v801 = vsel %vm800, %v760, -inf
    %802 = vmax.xlane.f32.xlu0 %v801
    %v803 = vpop.xlane.xlu0 %802
    %v804 = vsel %vm800, %v761, -inf
    %805 = vmax.xlane.f32.xlu0 %v804
    %v806 = vpop.xlane.xlu0 %805
    %v807 = vsel %vm800, %v762, -inf
    %808 = vmax.xlane.f32.xlu0 %v807
    %v809 = vpop.xlane.xlu0 %808
    %vm810 = vcmask 242688
    %v811 = vsel %vm810, %v763, -inf
    %812 = vmax.xlane.f32.xlu0 %v811
    %v813 = vpop.xlane.xlu0 %812
    %v814 = vsel %vm800, %v764, -inf
    %815 = vmax.xlane.f32.xlu0 %v814
    %v816 = vpop.xlane.xlu0 %815
    %v817 = vsel %vm800, %v765, -inf
    %818 = vmax.xlane.f32.xlu0 %v817
    %v819 = vpop.xlane.xlu0 %818
    %v820 = vsel %vm800, %v766, -inf
    %821 = vmax.xlane.f32.xlu0 %v820
    %v822 = vpop.xlane.xlu0 %821
    %v823 = vsel %vm810, %v767, -inf
    %824 = vmax.xlane.f32.xlu0 %v823
    %v825 = vpop.xlane.xlu0 %824
    %v826 = vsel %vm800, %v768, -inf
    %827 = vmax.xlane.f32.xlu0 %v826
    %v828 = vpop.xlane.xlu0 %827
    %v829 = vsel %vm800, %v769, -inf
    %830 = vmax.xlane.f32.xlu0 %v829
    %v831 = vpop.xlane.xlu0 %830
    %v832 = vsel %vm800, %v770, -inf
    %833 = vmax.xlane.f32.xlu0 %v832
    %v834 = vpop.xlane.xlu0 %833
    %v835 = vsel %vm810, %v771, -inf
    %836 = vmax.xlane.f32.xlu0 %v835
    %v837 = vpop.xlane.xlu0 %836
    %v838 = vsel %vm800, %v772, -inf
    %839 = vmax.xlane.f32.xlu0 %v838
    %v840 = vpop.xlane.xlu0 %839
    %v841 = vsel %vm800, %v773, -inf
    %842 = vmax.xlane.f32.xlu0 %v841
    %v843 = vpop.xlane.xlu0 %842
    %v844 = vsel %vm800, %v774, -inf
    %845 = vmax.xlane.f32.xlu0 %v844
    %v846 = vpop.xlane.xlu0 %845
    %v847 = vsel %vm810, %v775, -inf
    %848 = vmax.xlane.f32.xlu0 %v847
    %v849 = vpop.xlane.xlu0 %848
    %v850 = vsel %vm800, %v776, -inf
    %851 = vmax.xlane.f32.xlu0 %v850
    %v852 = vpop.xlane.xlu0 %851
    %v853 = vsel %vm800, %v777, -inf
    %854 = vmax.xlane.f32.xlu0 %v853
    %v855 = vpop.xlane.xlu0 %854
    %v856 = vsel %vm800, %v778, -inf
    %857 = vmax.xlane.f32.xlu0 %v856
    %v858 = vpop.xlane.xlu0 %857
    %v859 = vsel %vm810, %v779, -inf
    %860 = vmax.xlane.f32.xlu0 %v859
    %v861 = vpop.xlane.xlu0 %860
    %v862 = vsel %vm800, %v780, -inf
    %863 = vmax.xlane.f32.xlu0 %v862
    %v864 = vpop.xlane.xlu0 %863
    %v865 = vsel %vm800, %v781, -inf
    %866 = vmax.xlane.f32.xlu0 %v865
    %v867 = vpop.xlane.xlu0 %866
    %v868 = vsel %vm800, %v782, -inf
    %869 = vmax.xlane.f32.xlu0 %v868
    %v870 = vpop.xlane.xlu0 %869
    %v871 = vsel %vm810, %v783, -inf
    %872 = vmax.xlane.f32.xlu0 %v871
    %v873 = vpop.xlane.xlu0 %872
    %v874 = vsel %vm800, %v784, -inf
    %875 = vmax.xlane.f32.xlu0 %v874
    %v876 = vpop.xlane.xlu0 %875
    %v877 = vsel %vm800, %v785, -inf
    %878 = vmax.xlane.f32.xlu0 %v877
    %v879 = vpop.xlane.xlu0 %878
    %v880 = vsel %vm800, %v786, -inf
    %881 = vmax.xlane.f32.xlu0 %v880
    %v882 = vpop.xlane.xlu0 %881
    %v883 = vsel %vm810, %v787, -inf
    %884 = vmax.xlane.f32.xlu0 %v883
    %v885 = vpop.xlane.xlu0 %884
    %v886 = vsel %vm800, %v788, -inf
    %887 = vmax.xlane.f32.xlu0 %v886
    %v888 = vpop.xlane.xlu0 %887
    %v889 = vsel %vm800, %v789, -inf
    %890 = vmax.xlane.f32.xlu0 %v889
    %v891 = vpop.xlane.xlu0 %890
    %v892 = vsel %vm800, %v790, -inf
    %893 = vmax.xlane.f32.xlu0 %v892
    %v894 = vpop.xlane.xlu0 %893
    %v895 = vsel %vm810, %v791, -inf
    %896 = vmax.xlane.f32.xlu0 %v895
    %v897 = vpop.xlane.xlu0 %896
    %v898 = vsel %vm800, %v792, -inf
    %899 = vmax.xlane.f32.xlu0 %v898
    %v900 = vpop.xlane.xlu0 %899
    %v901 = vsel %vm800, %v793, -inf
    %902 = vmax.xlane.f32.xlu0 %v901
    %v903 = vpop.xlane.xlu0 %902
    %v904 = vsel %vm800, %v794, -inf
    %905 = vmax.xlane.f32.xlu0 %v904
    %v906 = vpop.xlane.xlu0 %905
    %v907 = vsel %vm810, %v795, -inf
    %908 = vmax.xlane.f32.xlu0 %v907
    %v909 = vpop.xlane.xlu0 %908
    %v910 = vsel %vm800, %v796, -inf
    %911 = vmax.xlane.f32.xlu0 %v910
    %v912 = vpop.xlane.xlu0 %911
    %v913 = vsel %vm800, %v797, -inf
    %914 = vmax.xlane.f32.xlu0 %v913
    %v915 = vpop.xlane.xlu0 %914
    %v916 = vsel %vm800, %v798, -inf
    %917 = vmax.xlane.f32.xlu0 %v916
    %v918 = vpop.xlane.xlu0 %917
    %v919 = vsel %vm810, %v799, -inf
    %920 = vmax.xlane.f32.xlu0 %v919
    %v921 = vpop.xlane.xlu0 %920
    %v922 = vsub.f32 %v760, %v803
    %v923 = vsub.f32 %v761, %v806
    %v924 = vsub.f32 %v762, %v809
    %v925 = vsub.f32 %v763, %v813
    %v926 = vsub.f32 %v764, %v816
    %v927 = vsub.f32 %v765, %v819
    %v928 = vsub.f32 %v766, %v822
    %v929 = vsub.f32 %v767, %v825
    %v930 = vsub.f32 %v768, %v828
    %v931 = vsub.f32 %v769, %v831
    %v932 = vsub.f32 %v770, %v834
    %v933 = vsub.f32 %v771, %v837
    %v934 = vsub.f32 %v772, %v840
    %v935 = vsub.f32 %v773, %v843
    %v936 = vsub.f32 %v774, %v846
    %v937 = vsub.f32 %v775, %v849
    %v938 = vsub.f32 %v776, %v852
    %v939 = vsub.f32 %v777, %v855
    %v940 = vsub.f32 %v778, %v858
    %v941 = vsub.f32 %v779, %v861
    %v942 = vsub.f32 %v780, %v864
    %v943 = vsub.f32 %v781, %v867
    %v944 = vsub.f32 %v782, %v870
    %v945 = vsub.f32 %v783, %v873
    %v946 = vsub.f32 %v784, %v876
    %v947 = vsub.f32 %v785, %v879
    %v948 = vsub.f32 %v786, %v882
    %v949 = vsub.f32 %v787, %v885
    %v950 = vsub.f32 %v788, %v888
    %v951 = vsub.f32 %v789, %v891
    %v952 = vsub.f32 %v790, %v894
    %v953 = vsub.f32 %v791, %v897
    %v954 = vsub.f32 %v792, %v900
    %v955 = vsub.f32 %v793, %v903
    %v956 = vsub.f32 %v794, %v906
    %v957 = vsub.f32 %v795, %v909
    %v958 = vsub.f32 %v796, %v912
    %v959 = vsub.f32 %v797, %v915
    %v960 = vsub.f32 %v798, %v918
    %v961 = vsub.f32 %v799, %v921
    %v962 = vmul.f32 %v922, 1.442695
    %v963 = vpow.pop %v962
    %v964 = vmul.f32 %v923, 1.442695
    %v965 = vpow.pop %v964
    %v966 = vmul.f32 %v924, 1.442695
    %v967 = vpow.pop %v966
    %v968 = vmul.f32 %v925, 1.442695
    %v969 = vpow.pop %v968
    %v970 = vmul.f32 %v926, 1.442695
    %v971 = vpow.pop %v970
    %v972 = vmul.f32 %v927, 1.442695
    %v973 = vpow.pop %v972
    %v974 = vmul.f32 %v928, 1.442695
    %v975 = vpow.pop %v974
    %v976 = vmul.f32 %v929, 1.442695
    %v977 = vpow.pop %v976
    %v978 = vmul.f32 %v930, 1.442695
    %v979 = vpow.pop %v978
    %v980 = vmul.f32 %v931, 1.442695
    %v981 = vpow.pop %v980
    %v982 = vmul.f32 %v932, 1.442695
    %v983 = vpow.pop %v982
    %v984 = vmul.f32 %v933, 1.442695
    %v985 = vpow.pop %v984
    %v986 = vmul.f32 %v934, 1.442695
    %v987 = vpow.pop %v986
    %v988 = vmul.f32 %v935, 1.442695
    %v989 = vpow.pop %v988
    %v990 = vmul.f32 %v936, 1.442695
    %v991 = vpow.pop %v990
    %v992 = vmul.f32 %v937, 1.442695
    %v993 = vpow.pop %v992
    %v994 = vmul.f32 %v938, 1.442695
    %v995 = vpow.pop %v994
    %v996 = vmul.f32 %v939, 1.442695
    %v997 = vpow.pop %v996
    %v998 = vmul.f32 %v940, 1.442695
    %v999 = vpow.pop %v998
    %v1000 = vmul.f32 %v941, 1.442695
    %v1001 = vpow.pop %v1000
    %v1002 = vmul.f32 %v942, 1.442695
    %v1003 = vpow.pop %v1002
    %v1004 = vmul.f32 %v943, 1.442695
    %v1005 = vpow.pop %v1004
    %v1006 = vmul.f32 %v944, 1.442695
    %v1007 = vpow.pop %v1006
    %v1008 = vmul.f32 %v945, 1.442695
    %v1009 = vpow.pop %v1008
    %v1010 = vmul.f32 %v946, 1.442695
    %v1011 = vpow.pop %v1010
    %v1012 = vmul.f32 %v947, 1.442695
    %v1013 = vpow.pop %v1012
    %v1014 = vmul.f32 %v948, 1.442695
    %v1015 = vpow.pop %v1014
    %v1016 = vmul.f32 %v949, 1.442695
    %v1017 = vpow.pop %v1016
    %v1018 = vmul.f32 %v950, 1.442695
    %v1019 = vpow.pop %v1018
    %v1020 = vmul.f32 %v951, 1.442695
    %v1021 = vpow.pop %v1020
    %v1022 = vmul.f32 %v952, 1.442695
    %v1023 = vpow.pop %v1022
    %v1024 = vmul.f32 %v953, 1.442695
    %v1025 = vpow.pop %v1024
    %v1026 = vmul.f32 %v954, 1.442695
    %v1027 = vpow.pop %v1026
    %v1028 = vmul.f32 %v955, 1.442695
    %v1029 = vpow.pop %v1028
    %v1030 = vmul.f32 %v956, 1.442695
    %v1031 = vpow.pop %v1030
    %v1032 = vmul.f32 %v957, 1.442695
    %v1033 = vpow.pop %v1032
    %v1034 = vmul.f32 %v958, 1.442695
    %v1035 = vpow.pop %v1034
    %v1036 = vmul.f32 %v959, 1.442695
    %v1037 = vpow.pop %v1036
    %v1038 = vmul.f32 %v960, 1.442695
    %v1039 = vpow.pop %v1038
    %v1040 = vmul.f32 %v961, 1.442695
    %v1041 = vpow.pop %v1040
    %v1042 = vsel %vm800, %v963, 0.0
    %1043 = vadd.xlane.f32.xlu0 %v1042
    %v1044 = vpop.xlane.xlu0 %1043
    %v1045 = vsel %vm800, %v965, 0.0
    %1046 = vadd.xlane.f32.xlu0 %v1045
    %v1047 = vpop.xlane.xlu0 %1046
    %v1048 = vsel %vm800, %v967, 0.0
    %1049 = vadd.xlane.f32.xlu0 %v1048
    %v1050 = vpop.xlane.xlu0 %1049
    %v1051 = vsel %vm810, %v969, 0.0
    %1052 = vadd.xlane.f32.xlu0 %v1051
    %v1053 = vpop.xlane.xlu0 %1052
    %v1054 = vsel %vm800, %v971, 0.0
    %1055 = vadd.xlane.f32.xlu0 %v1054
    %v1056 = vpop.xlane.xlu0 %1055
    %v1057 = vsel %vm800, %v973, 0.0
    %1058 = vadd.xlane.f32.xlu0 %v1057
    %v1059 = vpop.xlane.xlu0 %1058
    %v1060 = vsel %vm800, %v975, 0.0
    %1061 = vadd.xlane.f32.xlu0 %v1060
    %v1062 = vpop.xlane.xlu0 %1061
    %v1063 = vsel %vm810, %v977, 0.0
    %1064 = vadd.xlane.f32.xlu0 %v1063
    %v1065 = vpop.xlane.xlu0 %1064
    %v1066 = vsel %vm800, %v979, 0.0
    %1067 = vadd.xlane.f32.xlu0 %v1066
    %v1068 = vpop.xlane.xlu0 %1067
    %v1069 = vsel %vm800, %v981, 0.0
    %1070 = vadd.xlane.f32.xlu0 %v1069
    %v1071 = vpop.xlane.xlu0 %1070
    %v1072 = vsel %vm800, %v983, 0.0
    %1073 = vadd.xlane.f32.xlu0 %v1072
    %v1074 = vpop.xlane.xlu0 %1073
    %v1075 = vsel %vm810, %v985, 0.0
    %1076 = vadd.xlane.f32.xlu0 %v1075
    %v1077 = vpop.xlane.xlu0 %1076
    %v1078 = vsel %vm800, %v987, 0.0
    %1079 = vadd.xlane.f32.xlu0 %v1078
    %v1080 = vpop.xlane.xlu0 %1079
    %v1081 = vsel %vm800, %v989, 0.0
    %1082 = vadd.xlane.f32.xlu0 %v1081
    %v1083 = vpop.xlane.xlu0 %1082
    %v1084 = vsel %vm800, %v991, 0.0
    %1085 = vadd.xlane.f32.xlu0 %v1084
    %v1086 = vpop.xlane.xlu0 %1085
    %v1087 = vsel %vm810, %v993, 0.0
    %1088 = vadd.xlane.f32.xlu0 %v1087
    %v1089 = vpop.xlane.xlu0 %1088
    %v1090 = vsel %vm800, %v995, 0.0
    %1091 = vadd.xlane.f32.xlu0 %v1090
    %v1092 = vpop.xlane.xlu0 %1091
    %v1093 = vsel %vm800, %v997, 0.0
    %1094 = vadd.xlane.f32.xlu0 %v1093
    %v1095 = vpop.xlane.xlu0 %1094
    %v1096 = vsel %vm800, %v999, 0.0
    %1097 = vadd.xlane.f32.xlu0 %v1096
    %v1098 = vpop.xlane.xlu0 %1097
    %v1099 = vsel %vm810, %v1001, 0.0
    %1100 = vadd.xlane.f32.xlu0 %v1099
    %v1101 = vpop.xlane.xlu0 %1100
    %v1102 = vsel %vm800, %v1003, 0.0
    %1103 = vadd.xlane.f32.xlu0 %v1102
    %v1104 = vpop.xlane.xlu0 %1103
    %v1105 = vsel %vm800, %v1005, 0.0
    %1106 = vadd.xlane.f32.xlu0 %v1105
    %v1107 = vpop.xlane.xlu0 %1106
    %v1108 = vsel %vm800, %v1007, 0.0
    %1109 = vadd.xlane.f32.xlu0 %v1108
    %v1110 = vpop.xlane.xlu0 %1109
    %v1111 = vsel %vm810, %v1009, 0.0
    %1112 = vadd.xlane.f32.xlu0 %v1111
    %v1113 = vpop.xlane.xlu0 %1112
    %v1114 = vsel %vm800, %v1011, 0.0
    %1115 = vadd.xlane.f32.xlu0 %v1114
    %v1116 = vpop.xlane.xlu0 %1115
    %v1117 = vsel %vm800, %v1013, 0.0
    %1118 = vadd.xlane.f32.xlu0 %v1117
    %v1119 = vpop.xlane.xlu0 %1118
    %v1120 = vsel %vm800, %v1015, 0.0
    %1121 = vadd.xlane.f32.xlu0 %v1120
    %v1122 = vpop.xlane.xlu0 %1121
    %v1123 = vsel %vm810, %v1017, 0.0
    %1124 = vadd.xlane.f32.xlu0 %v1123
    %v1125 = vpop.xlane.xlu0 %1124
    %v1126 = vsel %vm800, %v1019, 0.0
    %1127 = vadd.xlane.f32.xlu0 %v1126
    %v1128 = vpop.xlane.xlu0 %1127
    %v1129 = vsel %vm800, %v1021, 0.0
    %1130 = vadd.xlane.f32.xlu0 %v1129
    %v1131 = vpop.xlane.xlu0 %1130
    %v1132 = vsel %vm800, %v1023, 0.0
    %1133 = vadd.xlane.f32.xlu0 %v1132
    %v1134 = vpop.xlane.xlu0 %1133
    %v1135 = vsel %vm810, %v1025, 0.0
    %1136 = vadd.xlane.f32.xlu0 %v1135
    %v1137 = vpop.xlane.xlu0 %1136
    %v1138 = vsel %vm800, %v1027, 0.0
    %1139 = vadd.xlane.f32.xlu0 %v1138
    %v1140 = vpop.xlane.xlu0 %1139
    %v1141 = vsel %vm800, %v1029, 0.0
    %1142 = vadd.xlane.f32.xlu0 %v1141
    %v1143 = vpop.xlane.xlu0 %1142
    %v1144 = vsel %vm800, %v1031, 0.0
    %1145 = vadd.xlane.f32.xlu0 %v1144
    %v1146 = vpop.xlane.xlu0 %1145
    %v1147 = vsel %vm810, %v1033, 0.0
    %1148 = vadd.xlane.f32.xlu0 %v1147
    %v1149 = vpop.xlane.xlu0 %1148
    %v1150 = vsel %vm800, %v1035, 0.0
    %1151 = vadd.xlane.f32.xlu0 %v1150
    %v1152 = vpop.xlane.xlu0 %1151
    %v1153 = vsel %vm800, %v1037, 0.0
    %1154 = vadd.xlane.f32.xlu0 %v1153
    %v1155 = vpop.xlane.xlu0 %1154
    %v1156 = vsel %vm800, %v1039, 0.0
    %1157 = vadd.xlane.f32.xlu0 %v1156
    %v1158 = vpop.xlane.xlu0 %1157
    %v1159 = vsel %vm810, %v1041, 0.0
    %1160 = vadd.xlane.f32.xlu0 %v1159
    %v1161 = vpop.xlane.xlu0 %1160
    %v1162 = vrcp.pop %v1044
    %v1163 = vrcp.pop %v1047
    %v1164 = vrcp.pop %v1050
    %v1165 = vrcp.pop %v1053
    %v1166 = vrcp.pop %v1056
    %v1167 = vrcp.pop %v1059
    %v1168 = vrcp.pop %v1062
    %v1169 = vrcp.pop %v1065
    %v1170 = vrcp.pop %v1068
    %v1171 = vrcp.pop %v1071
    %v1172 = vrcp.pop %v1074
    %v1173 = vrcp.pop %v1077
    %v1174 = vrcp.pop %v1080
    %v1175 = vrcp.pop %v1083
    %v1176 = vrcp.pop %v1086
    %v1177 = vrcp.pop %v1089
    %v1178 = vrcp.pop %v1092
    %v1179 = vrcp.pop %v1095
    %v1180 = vrcp.pop %v1098
    %v1181 = vrcp.pop %v1101
    %v1182 = vrcp.pop %v1104
    %v1183 = vrcp.pop %v1107
    %v1184 = vrcp.pop %v1110
    %v1185 = vrcp.pop %v1113
    %v1186 = vrcp.pop %v1116
    %v1187 = vrcp.pop %v1119
    %v1188 = vrcp.pop %v1122
    %v1189 = vrcp.pop %v1125
    %v1190 = vrcp.pop %v1128
    %v1191 = vrcp.pop %v1131
    %v1192 = vrcp.pop %v1134
    %v1193 = vrcp.pop %v1137
    %v1194 = vrcp.pop %v1140
    %v1195 = vrcp.pop %v1143
    %v1196 = vrcp.pop %v1146
    %v1197 = vrcp.pop %v1149
    %v1198 = vrcp.pop %v1152
    %v1199 = vrcp.pop %v1155
    %v1200 = vrcp.pop %v1158
    %v1201 = vrcp.pop %v1161
    %v1202 = vmul.f32 %v963, %v1162
    %v1203 = vmul.f32 %v965, %v1163
    %v1204 = vmul.f32 %v967, %v1164
    %v1205 = vmul.f32 %v969, %v1165
    %v1206 = vmul.f32 %v971, %v1166
    %v1207 = vmul.f32 %v973, %v1167
    %v1208 = vmul.f32 %v975, %v1168
    %v1209 = vmul.f32 %v977, %v1169
    %v1210 = vmul.f32 %v979, %v1170
    %v1211 = vmul.f32 %v981, %v1171
    %v1212 = vmul.f32 %v983, %v1172
    %v1213 = vmul.f32 %v985, %v1173
    %v1214 = vmul.f32 %v987, %v1174
    %v1215 = vmul.f32 %v989, %v1175
    %v1216 = vmul.f32 %v991, %v1176
    %v1217 = vmul.f32 %v993, %v1177
    %v1218 = vmul.f32 %v995, %v1178
    %v1219 = vmul.f32 %v997, %v1179
    %v1220 = vmul.f32 %v999, %v1180
    %v1221 = vmul.f32 %v1001, %v1181
    %v1222 = vmul.f32 %v1003, %v1182
    %v1223 = vmul.f32 %v1005, %v1183
    %v1224 = vmul.f32 %v1007, %v1184
    %v1225 = vmul.f32 %v1009, %v1185
    %v1226 = vmul.f32 %v1011, %v1186
    %v1227 = vmul.f32 %v1013, %v1187
    %v1228 = vmul.f32 %v1015, %v1188
    %v1229 = vmul.f32 %v1017, %v1189
    %v1230 = vmul.f32 %v1019, %v1190
    %v1231 = vmul.f32 %v1021, %v1191
    %v1232 = vmul.f32 %v1023, %v1192
    %v1233 = vmul.f32 %v1025, %v1193
    %v1234 = vmul.f32 %v1027, %v1194
    %v1235 = vmul.f32 %v1029, %v1195
    %v1236 = vmul.f32 %v1031, %v1196
    %v1237 = vmul.f32 %v1033, %v1197
    %v1238 = vmul.f32 %v1035, %v1198
    %v1239 = vmul.f32 %v1037, %v1199
    %v1240 = vmul.f32 %v1039, %v1200
    %v1241 = vmul.f32 %v1041, %v1201
    %v1242 = vpack.c.bf16 %v1202, %v1202
    %v1243 = vpack.c.bf16 %v1203, %v1203
    %v1244 = vpack.c.bf16 %v1204, %v1204
    %v1245 = vpack.c.bf16 %v1205, %v1205
    %v1246 = vpack.c.bf16 %v1206, %v1206
    %v1247 = vpack.c.bf16 %v1207, %v1207
    %v1248 = vpack.c.bf16 %v1208, %v1208
    %v1249 = vpack.c.bf16 %v1209, %v1209
    %v1250 = vpack.c.bf16 %v1210, %v1210
    %v1251 = vpack.c.bf16 %v1211, %v1211
    %v1252 = vpack.c.bf16 %v1212, %v1212
    %v1253 = vpack.c.bf16 %v1213, %v1213
    %v1254 = vpack.c.bf16 %v1214, %v1214
    %v1255 = vpack.c.bf16 %v1215, %v1215
    %v1256 = vpack.c.bf16 %v1216, %v1216
    %v1257 = vpack.c.bf16 %v1217, %v1217
    %v1258 = vpack.c.bf16 %v1218, %v1218
    %v1259 = vpack.c.bf16 %v1219, %v1219
    %v1260 = vpack.c.bf16 %v1220, %v1220
    %v1261 = vpack.c.bf16 %v1221, %v1221
    %v1262 = vpack.c.bf16 %v1222, %v1222
    %v1263 = vpack.c.bf16 %v1223, %v1223
    %v1264 = vpack.c.bf16 %v1224, %v1224
    %v1265 = vpack.c.bf16 %v1225, %v1225
    %v1266 = vpack.c.bf16 %v1226, %v1226
    %v1267 = vpack.c.bf16 %v1227, %v1227
    %v1268 = vpack.c.bf16 %v1228, %v1228
    %v1269 = vpack.c.bf16 %v1229, %v1229
    %v1270 = vpack.c.bf16 %v1230, %v1230
    %v1271 = vpack.c.bf16 %v1231, %v1231
    %v1272 = vpack.c.bf16 %v1232, %v1232
    %v1273 = vpack.c.bf16 %v1233, %v1233
    %v1274 = vpack.c.bf16 %v1234, %v1234
    %v1275 = vpack.c.bf16 %v1235, %v1235
    %v1276 = vpack.c.bf16 %v1236, %v1236
    %v1277 = vpack.c.bf16 %v1237, %v1237
    %v1278 = vpack.c.bf16 %v1238, %v1238
    %v1279 = vpack.c.bf16 %v1239, %v1239
    %v1280 = vpack.c.bf16 %v1240, %v1240
    %v1281 = vpack.c.bf16 %v1241, %v1241
    %v1286 = vunpack.c.l.b16 %v1242
    %v1287 = vunpack.c.l.b16 %v1243
    %v1288 = vunpack.c.l.b16 %v1244
    %v1289 = vunpack.c.l.b16 %v1245
    %v1290 = vpack.c.b16 %v1287, %v1286
    %v1291 = vpack.c.b16 %v1289, %v1288
    %v1296 = vunpack.c.l.b16 %v290
    %v1297 = vunpack.c.l.b16 %v291
    %v1298 = vunpack.c.l.b16 %v292
    %v1299 = vunpack.c.l.b16 %v293
    %v1300 = vpack.c.b16 %v1297, %v1296
    %v1301 = vpack.c.b16 %v1299, %v1298
    %v1304 = vsel %vm800, %v1290, 0
    %v1307 = vsel %vm800, %v1291, 0
    %vm1309 = vcmask 1046528
    %v1311 = vsel %vm1309, %v1301, 0
    %1313 = vmatpush.bf16.msra.mxu0 0
    %1314 = vmatpush.bf16.msra.mxu0 0
    %1315 = vmatpush.bf16.msra.mxu0 0
    %1316 = vmatpush.bf16.msra.mxu0 0
    %1317 = vmatpush.bf16.msra.mxu0 0
    %1318 = vmatpush.bf16.msra.mxu0 0
    %1319 = vmatpush.bf16.msra.mxu0 %v1311
    %1320 = vmatpush.bf16.msra.mxu0 %v1300
    %1321 = vmatmul.bf16.gmra.mxu0 %v1304
    %v1322 = vpop.f32.mrf.mxu0
    %v1323 = vadd.f32 0.0, %v1322
    %v1324 = vpop.f32.mrf.mxu0
    %v1325 = vadd.f32 0.0, %v1324
    %1326 = vmatmul.bf16.gmra.mxu0 %v1307
    %v1327 = vpop.f32.mrf.mxu0
    %v1328 = vadd.f32 0.0, %v1327
    %v1329 = vpop.f32.mrf.mxu0
    %v1330 = vadd.f32 0.0, %v1329
    %1331 = vdwg.mxu0
    %v1336 = vunpack.c.l.b16 %v1246
    %v1337 = vunpack.c.l.b16 %v1247
    %v1338 = vunpack.c.l.b16 %v1248
    %v1339 = vunpack.c.l.b16 %v1249
    %v1340 = vpack.c.b16 %v1337, %v1336
    %v1341 = vpack.c.b16 %v1339, %v1338
    %v1346 = vunpack.c.l.b16 %v294
    %v1347 = vunpack.c.l.b16 %v295
    %v1348 = vunpack.c.l.b16 %v296
    %v1349 = vunpack.c.l.b16 %v297
    %v1350 = vpack.c.b16 %v1347, %v1346
    %v1351 = vpack.c.b16 %v1349, %v1348
    %v1354 = vsel %vm800, %v1340, 0
    %v1357 = vsel %vm800, %v1341, 0
    %v1360 = vsel %vm1309, %v1351, 0
    %1362 = vmatpush.bf16.msra.mxu0 0
    %1363 = vmatpush.bf16.msra.mxu0 0
    %1364 = vmatpush.bf16.msra.mxu0 0
    %1365 = vmatpush.bf16.msra.mxu0 0
    %1366 = vmatpush.bf16.msra.mxu0 0
    %1367 = vmatpush.bf16.msra.mxu0 0
    %1368 = vmatpush.bf16.msra.mxu0 %v1360
    %1369 = vmatpush.bf16.msra.mxu0 %v1350
    %1370 = vmatmul.bf16.gmra.mxu0 %v1354
    %v1371 = vpop.f32.mrf.mxu0
    %v1372 = vadd.f32 0.0, %v1371
    %v1373 = vpop.f32.mrf.mxu0
    %v1374 = vadd.f32 0.0, %v1373
    %1375 = vmatmul.bf16.gmra.mxu0 %v1357
    %v1376 = vpop.f32.mrf.mxu0
    %v1377 = vadd.f32 0.0, %v1376
    %v1378 = vpop.f32.mrf.mxu0
    %v1379 = vadd.f32 0.0, %v1378
    %1380 = vdwg.mxu0
    %v1385 = vunpack.c.l.b16 %v1250
    %v1386 = vunpack.c.l.b16 %v1251
    %v1387 = vunpack.c.l.b16 %v1252
    %v1388 = vunpack.c.l.b16 %v1253
    %v1389 = vpack.c.b16 %v1386, %v1385
    %v1390 = vpack.c.b16 %v1388, %v1387
    %v1395 = vunpack.c.l.b16 %v298
    %v1396 = vunpack.c.l.b16 %v299
    %v1397 = vunpack.c.l.b16 %v300
    %v1398 = vunpack.c.l.b16 %v301
    %v1399 = vpack.c.b16 %v1396, %v1395
    %v1400 = vpack.c.b16 %v1398, %v1397
    %v1403 = vsel %vm800, %v1389, 0
    %v1406 = vsel %vm800, %v1390, 0
    %v1409 = vsel %vm1309, %v1400, 0
    %1411 = vmatpush.bf16.msra.mxu0 0
    %1412 = vmatpush.bf16.msra.mxu0 0
    %1413 = vmatpush.bf16.msra.mxu0 0
    %1414 = vmatpush.bf16.msra.mxu0 0
    %1415 = vmatpush.bf16.msra.mxu0 0
    %1416 = vmatpush.bf16.msra.mxu0 0
    %1417 = vmatpush.bf16.msra.mxu0 %v1409
    %1418 = vmatpush.bf16.msra.mxu0 %v1399
    %1419 = vmatmul.bf16.gmra.mxu0 %v1403
    %v1420 = vpop.f32.mrf.mxu0
    %v1421 = vadd.f32 0.0, %v1420
    %v1422 = vpop.f32.mrf.mxu0
    %v1423 = vadd.f32 0.0, %v1422
    %1424 = vmatmul.bf16.gmra.mxu0 %v1406
    %v1425 = vpop.f32.mrf.mxu0
    %v1426 = vadd.f32 0.0, %v1425
    %v1427 = vpop.f32.mrf.mxu0
    %v1428 = vadd.f32 0.0, %v1427
    %1429 = vdwg.mxu0
    %v1434 = vunpack.c.l.b16 %v1254
    %v1435 = vunpack.c.l.b16 %v1255
    %v1436 = vunpack.c.l.b16 %v1256
    %v1437 = vunpack.c.l.b16 %v1257
    %v1438 = vpack.c.b16 %v1435, %v1434
    %v1439 = vpack.c.b16 %v1437, %v1436
    %v1444 = vunpack.c.l.b16 %v302
    %v1445 = vunpack.c.l.b16 %v303
    %v1446 = vunpack.c.l.b16 %v304
    %v1447 = vunpack.c.l.b16 %v305
    %v1448 = vpack.c.b16 %v1445, %v1444
    %v1449 = vpack.c.b16 %v1447, %v1446
    %v1452 = vsel %vm800, %v1438, 0
    %v1455 = vsel %vm800, %v1439, 0
    %v1458 = vsel %vm1309, %v1449, 0
    %1460 = vmatpush.bf16.msra.mxu0 0
    %1461 = vmatpush.bf16.msra.mxu0 0
    %1462 = vmatpush.bf16.msra.mxu0 0
    %1463 = vmatpush.bf16.msra.mxu0 0
    %1464 = vmatpush.bf16.msra.mxu0 0
    %1465 = vmatpush.bf16.msra.mxu0 0
    %1466 = vmatpush.bf16.msra.mxu0 %v1458
    %1467 = vmatpush.bf16.msra.mxu0 %v1448
    %1468 = vmatmul.bf16.gmra.mxu0 %v1452
    %v1469 = vpop.f32.mrf.mxu0
    %v1470 = vadd.f32 0.0, %v1469
    %v1471 = vpop.f32.mrf.mxu0
    %v1472 = vadd.f32 0.0, %v1471
    %1473 = vmatmul.bf16.gmra.mxu0 %v1455
    %v1474 = vpop.f32.mrf.mxu0
    %v1475 = vadd.f32 0.0, %v1474
    %v1476 = vpop.f32.mrf.mxu0
    %v1477 = vadd.f32 0.0, %v1476
    %1478 = vdwg.mxu0
    %v1483 = vunpack.c.l.b16 %v1258
    %v1484 = vunpack.c.l.b16 %v1259
    %v1485 = vunpack.c.l.b16 %v1260
    %v1486 = vunpack.c.l.b16 %v1261
    %v1487 = vpack.c.b16 %v1484, %v1483
    %v1488 = vpack.c.b16 %v1486, %v1485
    %v1493 = vunpack.c.l.b16 %v306
    %v1494 = vunpack.c.l.b16 %v307
    %v1495 = vunpack.c.l.b16 %v308
    %v1496 = vunpack.c.l.b16 %v309
    %v1497 = vpack.c.b16 %v1494, %v1493
    %v1498 = vpack.c.b16 %v1496, %v1495
    %v1501 = vsel %vm800, %v1487, 0
    %v1504 = vsel %vm800, %v1488, 0
    %v1507 = vsel %vm1309, %v1498, 0
    %1509 = vmatpush.bf16.msra.mxu0 0
    %1510 = vmatpush.bf16.msra.mxu0 0
    %1511 = vmatpush.bf16.msra.mxu0 0
    %1512 = vmatpush.bf16.msra.mxu0 0
    %1513 = vmatpush.bf16.msra.mxu0 0
    %1514 = vmatpush.bf16.msra.mxu0 0
    %1515 = vmatpush.bf16.msra.mxu0 %v1507
    %1516 = vmatpush.bf16.msra.mxu0 %v1497
    %1517 = vmatmul.bf16.gmra.mxu0 %v1501
    %v1518 = vpop.f32.mrf.mxu0
    %v1519 = vadd.f32 0.0, %v1518
    %v1520 = vpop.f32.mrf.mxu0
    %v1521 = vadd.f32 0.0, %v1520
    %1522 = vmatmul.bf16.gmra.mxu0 %v1504
    %v1523 = vpop.f32.mrf.mxu0
    %v1524 = vadd.f32 0.0, %v1523
    %v1525 = vpop.f32.mrf.mxu0
    %v1526 = vadd.f32 0.0, %v1525
    %1527 = vdwg.mxu0
    %v1532 = vunpack.c.l.b16 %v1262
    %v1533 = vunpack.c.l.b16 %v1263
    %v1534 = vunpack.c.l.b16 %v1264
    %v1535 = vunpack.c.l.b16 %v1265
    %v1536 = vpack.c.b16 %v1533, %v1532
    %v1537 = vpack.c.b16 %v1535, %v1534
    %v1542 = vunpack.c.l.b16 %v310
    %v1543 = vunpack.c.l.b16 %v311
    %v1544 = vunpack.c.l.b16 %v312
    %v1545 = vunpack.c.l.b16 %v313
    %v1546 = vpack.c.b16 %v1543, %v1542
    %v1547 = vpack.c.b16 %v1545, %v1544
    %v1550 = vsel %vm800, %v1536, 0
    %v1553 = vsel %vm800, %v1537, 0
    %v1556 = vsel %vm1309, %v1547, 0
    %1558 = vmatpush.bf16.msra.mxu0 0
    %1559 = vmatpush.bf16.msra.mxu0 0
    %1560 = vmatpush.bf16.msra.mxu0 0
    %1561 = vmatpush.bf16.msra.mxu0 0
    %1562 = vmatpush.bf16.msra.mxu0 0
    %1563 = vmatpush.bf16.msra.mxu0 0
    %1564 = vmatpush.bf16.msra.mxu0 %v1556
    %1565 = vmatpush.bf16.msra.mxu0 %v1546
    %1566 = vmatmul.bf16.gmra.mxu0 %v1550
    %v1567 = vpop.f32.mrf.mxu0
    %v1568 = vadd.f32 0.0, %v1567
    %v1569 = vpop.f32.mrf.mxu0
    %v1570 = vadd.f32 0.0, %v1569
    %1571 = vmatmul.bf16.gmra.mxu0 %v1553
    %v1572 = vpop.f32.mrf.mxu0
    %v1573 = vadd.f32 0.0, %v1572
    %v1574 = vpop.f32.mrf.mxu0
    %v1575 = vadd.f32 0.0, %v1574
    %1576 = vdwg.mxu0
    %v1581 = vunpack.c.l.b16 %v1266
    %v1582 = vunpack.c.l.b16 %v1267
    %v1583 = vunpack.c.l.b16 %v1268
    %v1584 = vunpack.c.l.b16 %v1269
    %v1585 = vpack.c.b16 %v1582, %v1581
    %v1586 = vpack.c.b16 %v1584, %v1583
    %v1591 = vunpack.c.l.b16 %v314
    %v1592 = vunpack.c.l.b16 %v315
    %v1593 = vunpack.c.l.b16 %v316
    %v1594 = vunpack.c.l.b16 %v317
    %v1595 = vpack.c.b16 %v1592, %v1591
    %v1596 = vpack.c.b16 %v1594, %v1593
    %v1599 = vsel %vm800, %v1585, 0
    %v1602 = vsel %vm800, %v1586, 0
    %v1605 = vsel %vm1309, %v1596, 0
    %1607 = vmatpush.bf16.msra.mxu0 0
    %1608 = vmatpush.bf16.msra.mxu0 0
    %1609 = vmatpush.bf16.msra.mxu0 0
    %1610 = vmatpush.bf16.msra.mxu0 0
    %1611 = vmatpush.bf16.msra.mxu0 0
    %1612 = vmatpush.bf16.msra.mxu0 0
    %1613 = vmatpush.bf16.msra.mxu0 %v1605
    %1614 = vmatpush.bf16.msra.mxu0 %v1595
    %1615 = vmatmul.bf16.gmra.mxu0 %v1599
    %v1616 = vpop.f32.mrf.mxu0
    %v1617 = vadd.f32 0.0, %v1616
    %v1618 = vpop.f32.mrf.mxu0
    %v1619 = vadd.f32 0.0, %v1618
    %1620 = vmatmul.bf16.gmra.mxu0 %v1602
    %v1621 = vpop.f32.mrf.mxu0
    %v1622 = vadd.f32 0.0, %v1621
    %v1623 = vpop.f32.mrf.mxu0
    %v1624 = vadd.f32 0.0, %v1623
    %1625 = vdwg.mxu0
    %v1630 = vunpack.c.l.b16 %v1270
    %v1631 = vunpack.c.l.b16 %v1271
    %v1632 = vunpack.c.l.b16 %v1272
    %v1633 = vunpack.c.l.b16 %v1273
    %v1634 = vpack.c.b16 %v1631, %v1630
    %v1635 = vpack.c.b16 %v1633, %v1632
    %v1640 = vunpack.c.l.b16 %v318
    %v1641 = vunpack.c.l.b16 %v319
    %v1642 = vunpack.c.l.b16 %v320
    %v1643 = vunpack.c.l.b16 %v321
    %v1644 = vpack.c.b16 %v1641, %v1640
    %v1645 = vpack.c.b16 %v1643, %v1642
    %v1648 = vsel %vm800, %v1634, 0
    %v1651 = vsel %vm800, %v1635, 0
    %v1654 = vsel %vm1309, %v1645, 0
    %1656 = vmatpush.bf16.msra.mxu0 0
    %1657 = vmatpush.bf16.msra.mxu0 0
    %1658 = vmatpush.bf16.msra.mxu0 0
    %1659 = vmatpush.bf16.msra.mxu0 0
    %1660 = vmatpush.bf16.msra.mxu0 0
    %1661 = vmatpush.bf16.msra.mxu0 0
    %1662 = vmatpush.bf16.msra.mxu0 %v1654
    %1663 = vmatpush.bf16.msra.mxu0 %v1644
    %1664 = vmatmul.bf16.gmra.mxu0 %v1648
    %v1665 = vpop.f32.mrf.mxu0
    %v1666 = vadd.f32 0.0, %v1665
    %v1667 = vpop.f32.mrf.mxu0
    %v1668 = vadd.f32 0.0, %v1667
    %1669 = vmatmul.bf16.gmra.mxu0 %v1651
    %v1670 = vpop.f32.mrf.mxu0
    %v1671 = vadd.f32 0.0, %v1670
    %v1672 = vpop.f32.mrf.mxu0
    %v1673 = vadd.f32 0.0, %v1672
    %1674 = vdwg.mxu0
    %v1679 = vunpack.c.l.b16 %v1274
    %v1680 = vunpack.c.l.b16 %v1275
    %v1681 = vunpack.c.l.b16 %v1276
    %v1682 = vunpack.c.l.b16 %v1277
    %v1683 = vpack.c.b16 %v1680, %v1679
    %v1684 = vpack.c.b16 %v1682, %v1681
    %v1689 = vunpack.c.l.b16 %v322
    %v1690 = vunpack.c.l.b16 %v323
    %v1691 = vunpack.c.l.b16 %v324
    %v1692 = vunpack.c.l.b16 %v325
    %v1693 = vpack.c.b16 %v1690, %v1689
    %v1694 = vpack.c.b16 %v1692, %v1691
    %v1697 = vsel %vm800, %v1683, 0
    %v1700 = vsel %vm800, %v1684, 0
    %v1703 = vsel %vm1309, %v1694, 0
    %1705 = vmatpush.bf16.msra.mxu0 0
    %1706 = vmatpush.bf16.msra.mxu0 0
    %1707 = vmatpush.bf16.msra.mxu0 0
    %1708 = vmatpush.bf16.msra.mxu0 0
    %1709 = vmatpush.bf16.msra.mxu0 0
    %1710 = vmatpush.bf16.msra.mxu0 0
    %1711 = vmatpush.bf16.msra.mxu0 %v1703
    %1712 = vmatpush.bf16.msra.mxu0 %v1693
    %1713 = vmatmul.bf16.gmra.mxu0 %v1697
    %v1714 = vpop.f32.mrf.mxu0
    %v1715 = vadd.f32 0.0, %v1714
    %v1716 = vpop.f32.mrf.mxu0
    %v1717 = vadd.f32 0.0, %v1716
    %1718 = vmatmul.bf16.gmra.mxu0 %v1700
    %v1719 = vpop.f32.mrf.mxu0
    %v1720 = vadd.f32 0.0, %v1719
    %v1721 = vpop.f32.mrf.mxu0
    %v1722 = vadd.f32 0.0, %v1721
    %1723 = vdwg.mxu0
    %v1728 = vunpack.c.l.b16 %v1278
    %v1729 = vunpack.c.l.b16 %v1279
    %v1730 = vunpack.c.l.b16 %v1280
    %v1731 = vunpack.c.l.b16 %v1281
    %v1732 = vpack.c.b16 %v1729, %v1728
    %v1733 = vpack.c.b16 %v1731, %v1730
    %v1738 = vunpack.c.l.b16 %v326
    %v1739 = vunpack.c.l.b16 %v327
    %v1740 = vunpack.c.l.b16 %v328
    %v1741 = vunpack.c.l.b16 %v329
    %v1742 = vpack.c.b16 %v1739, %v1738
    %v1743 = vpack.c.b16 %v1741, %v1740
    %v1746 = vsel %vm800, %v1732, 0
    %v1749 = vsel %vm800, %v1733, 0
    %v1752 = vsel %vm1309, %v1743, 0
    %1754 = vmatpush.bf16.msra.mxu0 0
    %1755 = vmatpush.bf16.msra.mxu0 0
    %1756 = vmatpush.bf16.msra.mxu0 0
    %1757 = vmatpush.bf16.msra.mxu0 0
    %1758 = vmatpush.bf16.msra.mxu0 0
    %1759 = vmatpush.bf16.msra.mxu0 0
    %1760 = vmatpush.bf16.msra.mxu0 %v1752
    %1761 = vmatpush.bf16.msra.mxu0 %v1742
    %1762 = vmatmul.bf16.gmra.mxu0 %v1746
    %v1763 = vpop.f32.mrf.mxu0
    %v1764 = vadd.f32 0.0, %v1763
    %v1765 = vpop.f32.mrf.mxu0
    %v1766 = vadd.f32 0.0, %v1765
    %1767 = vmatmul.bf16.gmra.mxu0 %v1749
    %v1768 = vpop.f32.mrf.mxu0
    %v1769 = vadd.f32 0.0, %v1768
    %v1770 = vpop.f32.mrf.mxu0
    %v1771 = vadd.f32 0.0, %v1770
    %1772 = vdwg.mxu0
    %v1773 = vpack.c.bf16 %v1323, %v1323
    %v1774 = vpack.c.bf16 %v1325, %v1325
    %v1775 = vpack.c.bf16 %v1328, %v1328
    %v1776 = vpack.c.bf16 %v1330, %v1330
    %v1777 = vpack.c.bf16 %v1372, %v1372
    %v1778 = vpack.c.bf16 %v1374, %v1374
    %v1779 = vpack.c.bf16 %v1377, %v1377
    %v1780 = vpack.c.bf16 %v1379, %v1379
    %v1781 = vpack.c.bf16 %v1421, %v1421
    %v1782 = vpack.c.bf16 %v1423, %v1423
    %v1783 = vpack.c.bf16 %v1426, %v1426
    %v1784 = vpack.c.bf16 %v1428, %v1428
    %v1785 = vpack.c.bf16 %v1470, %v1470
    %v1786 = vpack.c.bf16 %v1472, %v1472
    %v1787 = vpack.c.bf16 %v1475, %v1475
    %v1788 = vpack.c.bf16 %v1477, %v1477
    %v1789 = vpack.c.bf16 %v1519, %v1519
    %v1790 = vpack.c.bf16 %v1521, %v1521
    %v1791 = vpack.c.bf16 %v1524, %v1524
    %v1792 = vpack.c.bf16 %v1526, %v1526
    %v1793 = vpack.c.bf16 %v1568, %v1568
    %v1794 = vpack.c.bf16 %v1570, %v1570
    %v1795 = vpack.c.bf16 %v1573, %v1573
    %v1796 = vpack.c.bf16 %v1575, %v1575
    %v1797 = vpack.c.bf16 %v1617, %v1617
    %v1798 = vpack.c.bf16 %v1619, %v1619
    %v1799 = vpack.c.bf16 %v1622, %v1622
    %v1800 = vpack.c.bf16 %v1624, %v1624
    %v1801 = vpack.c.bf16 %v1666, %v1666
    %v1802 = vpack.c.bf16 %v1668, %v1668
    %v1803 = vpack.c.bf16 %v1671, %v1671
    %v1804 = vpack.c.bf16 %v1673, %v1673
    %v1805 = vpack.c.bf16 %v1715, %v1715
    %v1806 = vpack.c.bf16 %v1717, %v1717
    %v1807 = vpack.c.bf16 %v1720, %v1720
    %v1808 = vpack.c.bf16 %v1722, %v1722
    %v1809 = vpack.c.bf16 %v1764, %v1764
    %v1810 = vpack.c.bf16 %v1766, %v1766
    %v1811 = vpack.c.bf16 %v1769, %v1769
    %v1812 = vpack.c.bf16 %v1771, %v1771
    %v1823 = vunpack.c.l.b16 %v1773
    %v1824 = vunpack.c.l.b16 %v1777
    %v1825 = vunpack.c.l.b16 %v1781
    %v1826 = vunpack.c.l.b16 %v1785
    %v1827 = vunpack.c.l.b16 %v1789
    %v1828 = vunpack.c.l.b16 %v1793
    %v1829 = vunpack.c.l.b16 %v1797
    %v1830 = vunpack.c.l.b16 %v1801
    %v1831 = vunpack.c.l.b16 %v1805
    %v1832 = vunpack.c.l.b16 %v1809
    %v1833 = vrot.slane %v1824, 7
    %vm1834 = vcmask 1041409
    %v1835 = vsel %vm1834, %v1833, %v1823
    %v1836 = vrot.slane %v1825, 6
    %vm1837 = vcmask 1042434
    %v1838 = vsel %vm1837, %v1836, %v1835
    %v1839 = vrot.slane %v1826, 5
    %vm1840 = vcmask 1043459
    %v1841 = vsel %vm1840, %v1839, %v1838
    %v1842 = vrot.slane %v1827, 4
    %vm1843 = vcmask 1044484
    %v1844 = vsel %vm1843, %v1842, %v1841
    %v1845 = vrot.slane %v1828, 3
    %vm1846 = vcmask 1045509
    %v1847 = vsel %vm1846, %v1845, %v1844
    %v1848 = vrot.slane %v1829, 2
    %vm1849 = vcmask 1046534
    %v1850 = vsel %vm1849, %v1848, %v1847
    %v1851 = vrot.slane %v1830, 1
    %vm1852 = vcmask 1047559
    %v1853 = vsel %vm1852, %v1851, %v1850
    %v1854 = vrot.slane %v1832, 7
    %v1855 = vsel %vm1834, %v1854, %v1831
    %v1856 = vpack.c.b16 %v1853, %v1853
    %v1857 = vpack.c.b16 %v1855, %v1855
    %1860 = vst [vmem:[#allocation2] sm:$0xf] %v1856
    %1861 = vst [vmem:[#allocation2 + $0x78] sm:$0x1] %v1857
    %v1862 = vrot.slane %v1823, 1
    %v1863 = vsel %vm1834, %v1824, %v1862
    %v1864 = vrot.slane %v1825, 7
    %v1865 = vsel %vm1837, %v1864, %v1863
    %v1866 = vrot.slane %v1826, 6
    %v1867 = vsel %vm1840, %v1866, %v1865
    %v1868 = vrot.slane %v1827, 5
    %v1869 = vsel %vm1843, %v1868, %v1867
    %v1870 = vrot.slane %v1828, 4
    %v1871 = vsel %vm1846, %v1870, %v1869
    %v1872 = vrot.slane %v1829, 3
    %v1873 = vsel %vm1849, %v1872, %v1871
    %v1874 = vrot.slane %v1830, 2
    %v1875 = vsel %vm1852, %v1874, %v1873
    %v1876 = vrot.slane %v1831, 1
    %v1877 = vsel %vm1834, %v1832, %v1876
    %v1878 = vpack.c.b16 %v1875, %v1875
    %v1879 = vpack.c.b16 %v1877, %v1877
    %1882 = vst [vmem:[#allocation2 + $0x4] sm:$0xf] %v1878
    %1883 = vst [vmem:[#allocation2 + $0x7c] sm:$0x1] %v1879
    %v1884 = vrot.slane %v1823, 2
    %v1885 = vrot.slane %v1824, 1
    %v1886 = vsel %vm1834, %v1885, %v1884
    %v1887 = vsel %vm1837, %v1825, %v1886
    %v1888 = vrot.slane %v1826, 7
    %v1889 = vsel %vm1840, %v1888, %v1887
    %v1890 = vrot.slane %v1827, 6
    %v1891 = vsel %vm1843, %v1890, %v1889
    %v1892 = vrot.slane %v1828, 5
    %v1893 = vsel %vm1846, %v1892, %v1891
    %v1894 = vrot.slane %v1829, 4
    %v1895 = vsel %vm1849, %v1894, %v1893
    %v1896 = vrot.slane %v1830, 3
    %v1897 = vsel %vm1852, %v1896, %v1895
    %v1898 = vrot.slane %v1831, 2
    %v1899 = vrot.slane %v1832, 1
    %v1900 = vsel %vm1834, %v1899, %v1898
    %v1901 = vpack.c.b16 %v1897, %v1897
    %v1902 = vpack.c.b16 %v1900, %v1900
    %1905 = vst [vmem:[#allocation2 + $0x8] sm:$0xf] %v1901
    %1906 = vst [vmem:[#allocation2 + $0x80] sm:$0x1] %v1902
    %v1907 = vrot.slane %v1823, 3
    %v1908 = vrot.slane %v1824, 2
    %v1909 = vsel %vm1834, %v1908, %v1907
    %v1910 = vrot.slane %v1825, 1
    %v1911 = vsel %vm1837, %v1910, %v1909
    %v1912 = vsel %vm1840, %v1826, %v1911
    %v1913 = vrot.slane %v1827, 7
    %v1914 = vsel %vm1843, %v1913, %v1912
    %v1915 = vrot.slane %v1828, 6
    %v1916 = vsel %vm1846, %v1915, %v1914
    %v1917 = vrot.slane %v1829, 5
    %v1918 = vsel %vm1849, %v1917, %v1916
    %v1919 = vrot.slane %v1830, 4
    %v1920 = vsel %vm1852, %v1919, %v1918
    %v1921 = vrot.slane %v1831, 3
    %v1922 = vrot.slane %v1832, 2
    %v1923 = vsel %vm1834, %v1922, %v1921
    %v1924 = vpack.c.b16 %v1920, %v1920
    %v1925 = vpack.c.b16 %v1923, %v1923
    %1928 = vst [vmem:[#allocation2 + $0xc] sm:$0xf] %v1924
    %1929 = vst [vmem:[#allocation2 + $0x84] sm:$0x1] %v1925
    %v1930 = vrot.slane %v1823, 4
    %v1931 = vrot.slane %v1824, 3
    %v1932 = vsel %vm1834, %v1931, %v1930
    %v1933 = vrot.slane %v1825, 2
    %v1934 = vsel %vm1837, %v1933, %v1932
    %v1935 = vrot.slane %v1826, 1
    %v1936 = vsel %vm1840, %v1935, %v1934
    %v1937 = vsel %vm1843, %v1827, %v1936
    %v1938 = vrot.slane %v1828, 7
    %v1939 = vsel %vm1846, %v1938, %v1937
    %v1940 = vrot.slane %v1829, 6
    %v1941 = vsel %vm1849, %v1940, %v1939
    %v1942 = vrot.slane %v1830, 5
    %v1943 = vsel %vm1852, %v1942, %v1941
    %v1944 = vrot.slane %v1831, 4
    %v1945 = vrot.slane %v1832, 3
    %v1946 = vsel %vm1834, %v1945, %v1944
    %v1947 = vpack.c.b16 %v1943, %v1943
    %v1948 = vpack.c.b16 %v1946, %v1946
    %1951 = vst [vmem:[#allocation2 + $0x10] sm:$0xf] %v1947
    %1952 = vst [vmem:[#allocation2 + $0x88] sm:$0x1] %v1948
    %v1953 = vrot.slane %v1823, 5
    %v1954 = vrot.slane %v1824, 4
    %v1955 = vsel %vm1834, %v1954, %v1953
    %v1956 = vrot.slane %v1825, 3
    %v1957 = vsel %vm1837, %v1956, %v1955
    %v1958 = vrot.slane %v1826, 2
    %v1959 = vsel %vm1840, %v1958, %v1957
    %v1960 = vrot.slane %v1827, 1
    %v1961 = vsel %vm1843, %v1960, %v1959
    %v1962 = vsel %vm1846, %v1828, %v1961
    %v1963 = vrot.slane %v1829, 7
    %v1964 = vsel %vm1849, %v1963, %v1962
    %v1965 = vrot.slane %v1830, 6
    %v1966 = vsel %vm1852, %v1965, %v1964
    %v1967 = vrot.slane %v1831, 5
    %v1968 = vrot.slane %v1832, 4
    %v1969 = vsel %vm1834, %v1968, %v1967
    %v1970 = vpack.c.b16 %v1966, %v1966
    %v1971 = vpack.c.b16 %v1969, %v1969
    %1974 = vst [vmem:[#allocation2 + $0x14] sm:$0xf] %v1970
    %1975 = vst [vmem:[#allocation2 + $0x8c] sm:$0x1] %v1971
    %v1976 = vrot.slane %v1823, 6
    %v1977 = vrot.slane %v1824, 5
    %v1978 = vsel %vm1834, %v1977, %v1976
    %v1979 = vrot.slane %v1825, 4
    %v1980 = vsel %vm1837, %v1979, %v1978
    %v1981 = vrot.slane %v1826, 3
    %v1982 = vsel %vm1840, %v1981, %v1980
    %v1983 = vrot.slane %v1827, 2
    %v1984 = vsel %vm1843, %v1983, %v1982
    %v1985 = vrot.slane %v1828, 1
    %v1986 = vsel %vm1846, %v1985, %v1984
    %v1987 = vsel %vm1849, %v1829, %v1986
    %v1988 = vrot.slane %v1830, 7
    %v1989 = vsel %vm1852, %v1988, %v1987
    %v1990 = vrot.slane %v1831, 6
    %v1991 = vrot.slane %v1832, 5
    %v1992 = vsel %vm1834, %v1991, %v1990
    %v1993 = vpack.c.b16 %v1989, %v1989
    %v1994 = vpack.c.b16 %v1992, %v1992
    %1997 = vst [vmem:[#allocation2 + $0x18] sm:$0xf] %v1993
    %1998 = vst [vmem:[#allocation2 + $0x90] sm:$0x1] %v1994
    %v1999 = vrot.slane %v1823, 7
    %v2000 = vrot.slane %v1824, 6
    %v2001 = vsel %vm1834, %v2000, %v1999
    %v2002 = vrot.slane %v1825, 5
    %v2003 = vsel %vm1837, %v2002, %v2001
    %v2004 = vrot.slane %v1826, 4
    %v2005 = vsel %vm1840, %v2004, %v2003
    %v2006 = vrot.slane %v1827, 3
    %v2007 = vsel %vm1843, %v2006, %v2005
    %v2008 = vrot.slane %v1828, 2
    %v2009 = vsel %vm1846, %v2008, %v2007
    %v2010 = vrot.slane %v1829, 1
    %v2011 = vsel %vm1849, %v2010, %v2009
    %v2012 = vsel %vm1852, %v1830, %v2011
    %v2013 = vrot.slane %v1831, 7
    %v2014 = vrot.slane %v1832, 6
    %v2015 = vsel %vm1834, %v2014, %v2013
    %v2016 = vpack.c.b16 %v2012, %v2012
    %v2017 = vpack.c.b16 %v2015, %v2015
    %2020 = vst [vmem:[#allocation2 + $0x1c] sm:$0xf] %v2016
    %2021 = vst [vmem:[#allocation2 + $0x94] sm:$0x1] %v2017
    %v2032 = vunpack.c.l.b16 %v1774
    %v2033 = vunpack.c.l.b16 %v1778
    %v2034 = vunpack.c.l.b16 %v1782
    %v2035 = vunpack.c.l.b16 %v1786
    %v2036 = vunpack.c.l.b16 %v1790
    %v2037 = vunpack.c.l.b16 %v1794
    %v2038 = vunpack.c.l.b16 %v1798
    %v2039 = vunpack.c.l.b16 %v1802
    %v2040 = vunpack.c.l.b16 %v1806
    %v2041 = vunpack.c.l.b16 %v1810
    %v2042 = vrot.slane %v2033, 7
    %v2043 = vsel %vm1834, %v2042, %v2032
    %v2044 = vrot.slane %v2034, 6
    %v2045 = vsel %vm1837, %v2044, %v2043
    %v2046 = vrot.slane %v2035, 5
    %v2047 = vsel %vm1840, %v2046, %v2045
    %v2048 = vrot.slane %v2036, 4
    %v2049 = vsel %vm1843, %v2048, %v2047
    %v2050 = vrot.slane %v2037, 3
    %v2051 = vsel %vm1846, %v2050, %v2049
    %v2052 = vrot.slane %v2038, 2
    %v2053 = vsel %vm1849, %v2052, %v2051
    %v2054 = vrot.slane %v2039, 1
    %v2055 = vsel %vm1852, %v2054, %v2053
    %v2056 = vrot.slane %v2041, 7
    %v2057 = vsel %vm1834, %v2056, %v2040
    %v2058 = vpack.c.b16 %v2055, %v2055
    %v2059 = vpack.c.b16 %v2057, %v2057
    %2062 = vst [vmem:[#allocation2 + $0x20] sm:$0xf] %v2058
    %2063 = vst [vmem:[#allocation2 + $0x98] sm:$0x1] %v2059
    %v2064 = vrot.slane %v2032, 1
    %v2065 = vsel %vm1834, %v2033, %v2064
    %v2066 = vrot.slane %v2034, 7
    %v2067 = vsel %vm1837, %v2066, %v2065
    %v2068 = vrot.slane %v2035, 6
    %v2069 = vsel %vm1840, %v2068, %v2067
    %v2070 = vrot.slane %v2036, 5
    %v2071 = vsel %vm1843, %v2070, %v2069
    %v2072 = vrot.slane %v2037, 4
    %v2073 = vsel %vm1846, %v2072, %v2071
    %v2074 = vrot.slane %v2038, 3
    %v2075 = vsel %vm1849, %v2074, %v2073
    %v2076 = vrot.slane %v2039, 2
    %v2077 = vsel %vm1852, %v2076, %v2075
    %v2078 = vrot.slane %v2040, 1
    %v2079 = vsel %vm1834, %v2041, %v2078
    %v2080 = vpack.c.b16 %v2077, %v2077
    %v2081 = vpack.c.b16 %v2079, %v2079
    %2084 = vst [vmem:[#allocation2 + $0x24] sm:$0xf] %v2080
    %2085 = vst [vmem:[#allocation2 + $0x9c] sm:$0x1] %v2081
    %v2086 = vrot.slane %v2032, 2
    %v2087 = vrot.slane %v2033, 1
    %v2088 = vsel %vm1834, %v2087, %v2086
    %v2089 = vsel %vm1837, %v2034, %v2088
    %v2090 = vrot.slane %v2035, 7
    %v2091 = vsel %vm1840, %v2090, %v2089
    %v2092 = vrot.slane %v2036, 6
    %v2093 = vsel %vm1843, %v2092, %v2091
    %v2094 = vrot.slane %v2037, 5
    %v2095 = vsel %vm1846, %v2094, %v2093
    %v2096 = vrot.slane %v2038, 4
    %v2097 = vsel %vm1849, %v2096, %v2095
    %v2098 = vrot.slane %v2039, 3
    %v2099 = vsel %vm1852, %v2098, %v2097
    %v2100 = vrot.slane %v2040, 2
    %v2101 = vrot.slane %v2041, 1
    %v2102 = vsel %vm1834, %v2101, %v2100
    %v2103 = vpack.c.b16 %v2099, %v2099
    %v2104 = vpack.c.b16 %v2102, %v2102
    %2107 = vst [vmem:[#allocation2 + $0x28] sm:$0xf] %v2103
    %2108 = vst [vmem:[#allocation2 + $0xa0] sm:$0x1] %v2104
    %v2109 = vrot.slane %v2032, 3
    %v2110 = vrot.slane %v2033, 2
    %v2111 = vsel %vm1834, %v2110, %v2109
    %v2112 = vrot.slane %v2034, 1
    %v2113 = vsel %vm1837, %v2112, %v2111
    %v2114 = vsel %vm1840, %v2035, %v2113
    %v2115 = vrot.slane %v2036, 7
    %v2116 = vsel %vm1843, %v2115, %v2114
    %v2117 = vrot.slane %v2037, 6
    %v2118 = vsel %vm1846, %v2117, %v2116
    %v2119 = vrot.slane %v2038, 5
    %v2120 = vsel %vm1849, %v2119, %v2118
    %v2121 = vrot.slane %v2039, 4
    %v2122 = vsel %vm1852, %v2121, %v2120
    %v2123 = vrot.slane %v2040, 3
    %v2124 = vrot.slane %v2041, 2
    %v2125 = vsel %vm1834, %v2124, %v2123
    %v2126 = vpack.c.b16 %v2122, %v2122
    %v2127 = vpack.c.b16 %v2125, %v2125
    %2130 = vst [vmem:[#allocation2 + $0x2c] sm:$0xf] %v2126
    %2131 = vst [vmem:[#allocation2 + $0xa4] sm:$0x1] %v2127
    %v2132 = vrot.slane %v2032, 4
    %v2133 = vrot.slane %v2033, 3
    %v2134 = vsel %vm1834, %v2133, %v2132
    %v2135 = vrot.slane %v2034, 2
    %v2136 = vsel %vm1837, %v2135, %v2134
    %v2137 = vrot.slane %v2035, 1
    %v2138 = vsel %vm1840, %v2137, %v2136
    %v2139 = vsel %vm1843, %v2036, %v2138
    %v2140 = vrot.slane %v2037, 7
    %v2141 = vsel %vm1846, %v2140, %v2139
    %v2142 = vrot.slane %v2038, 6
    %v2143 = vsel %vm1849, %v2142, %v2141
    %v2144 = vrot.slane %v2039, 5
    %v2145 = vsel %vm1852, %v2144, %v2143
    %v2146 = vrot.slane %v2040, 4
    %v2147 = vrot.slane %v2041, 3
    %v2148 = vsel %vm1834, %v2147, %v2146
    %v2149 = vpack.c.b16 %v2145, %v2145
    %v2150 = vpack.c.b16 %v2148, %v2148
    %2153 = vst [vmem:[#allocation2 + $0x30] sm:$0xf] %v2149
    %2154 = vst [vmem:[#allocation2 + $0xa8] sm:$0x1] %v2150
    %v2155 = vrot.slane %v2032, 5
    %v2156 = vrot.slane %v2033, 4
    %v2157 = vsel %vm1834, %v2156, %v2155
    %v2158 = vrot.slane %v2034, 3
    %v2159 = vsel %vm1837, %v2158, %v2157
    %v2160 = vrot.slane %v2035, 2
    %v2161 = vsel %vm1840, %v2160, %v2159
    %v2162 = vrot.slane %v2036, 1
    %v2163 = vsel %vm1843, %v2162, %v2161
    %v2164 = vsel %vm1846, %v2037, %v2163
    %v2165 = vrot.slane %v2038, 7
    %v2166 = vsel %vm1849, %v2165, %v2164
    %v2167 = vrot.slane %v2039, 6
    %v2168 = vsel %vm1852, %v2167, %v2166
    %v2169 = vrot.slane %v2040, 5
    %v2170 = vrot.slane %v2041, 4
    %v2171 = vsel %vm1834, %v2170, %v2169
    %v2172 = vpack.c.b16 %v2168, %v2168
    %v2173 = vpack.c.b16 %v2171, %v2171
    %2176 = vst [vmem:[#allocation2 + $0x34] sm:$0xf] %v2172
    %2177 = vst [vmem:[#allocation2 + $0xac] sm:$0x1] %v2173
    %v2178 = vrot.slane %v2032, 6
    %v2179 = vrot.slane %v2033, 5
    %v2180 = vsel %vm1834, %v2179, %v2178
    %v2181 = vrot.slane %v2034, 4
    %v2182 = vsel %vm1837, %v2181, %v2180
    %v2183 = vrot.slane %v2035, 3
    %v2184 = vsel %vm1840, %v2183, %v2182
    %v2185 = vrot.slane %v2036, 2
    %v2186 = vsel %vm1843, %v2185, %v2184
    %v2187 = vrot.slane %v2037, 1
    %v2188 = vsel %vm1846, %v2187, %v2186
    %v2189 = vsel %vm1849, %v2038, %v2188
    %v2190 = vrot.slane %v2039, 7
    %v2191 = vsel %vm1852, %v2190, %v2189
    %v2192 = vrot.slane %v2040, 6
    %v2193 = vrot.slane %v2041, 5
    %v2194 = vsel %vm1834, %v2193, %v2192
    %v2195 = vpack.c.b16 %v2191, %v2191
    %v2196 = vpack.c.b16 %v2194, %v2194
    %2199 = vst [vmem:[#allocation2 + $0x38] sm:$0xf] %v2195
    %2200 = vst [vmem:[#allocation2 + $0xb0] sm:$0x1] %v2196
    %v2201 = vrot.slane %v2032, 7
    %v2202 = vrot.slane %v2033, 6
    %v2203 = vsel %vm1834, %v2202, %v2201
    %v2204 = vrot.slane %v2034, 5
    %v2205 = vsel %vm1837, %v2204, %v2203
    %v2206 = vrot.slane %v2035, 4
    %v2207 = vsel %vm1840, %v2206, %v2205
    %v2208 = vrot.slane %v2036, 3
    %v2209 = vsel %vm1843, %v2208, %v2207
    %v2210 = vrot.slane %v2037, 2
    %v2211 = vsel %vm1846, %v2210, %v2209
    %v2212 = vrot.slane %v2038, 1
    %v2213 = vsel %vm1849, %v2212, %v2211
    %v2214 = vsel %vm1852, %v2039, %v2213
    %v2215 = vrot.slane %v2040, 7
    %v2216 = vrot.slane %v2041, 6
    %v2217 = vsel %vm1834, %v2216, %v2215
    %v2218 = vpack.c.b16 %v2214, %v2214
    %v2219 = vpack.c.b16 %v2217, %v2217
    %2222 = vst [vmem:[#allocation2 + $0x3c] sm:$0xf] %v2218
    %2223 = vst [vmem:[#allocation2 + $0xb4] sm:$0x1] %v2219
    %v2234 = vunpack.c.l.b16 %v1775
    %v2235 = vunpack.c.l.b16 %v1779
    %v2236 = vunpack.c.l.b16 %v1783
    %v2237 = vunpack.c.l.b16 %v1787
    %v2238 = vunpack.c.l.b16 %v1791
    %v2239 = vunpack.c.l.b16 %v1795
    %v2240 = vunpack.c.l.b16 %v1799
    %v2241 = vunpack.c.l.b16 %v1803
    %v2242 = vunpack.c.l.b16 %v1807
    %v2243 = vunpack.c.l.b16 %v1811
    %v2244 = vrot.slane %v2235, 7
    %v2245 = vsel %vm1834, %v2244, %v2234
    %v2246 = vrot.slane %v2236, 6
    %v2247 = vsel %vm1837, %v2246, %v2245
    %v2248 = vrot.slane %v2237, 5
    %v2249 = vsel %vm1840, %v2248, %v2247
    %v2250 = vrot.slane %v2238, 4
    %v2251 = vsel %vm1843, %v2250, %v2249
    %v2252 = vrot.slane %v2239, 3
    %v2253 = vsel %vm1846, %v2252, %v2251
    %v2254 = vrot.slane %v2240, 2
    %v2255 = vsel %vm1849, %v2254, %v2253
    %v2256 = vrot.slane %v2241, 1
    %v2257 = vsel %vm1852, %v2256, %v2255
    %v2258 = vrot.slane %v2243, 7
    %v2259 = vsel %vm1834, %v2258, %v2242
    %v2260 = vpack.c.b16 %v2257, %v2257
    %v2261 = vpack.c.b16 %v2259, %v2259
    %2264 = vst [vmem:[#allocation2 + $0x40] sm:$0xf] %v2260
    %2265 = vst [vmem:[#allocation2 + $0xb8] sm:$0x1] %v2261
    %v2266 = vrot.slane %v2234, 1
    %v2267 = vsel %vm1834, %v2235, %v2266
    %v2268 = vrot.slane %v2236, 7
    %v2269 = vsel %vm1837, %v2268, %v2267
    %v2270 = vrot.slane %v2237, 6
    %v2271 = vsel %vm1840, %v2270, %v2269
    %v2272 = vrot.slane %v2238, 5
    %v2273 = vsel %vm1843, %v2272, %v2271
    %v2274 = vrot.slane %v2239, 4
    %v2275 = vsel %vm1846, %v2274, %v2273
    %v2276 = vrot.slane %v2240, 3
    %v2277 = vsel %vm1849, %v2276, %v2275
    %v2278 = vrot.slane %v2241, 2
    %v2279 = vsel %vm1852, %v2278, %v2277
    %v2280 = vrot.slane %v2242, 1
    %v2281 = vsel %vm1834, %v2243, %v2280
    %v2282 = vpack.c.b16 %v2279, %v2279
    %v2283 = vpack.c.b16 %v2281, %v2281
    %2286 = vst [vmem:[#allocation2 + $0x44] sm:$0xf] %v2282
    %2287 = vst [vmem:[#allocation2 + $0xbc] sm:$0x1] %v2283
    %v2288 = vrot.slane %v2234, 2
    %v2289 = vrot.slane %v2235, 1
    %v2290 = vsel %vm1834, %v2289, %v2288
    %v2291 = vsel %vm1837, %v2236, %v2290
    %v2292 = vrot.slane %v2237, 7
    %v2293 = vsel %vm1840, %v2292, %v2291
    %v2294 = vrot.slane %v2238, 6
    %v2295 = vsel %vm1843, %v2294, %v2293
    %v2296 = vrot.slane %v2239, 5
    %v2297 = vsel %vm1846, %v2296, %v2295
    %v2298 = vrot.slane %v2240, 4
    %v2299 = vsel %vm1849, %v2298, %v2297
    %v2300 = vrot.slane %v2241, 3
    %v2301 = vsel %vm1852, %v2300, %v2299
    %v2302 = vrot.slane %v2242, 2
    %v2303 = vrot.slane %v2243, 1
    %v2304 = vsel %vm1834, %v2303, %v2302
    %v2305 = vpack.c.b16 %v2301, %v2301
    %v2306 = vpack.c.b16 %v2304, %v2304
    %2309 = vst [vmem:[#allocation2 + $0x48] sm:$0xf] %v2305
    %2310 = vst [vmem:[#allocation2 + $0xc0] sm:$0x1] %v2306
    %v2311 = vrot.slane %v2234, 3
    %v2312 = vrot.slane %v2235, 2
    %v2313 = vsel %vm1834, %v2312, %v2311
    %v2314 = vrot.slane %v2236, 1
    %v2315 = vsel %vm1837, %v2314, %v2313
    %v2316 = vsel %vm1840, %v2237, %v2315
    %v2317 = vrot.slane %v2238, 7
    %v2318 = vsel %vm1843, %v2317, %v2316
    %v2319 = vrot.slane %v2239, 6
    %v2320 = vsel %vm1846, %v2319, %v2318
    %v2321 = vrot.slane %v2240, 5
    %v2322 = vsel %vm1849, %v2321, %v2320
    %v2323 = vrot.slane %v2241, 4
    %v2324 = vsel %vm1852, %v2323, %v2322
    %v2325 = vrot.slane %v2242, 3
    %v2326 = vrot.slane %v2243, 2
    %v2327 = vsel %vm1834, %v2326, %v2325
    %v2328 = vpack.c.b16 %v2324, %v2324
    %v2329 = vpack.c.b16 %v2327, %v2327
    %2332 = vst [vmem:[#allocation2 + $0x4c] sm:$0xf] %v2328
    %2333 = vst [vmem:[#allocation2 + $0xc4] sm:$0x1] %v2329
    %v2334 = vrot.slane %v2234, 4
    %v2335 = vrot.slane %v2235, 3
    %v2336 = vsel %vm1834, %v2335, %v2334
    %v2337 = vrot.slane %v2236, 2
    %v2338 = vsel %vm1837, %v2337, %v2336
    %v2339 = vrot.slane %v2237, 1
    %v2340 = vsel %vm1840, %v2339, %v2338
    %v2341 = vsel %vm1843, %v2238, %v2340
    %v2342 = vrot.slane %v2239, 7
    %v2343 = vsel %vm1846, %v2342, %v2341
    %v2344 = vrot.slane %v2240, 6
    %v2345 = vsel %vm1849, %v2344, %v2343
    %v2346 = vrot.slane %v2241, 5
    %v2347 = vsel %vm1852, %v2346, %v2345
    %v2348 = vrot.slane %v2242, 4
    %v2349 = vrot.slane %v2243, 3
    %v2350 = vsel %vm1834, %v2349, %v2348
    %v2351 = vpack.c.b16 %v2347, %v2347
    %v2352 = vpack.c.b16 %v2350, %v2350
    %2355 = vst [vmem:[#allocation2 + $0x50] sm:$0xf] %v2351
    %2356 = vst [vmem:[#allocation2 + $0xc8] sm:$0x1] %v2352
    %v2357 = vrot.slane %v2234, 5
    %v2358 = vrot.slane %v2235, 4
    %v2359 = vsel %vm1834, %v2358, %v2357
    %v2360 = vrot.slane %v2236, 3
    %v2361 = vsel %vm1837, %v2360, %v2359
    %v2362 = vrot.slane %v2237, 2
    %v2363 = vsel %vm1840, %v2362, %v2361
    %v2364 = vrot.slane %v2238, 1
    %v2365 = vsel %vm1843, %v2364, %v2363
    %v2366 = vsel %vm1846, %v2239, %v2365
    %v2367 = vrot.slane %v2240, 7
    %v2368 = vsel %vm1849, %v2367, %v2366
    %v2369 = vrot.slane %v2241, 6
    %v2370 = vsel %vm1852, %v2369, %v2368
    %v2371 = vrot.slane %v2242, 5
    %v2372 = vrot.slane %v2243, 4
    %v2373 = vsel %vm1834, %v2372, %v2371
    %v2374 = vpack.c.b16 %v2370, %v2370
    %v2375 = vpack.c.b16 %v2373, %v2373
    %2378 = vst [vmem:[#allocation2 + $0x54] sm:$0xf] %v2374
    %2379 = vst [vmem:[#allocation2 + $0xcc] sm:$0x1] %v2375
    %v2380 = vrot.slane %v2234, 6
    %v2381 = vrot.slane %v2235, 5
    %v2382 = vsel %vm1834, %v2381, %v2380
    %v2383 = vrot.slane %v2236, 4
    %v2384 = vsel %vm1837, %v2383, %v2382
    %v2385 = vrot.slane %v2237, 3
    %v2386 = vsel %vm1840, %v2385, %v2384
    %v2387 = vrot.slane %v2238, 2
    %v2388 = vsel %vm1843, %v2387, %v2386
    %v2389 = vrot.slane %v2239, 1
    %v2390 = vsel %vm1846, %v2389, %v2388
    %v2391 = vsel %vm1849, %v2240, %v2390
    %v2392 = vrot.slane %v2241, 7
    %v2393 = vsel %vm1852, %v2392, %v2391
    %v2394 = vrot.slane %v2242, 6
    %v2395 = vrot.slane %v2243, 5
    %v2396 = vsel %vm1834, %v2395, %v2394
    %v2397 = vpack.c.b16 %v2393, %v2393
    %v2398 = vpack.c.b16 %v2396, %v2396
    %2401 = vst [vmem:[#allocation2 + $0x58] sm:$0xf] %v2397
    %2402 = vst [vmem:[#allocation2 + $0xd0] sm:$0x1] %v2398
    %v2403 = vrot.slane %v2234, 7
    %v2404 = vrot.slane %v2235, 6
    %v2405 = vsel %vm1834, %v2404, %v2403
    %v2406 = vrot.slane %v2236, 5
    %v2407 = vsel %vm1837, %v2406, %v2405
    %v2408 = vrot.slane %v2237, 4
    %v2409 = vsel %vm1840, %v2408, %v2407
    %v2410 = vrot.slane %v2238, 3
    %v2411 = vsel %vm1843, %v2410, %v2409
    %v2412 = vrot.slane %v2239, 2
    %v2413 = vsel %vm1846, %v2412, %v2411
    %v2414 = vrot.slane %v2240, 1
    %v2415 = vsel %vm1849, %v2414, %v2413
    %v2416 = vsel %vm1852, %v2241, %v2415
    %v2417 = vrot.slane %v2242, 7
    %v2418 = vrot.slane %v2243, 6
    %v2419 = vsel %vm1834, %v2418, %v2417
    %v2420 = vpack.c.b16 %v2416, %v2416
    %v2421 = vpack.c.b16 %v2419, %v2419
    %2424 = vst [vmem:[#allocation2 + $0x5c] sm:$0xf] %v2420
    %2425 = vst [vmem:[#allocation2 + $0xd4] sm:$0x1] %v2421
    %v2436 = vunpack.c.l.b16 %v1776
    %v2437 = vunpack.c.l.b16 %v1780
    %v2438 = vunpack.c.l.b16 %v1784
    %v2439 = vunpack.c.l.b16 %v1788
    %v2440 = vunpack.c.l.b16 %v1792
    %v2441 = vunpack.c.l.b16 %v1796
    %v2442 = vunpack.c.l.b16 %v1800
    %v2443 = vunpack.c.l.b16 %v1804
    %v2444 = vunpack.c.l.b16 %v1808
    %v2445 = vunpack.c.l.b16 %v1812
    %v2446 = vrot.slane %v2437, 7
    %v2447 = vsel %vm1834, %v2446, %v2436
    %v2448 = vrot.slane %v2438, 6
    %v2449 = vsel %vm1837, %v2448, %v2447
    %v2450 = vrot.slane %v2439, 5
    %v2451 = vsel %vm1840, %v2450, %v2449
    %v2452 = vrot.slane %v2440, 4
    %v2453 = vsel %vm1843, %v2452, %v2451
    %v2454 = vrot.slane %v2441, 3
    %v2455 = vsel %vm1846, %v2454, %v2453
    %v2456 = vrot.slane %v2442, 2
    %v2457 = vsel %vm1849, %v2456, %v2455
    %v2458 = vrot.slane %v2443, 1
    %v2459 = vsel %vm1852, %v2458, %v2457
    %v2460 = vrot.slane %v2445, 7
    %v2461 = vsel %vm1834, %v2460, %v2444
    %v2462 = vpack.c.b16 %v2459, %v2459
    %v2463 = vpack.c.b16 %v2461, %v2461
    %2466 = vst [vmem:[#allocation2 + $0x60] sm:$0xf] %v2462
    %2467 = vst [vmem:[#allocation2 + $0xd8] sm:$0x1] %v2463
    %v2468 = vrot.slane %v2436, 1
    %v2469 = vsel %vm1834, %v2437, %v2468
    %v2470 = vrot.slane %v2438, 7
    %v2471 = vsel %vm1837, %v2470, %v2469
    %v2472 = vrot.slane %v2439, 6
    %v2473 = vsel %vm1840, %v2472, %v2471
    %v2474 = vrot.slane %v2440, 5
    %v2475 = vsel %vm1843, %v2474, %v2473
    %v2476 = vrot.slane %v2441, 4
    %v2477 = vsel %vm1846, %v2476, %v2475
    %v2478 = vrot.slane %v2442, 3
    %v2479 = vsel %vm1849, %v2478, %v2477
    %v2480 = vrot.slane %v2443, 2
    %v2481 = vsel %vm1852, %v2480, %v2479
    %v2482 = vrot.slane %v2444, 1
    %v2483 = vsel %vm1834, %v2445, %v2482
    %v2484 = vpack.c.b16 %v2481, %v2481
    %v2485 = vpack.c.b16 %v2483, %v2483
    %2488 = vst [vmem:[#allocation2 + $0x64] sm:$0xf] %v2484
    %2489 = vst [vmem:[#allocation2 + $0xdc] sm:$0x1] %v2485
    %v2490 = vrot.slane %v2436, 2
    %v2491 = vrot.slane %v2437, 1
    %v2492 = vsel %vm1834, %v2491, %v2490
    %v2493 = vsel %vm1837, %v2438, %v2492
    %v2494 = vrot.slane %v2439, 7
    %v2495 = vsel %vm1840, %v2494, %v2493
    %v2496 = vrot.slane %v2440, 6
    %v2497 = vsel %vm1843, %v2496, %v2495
    %v2498 = vrot.slane %v2441, 5
    %v2499 = vsel %vm1846, %v2498, %v2497
    %v2500 = vrot.slane %v2442, 4
    %v2501 = vsel %vm1849, %v2500, %v2499
    %v2502 = vrot.slane %v2443, 3
    %v2503 = vsel %vm1852, %v2502, %v2501
    %v2504 = vrot.slane %v2444, 2
    %v2505 = vrot.slane %v2445, 1
    %v2506 = vsel %vm1834, %v2505, %v2504
    %v2507 = vpack.c.b16 %v2503, %v2503
    %v2508 = vpack.c.b16 %v2506, %v2506
    %2511 = vst [vmem:[#allocation2 + $0x68] sm:$0xf] %v2507
    %2512 = vst [vmem:[#allocation2 + $0xe0] sm:$0x1] %v2508
    %v2513 = vrot.slane %v2436, 3
    %v2514 = vrot.slane %v2437, 2
    %v2515 = vsel %vm1834, %v2514, %v2513
    %v2516 = vrot.slane %v2438, 1
    %v2517 = vsel %vm1837, %v2516, %v2515
    %v2518 = vsel %vm1840, %v2439, %v2517
    %v2519 = vrot.slane %v2440, 7
    %v2520 = vsel %vm1843, %v2519, %v2518
    %v2521 = vrot.slane %v2441, 6
    %v2522 = vsel %vm1846, %v2521, %v2520
    %v2523 = vrot.slane %v2442, 5
    %v2524 = vsel %vm1849, %v2523, %v2522
    %v2525 = vrot.slane %v2443, 4
    %v2526 = vsel %vm1852, %v2525, %v2524
    %v2527 = vrot.slane %v2444, 3
    %v2528 = vrot.slane %v2445, 2
    %v2529 = vsel %vm1834, %v2528, %v2527
    %v2530 = vpack.c.b16 %v2526, %v2526
    %v2531 = vpack.c.b16 %v2529, %v2529
    %2534 = vst [vmem:[#allocation2 + $0x6c] sm:$0xf] %v2530
    %2535 = vst [vmem:[#allocation2 + $0xe4] sm:$0x1] %v2531
    %v2536 = vrot.slane %v2436, 4
    %v2537 = vrot.slane %v2437, 3
    %v2538 = vsel %vm1834, %v2537, %v2536
    %v2539 = vrot.slane %v2438, 2
    %v2540 = vsel %vm1837, %v2539, %v2538
    %v2541 = vrot.slane %v2439, 1
    %v2542 = vsel %vm1840, %v2541, %v2540
    %v2543 = vsel %vm1843, %v2440, %v2542
    %v2544 = vrot.slane %v2441, 7
    %v2545 = vsel %vm1846, %v2544, %v2543
    %v2546 = vrot.slane %v2442, 6
    %v2547 = vsel %vm1849, %v2546, %v2545
    %v2548 = vrot.slane %v2443, 5
    %v2549 = vsel %vm1852, %v2548, %v2547
    %v2550 = vrot.slane %v2444, 4
    %v2551 = vrot.slane %v2445, 3
    %v2552 = vsel %vm1834, %v2551, %v2550
    %v2553 = vpack.c.b16 %v2549, %v2549
    %v2554 = vpack.c.b16 %v2552, %v2552
    %2557 = vst [vmem:[#allocation2 + $0x70] sm:$0xf] %v2553
    %2558 = vst [vmem:[#allocation2 + $0xe8] sm:$0x1] %v2554
    %v2559 = vrot.slane %v2436, 5
    %v2560 = vrot.slane %v2437, 4
    %v2561 = vsel %vm1834, %v2560, %v2559
    %v2562 = vrot.slane %v2438, 3
    %v2563 = vsel %vm1837, %v2562, %v2561
    %v2564 = vrot.slane %v2439, 2
    %v2565 = vsel %vm1840, %v2564, %v2563
    %v2566 = vrot.slane %v2440, 1
    %v2567 = vsel %vm1843, %v2566, %v2565
    %v2568 = vsel %vm1846, %v2441, %v2567
    %v2569 = vrot.slane %v2442, 7
    %v2570 = vsel %vm1849, %v2569, %v2568
    %v2571 = vrot.slane %v2443, 6
    %v2572 = vsel %vm1852, %v2571, %v2570
    %v2573 = vrot.slane %v2444, 5
    %v2574 = vrot.slane %v2445, 4
    %v2575 = vsel %vm1834, %v2574, %v2573
    %v2576 = vpack.c.b16 %v2572, %v2572
    %v2577 = vpack.c.b16 %v2575, %v2575
    %2580 = vst [vmem:[#allocation2 + $0x74] sm:$0xf] %v2576
    %2581 = vst [vmem:[#allocation2 + $0xec] sm:$0x1] %v2577
    %v2582 = vld [vmem:[#allocation2] sm:$0xff]
    %v2583 = vld [vmem:[#allocation2 + $0x8] sm:$0xff]
    %v2584 = vld [vmem:[#allocation2 + $0x10] sm:$0xff]
    %v2585 = vld [vmem:[#allocation2 + $0x18] sm:$0xff]
    %v2586 = vld [vmem:[#allocation2 + $0x20] sm:$0xff]
    %v2587 = vld [vmem:[#allocation2 + $0x28] sm:$0xff]
    %v2588 = vld [vmem:[#allocation2 + $0x30] sm:$0xff]
    %v2589 = vld [vmem:[#allocation2 + $0x38] sm:$0xff]
    %v2590 = vld [vmem:[#allocation2 + $0x40] sm:$0xff]
    %v2591 = vld [vmem:[#allocation2 + $0x48] sm:$0xff]
    %v2592 = vld [vmem:[#allocation2 + $0x50] sm:$0xff]
    %v2593 = vld [vmem:[#allocation2 + $0x58] sm:$0xff]
    %v2594 = vld [vmem:[#allocation2 + $0x60] sm:$0xff]
    %v2595 = vld [vmem:[#allocation2 + $0x68] sm:$0xff]
    %v2596 = vld [vmem:[#allocation2 + $0x70] sm:$0xff]
    %v2597 = vld [vmem:[#allocation2 + $0x78] sm:$0x11]
    %v2598 = vld [vmem:[#allocation2 + $0x80] sm:$0x11]
    %v2599 = vld [vmem:[#allocation2 + $0x88] sm:$0x11]
    %v2600 = vld [vmem:[#allocation2 + $0x90] sm:$0x11]
    %v2601 = vld [vmem:[#allocation2 + $0x98] sm:$0x11]
    %v2602 = vld [vmem:[#allocation2 + $0xa0] sm:$0x11]
    %v2603 = vld [vmem:[#allocation2 + $0xa8] sm:$0x11]
    %v2604 = vld [vmem:[#allocation2 + $0xb0] sm:$0x11]
    %v2605 = vld [vmem:[#allocation2 + $0xb8] sm:$0x11]
    %v2606 = vld [vmem:[#allocation2 + $0xc0] sm:$0x11]
    %v2607 = vld [vmem:[#allocation2 + $0xc8] sm:$0x11]
    %v2608 = vld [vmem:[#allocation2 + $0xd0] sm:$0x11]
    %v2609 = vld [vmem:[#allocation2 + $0xd8] sm:$0x11]
    %v2610 = vld [vmem:[#allocation2 + $0xe0] sm:$0x11]
    %v2611 = vld [vmem:[#allocation2 + $0xe8] sm:$0x11]
    %v2612 = vld [vmem:[#allocation8] sm:$0xf]
    %v2613 = vld [vmem:[#allocation8 + $0x4] sm:$0xf]
    %v2614 = vld [vmem:[#allocation8 + $0x8] sm:$0xf]
    %v2615 = vld [vmem:[#allocation8 + $0xc] sm:$0xf]
    %v2616 = vld [vmem:[#allocation8 + $0x10] sm:$0xf]
    %v2617 = vld [vmem:[#allocation8 + $0x14] sm:$0xf]
    %v2618 = vld [vmem:[#allocation8 + $0x18] sm:$0xf]
    %v2619 = vld [vmem:[#allocation8 + $0x1c] sm:$0xf]
    %v2620 = vld [vmem:[#allocation8 + $0x20] sm:$0xf]
    %v2621 = vld [vmem:[#allocation8 + $0x24] sm:$0xf]
    %v2622 = vld [vmem:[#allocation8 + $0x28] sm:$0xf]
    %v2623 = vld [vmem:[#allocation8 + $0x2c] sm:$0xf]
    %v2624 = vld [vmem:[#allocation8 + $0x30] sm:$0xf]
    %v2625 = vld [vmem:[#allocation8 + $0x34] sm:$0xf]
    %v2626 = vld [vmem:[#allocation8 + $0x38] sm:$0xf]
    %v2627 = vld [vmem:[#allocation8 + $0x3c] sm:$0xf]
    %v2628 = vld [vmem:[#allocation8 + $0x40] sm:$0xf]
    %v2629 = vld [vmem:[#allocation8 + $0x44] sm:$0xf]
    %v2630 = vld [vmem:[#allocation8 + $0x48] sm:$0xf]
    %v2631 = vld [vmem:[#allocation8 + $0x4c] sm:$0xf]
    %v2632 = vld [vmem:[#allocation8 + $0x50] sm:$0xf]
    %v2633 = vld [vmem:[#allocation8 + $0x54] sm:$0xf]
    %v2634 = vld [vmem:[#allocation8 + $0x58] sm:$0xf]
    %v2635 = vld [vmem:[#allocation8 + $0x5c] sm:$0xf]
    %v2636 = vld [vmem:[#allocation8 + $0x60] sm:$0xf]
    %v2637 = vld [vmem:[#allocation8 + $0x64] sm:$0xf]
    %v2638 = vld [vmem:[#allocation8 + $0x68] sm:$0xf]
    %v2639 = vld [vmem:[#allocation8 + $0x6c] sm:$0xf]
    %v2640 = vld [vmem:[#allocation8 + $0x70] sm:$0xf]
    %v2641 = vld [vmem:[#allocation8 + $0x74] sm:$0xf]
    %v2642 = vld [vmem:[#allocation8 + $0x78] sm:$0xf]
    %v2643 = vld [vmem:[#allocation8 + $0x7c] sm:$0xf]
    %v2644 = vld [vmem:[#allocation8 + $0x80] sm:$0xf]
    %v2645 = vld [vmem:[#allocation8 + $0x84] sm:$0xf]
    %v2646 = vld [vmem:[#allocation8 + $0x88] sm:$0xf]
    %v2647 = vld [vmem:[#allocation8 + $0x8c] sm:$0xf]
    %v2648 = vld [vmem:[#allocation8 + $0x90] sm:$0xf]
    %v2649 = vld [vmem:[#allocation8 + $0x94] sm:$0xf]
    %v2650 = vld [vmem:[#allocation8 + $0x98] sm:$0xf]
    %v2651 = vld [vmem:[#allocation8 + $0x9c] sm:$0xf]
    %v2652 = vld [vmem:[#allocation8 + $0xa0] sm:$0xf]
    %v2653 = vld [vmem:[#allocation8 + $0xa4] sm:$0xf]
    %v2654 = vld [vmem:[#allocation8 + $0xa8] sm:$0xf]
    %v2655 = vld [vmem:[#allocation8 + $0xac] sm:$0xf]
    %v2656 = vld [vmem:[#allocation8 + $0xb0] sm:$0xf]
    %v2657 = vld [vmem:[#allocation8 + $0xb4] sm:$0xf]
    %v2658 = vld [vmem:[#allocation8 + $0xb8] sm:$0xf]
    %v2659 = vld [vmem:[#allocation8 + $0xbc] sm:$0xf]
    %v2660 = vld [vmem:[#allocation8 + $0xc0] sm:$0xf]
    %v2661 = vld [vmem:[#allocation8 + $0xc4] sm:$0xf]
    %v2662 = vld [vmem:[#allocation8 + $0xc8] sm:$0xf]
    %v2663 = vld [vmem:[#allocation8 + $0xcc] sm:$0xf]
    %v2664 = vld [vmem:[#allocation8 + $0xd0] sm:$0xf]
    %v2665 = vld [vmem:[#allocation8 + $0xd4] sm:$0xf]
    %v2666 = vld [vmem:[#allocation8 + $0xd8] sm:$0xf]
    %v2667 = vld [vmem:[#allocation8 + $0xdc] sm:$0xf]
    %v2668 = vld [vmem:[#allocation8 + $0xe0] sm:$0xf]
    %v2669 = vld [vmem:[#allocation8 + $0xe4] sm:$0xf]
    %v2670 = vld [vmem:[#allocation8 + $0xe8] sm:$0xf]
    %v2671 = vld [vmem:[#allocation8 + $0xec] sm:$0xf]
    %v2672 = vld [vmem:[#allocation8 + $0xf0] sm:$0xf]
    %v2673 = vld [vmem:[#allocation8 + $0xf4] sm:$0xf]
    %v2674 = vld [vmem:[#allocation8 + $0xf8] sm:$0xf]
    %v2675 = vld [vmem:[#allocation8 + $0xfc] sm:$0xf]
    %v2676 = vld [vmem:[#allocation8 + $0x100] sm:$0xf]
    %v2677 = vld [vmem:[#allocation8 + $0x104] sm:$0xf]
    %v2678 = vld [vmem:[#allocation8 + $0x108] sm:$0xf]
    %v2679 = vld [vmem:[#allocation8 + $0x10c] sm:$0xf]
    %v2680 = vld [vmem:[#allocation8 + $0x110] sm:$0xf]
    %v2681 = vld [vmem:[#allocation8 + $0x114] sm:$0xf]
    %v2682 = vld [vmem:[#allocation8 + $0x118] sm:$0xf]
    %v2683 = vld [vmem:[#allocation8 + $0x11c] sm:$0xf]
    %v2684 = vld [vmem:[#allocation8 + $0x120] sm:$0xf]
    %v2685 = vld [vmem:[#allocation8 + $0x124] sm:$0xf]
    %v2686 = vld [vmem:[#allocation8 + $0x128] sm:$0xf]
    %v2687 = vld [vmem:[#allocation8 + $0x12c] sm:$0xf]
    %v2688 = vld [vmem:[#allocation8 + $0x130] sm:$0xf]
    %v2689 = vld [vmem:[#allocation8 + $0x134] sm:$0xf]
    %v2690 = vld [vmem:[#allocation8 + $0x138] sm:$0xf]
    %v2691 = vld [vmem:[#allocation8 + $0x13c] sm:$0xf]
    %v2692 = vld [vmem:[#allocation8 + $0x140] sm:$0xf]
    %v2693 = vld [vmem:[#allocation8 + $0x144] sm:$0xf]
    %v2694 = vld [vmem:[#allocation8 + $0x148] sm:$0xf]
    %v2695 = vld [vmem:[#allocation8 + $0x14c] sm:$0xf]
    %v2696 = vld [vmem:[#allocation8 + $0x150] sm:$0xf]
    %v2697 = vld [vmem:[#allocation8 + $0x154] sm:$0xf]
    %v2698 = vld [vmem:[#allocation8 + $0x158] sm:$0xf]
    %v2699 = vld [vmem:[#allocation8 + $0x15c] sm:$0xf]
    %v2700 = vld [vmem:[#allocation8 + $0x160] sm:$0xf]
    %v2701 = vld [vmem:[#allocation8 + $0x164] sm:$0xf]
    %v2702 = vld [vmem:[#allocation8 + $0x168] sm:$0xf]
    %v2703 = vld [vmem:[#allocation8 + $0x16c] sm:$0xf]
    %v2704 = vld [vmem:[#allocation8 + $0x170] sm:$0xf]
    %v2705 = vld [vmem:[#allocation8 + $0x174] sm:$0xf]
    %v2706 = vld [vmem:[#allocation8 + $0x178] sm:$0xf]
    %v2707 = vld [vmem:[#allocation8 + $0x17c] sm:$0xf]
    %v2708 = vld [vmem:[#allocation8 + $0x180] sm:$0xf]
    %v2709 = vld [vmem:[#allocation8 + $0x184] sm:$0xf]
    %v2710 = vld [vmem:[#allocation8 + $0x188] sm:$0xf]
    %v2711 = vld [vmem:[#allocation8 + $0x18c] sm:$0xf]
    %v2712 = vld [vmem:[#allocation8 + $0x190] sm:$0xf]
    %v2713 = vld [vmem:[#allocation8 + $0x194] sm:$0xf]
    %v2714 = vld [vmem:[#allocation8 + $0x198] sm:$0xf]
    %v2715 = vld [vmem:[#allocation8 + $0x19c] sm:$0xf]
    %v2716 = vld [vmem:[#allocation8 + $0x1a0] sm:$0xf]
    %v2717 = vld [vmem:[#allocation8 + $0x1a4] sm:$0xf]
    %v2718 = vld [vmem:[#allocation8 + $0x1a8] sm:$0xf]
    %v2719 = vld [vmem:[#allocation8 + $0x1ac] sm:$0xf]
    %v2720 = vld [vmem:[#allocation8 + $0x1b0] sm:$0xf]
    %v2721 = vld [vmem:[#allocation8 + $0x1b4] sm:$0xf]
    %v2722 = vld [vmem:[#allocation8 + $0x1b8] sm:$0xf]
    %v2723 = vld [vmem:[#allocation8 + $0x1bc] sm:$0xf]
    %v2724 = vld [vmem:[#allocation8 + $0x1c0] sm:$0xf]
    %v2725 = vld [vmem:[#allocation8 + $0x1c4] sm:$0xf]
    %v2726 = vld [vmem:[#allocation8 + $0x1c8] sm:$0xf]
    %v2727 = vld [vmem:[#allocation8 + $0x1cc] sm:$0xf]
    %v2728 = vld [vmem:[#allocation8 + $0x1d0] sm:$0xf]
    %v2729 = vld [vmem:[#allocation8 + $0x1d4] sm:$0xf]
    %v2730 = vld [vmem:[#allocation8 + $0x1d8] sm:$0xf]
    %v2731 = vld [vmem:[#allocation8 + $0x1dc] sm:$0xf]
    %v2732 = vld [vmem:[#allocation8 + $0x1e0] sm:$0xf]
    %v2733 = vld [vmem:[#allocation8 + $0x1e4] sm:$0xf]
    %v2734 = vld [vmem:[#allocation8 + $0x1e8] sm:$0xf]
    %v2735 = vld [vmem:[#allocation8 + $0x1ec] sm:$0xf]
    %v2736 = vld [vmem:[#allocation8 + $0x1f0] sm:$0xf]
    %v2737 = vld [vmem:[#allocation8 + $0x1f4] sm:$0xf]
    %v2738 = vld [vmem:[#allocation8 + $0x1f8] sm:$0xf]
    %v2739 = vld [vmem:[#allocation8 + $0x1fc] sm:$0xf]
    %v2740 = vld [vmem:[#allocation8 + $0x200] sm:$0xf]
    %v2741 = vld [vmem:[#allocation8 + $0x204] sm:$0xf]
    %v2742 = vld [vmem:[#allocation8 + $0x208] sm:$0xf]
    %v2743 = vld [vmem:[#allocation8 + $0x20c] sm:$0xf]
    %v2744 = vld [vmem:[#allocation8 + $0x210] sm:$0xf]
    %v2745 = vld [vmem:[#allocation8 + $0x214] sm:$0xf]
    %v2746 = vld [vmem:[#allocation8 + $0x218] sm:$0xf]
    %v2747 = vld [vmem:[#allocation8 + $0x21c] sm:$0xf]
    %v2748 = vld [vmem:[#allocation8 + $0x220] sm:$0xf]
    %v2749 = vld [vmem:[#allocation8 + $0x224] sm:$0xf]
    %v2750 = vld [vmem:[#allocation8 + $0x228] sm:$0xf]
    %v2751 = vld [vmem:[#allocation8 + $0x22c] sm:$0xf]
    %v2752 = vld [vmem:[#allocation8 + $0x230] sm:$0xf]
    %v2753 = vld [vmem:[#allocation8 + $0x234] sm:$0xf]
    %v2754 = vld [vmem:[#allocation8 + $0x238] sm:$0xf]
    %v2755 = vld [vmem:[#allocation8 + $0x23c] sm:$0xf]
    %v2756 = vld [vmem:[#allocation8 + $0x240] sm:$0xf]
    %v2757 = vld [vmem:[#allocation8 + $0x244] sm:$0xf]
    %v2758 = vld [vmem:[#allocation8 + $0x248] sm:$0xf]
    %v2759 = vld [vmem:[#allocation8 + $0x24c] sm:$0xf]
    %v2760 = vld [vmem:[#allocation8 + $0x250] sm:$0xf]
    %v2761 = vld [vmem:[#allocation8 + $0x254] sm:$0xf]
    %v2762 = vld [vmem:[#allocation8 + $0x258] sm:$0xf]
    %v2763 = vld [vmem:[#allocation8 + $0x25c] sm:$0xf]
    %v2764 = vld [vmem:[#allocation8 + $0x260] sm:$0xf]
    %v2765 = vld [vmem:[#allocation8 + $0x264] sm:$0xf]
    %v2766 = vld [vmem:[#allocation8 + $0x268] sm:$0xf]
    %v2767 = vld [vmem:[#allocation8 + $0x26c] sm:$0xf]
    %v2768 = vld [vmem:[#allocation8 + $0x270] sm:$0xf]
    %v2769 = vld [vmem:[#allocation8 + $0x274] sm:$0xf]
    %v2770 = vld [vmem:[#allocation8 + $0x278] sm:$0xf]
    %v2771 = vld [vmem:[#allocation8 + $0x27c] sm:$0xf]
    %v2772 = vld [vmem:[#allocation8 + $0x280] sm:$0xf]
    %v2773 = vld [vmem:[#allocation8 + $0x284] sm:$0xf]
    %v2774 = vld [vmem:[#allocation8 + $0x288] sm:$0xf]
    %v2775 = vld [vmem:[#allocation8 + $0x28c] sm:$0xf]
    %v2776 = vld [vmem:[#allocation8 + $0x290] sm:$0xf]
    %v2777 = vld [vmem:[#allocation8 + $0x294] sm:$0xf]
    %v2778 = vld [vmem:[#allocation8 + $0x298] sm:$0xf]
    %v2779 = vld [vmem:[#allocation8 + $0x29c] sm:$0xf]
    %v2780 = vld [vmem:[#allocation8 + $0x2a0] sm:$0xf]
    %v2781 = vld [vmem:[#allocation8 + $0x2a4] sm:$0xf]
    %v2782 = vld [vmem:[#allocation8 + $0x2a8] sm:$0xf]
    %v2783 = vld [vmem:[#allocation8 + $0x2ac] sm:$0xf]
    %v2784 = vld [vmem:[#allocation8 + $0x2b0] sm:$0xf]
    %v2785 = vld [vmem:[#allocation8 + $0x2b4] sm:$0xf]
    %v2786 = vld [vmem:[#allocation8 + $0x2b8] sm:$0xf]
    %v2787 = vld [vmem:[#allocation8 + $0x2bc] sm:$0xf]
    %v2788 = vld [vmem:[#allocation8 + $0x2c0] sm:$0xf]
    %v2789 = vld [vmem:[#allocation8 + $0x2c4] sm:$0xf]
    %v2790 = vld [vmem:[#allocation8 + $0x2c8] sm:$0xf]
    %v2791 = vld [vmem:[#allocation8 + $0x2cc] sm:$0xf]
    %v2792 = vld [vmem:[#allocation8 + $0x2d0] sm:$0xf]
    %v2793 = vld [vmem:[#allocation8 + $0x2d4] sm:$0xf]
    %v2794 = vld [vmem:[#allocation8 + $0x2d8] sm:$0xf]
    %v2795 = vld [vmem:[#allocation8 + $0x2dc] sm:$0xf]
    %v2796 = vld [vmem:[#allocation8 + $0x2e0] sm:$0xf]
    %v2797 = vld [vmem:[#allocation8 + $0x2e4] sm:$0xf]
    %v2798 = vld [vmem:[#allocation8 + $0x2e8] sm:$0xf]
    %v2799 = vld [vmem:[#allocation8 + $0x2ec] sm:$0xf]
    %v2800 = vld [vmem:[#allocation8 + $0x2f0] sm:$0xf]
    %v2801 = vld [vmem:[#allocation8 + $0x2f4] sm:$0xf]
    %v2802 = vld [vmem:[#allocation8 + $0x2f8] sm:$0xf]
    %v2803 = vld [vmem:[#allocation8 + $0x2fc] sm:$0xf]
    %v2804 = vld [vmem:[#allocation8 + $0x300] sm:$0xf]
    %v2805 = vld [vmem:[#allocation8 + $0x304] sm:$0xf]
    %v2806 = vld [vmem:[#allocation8 + $0x308] sm:$0xf]
    %v2807 = vld [vmem:[#allocation8 + $0x30c] sm:$0xf]
    %v2808 = vld [vmem:[#allocation8 + $0x310] sm:$0xf]
    %v2809 = vld [vmem:[#allocation8 + $0x314] sm:$0xf]
    %v2810 = vld [vmem:[#allocation8 + $0x318] sm:$0xf]
    %v2811 = vld [vmem:[#allocation8 + $0x31c] sm:$0xf]
    %v2812 = vld [vmem:[#allocation8 + $0x320] sm:$0xf]
    %v2813 = vld [vmem:[#allocation8 + $0x324] sm:$0xf]
    %v2814 = vld [vmem:[#allocation8 + $0x328] sm:$0xf]
    %v2815 = vld [vmem:[#allocation8 + $0x32c] sm:$0xf]
    %v2816 = vld [vmem:[#allocation8 + $0x330] sm:$0xf]
    %v2817 = vld [vmem:[#allocation8 + $0x334] sm:$0xf]
    %v2818 = vld [vmem:[#allocation8 + $0x338] sm:$0xf]
    %v2819 = vld [vmem:[#allocation8 + $0x33c] sm:$0xf]
    %v2820 = vld [vmem:[#allocation8 + $0x340] sm:$0xf]
    %v2821 = vld [vmem:[#allocation8 + $0x344] sm:$0xf]
    %v2822 = vld [vmem:[#allocation8 + $0x348] sm:$0xf]
    %v2823 = vld [vmem:[#allocation8 + $0x34c] sm:$0xf]
    %v2824 = vld [vmem:[#allocation8 + $0x350] sm:$0xf]
    %v2825 = vld [vmem:[#allocation8 + $0x354] sm:$0xf]
    %v2826 = vld [vmem:[#allocation8 + $0x358] sm:$0xf]
    %v2827 = vld [vmem:[#allocation8 + $0x35c] sm:$0xf]
    %v2828 = vld [vmem:[#allocation8 + $0x360] sm:$0xf]
    %v2829 = vld [vmem:[#allocation8 + $0x364] sm:$0xf]
    %v2830 = vld [vmem:[#allocation8 + $0x368] sm:$0xf]
    %v2831 = vld [vmem:[#allocation8 + $0x36c] sm:$0xf]
    %v2832 = vld [vmem:[#allocation8 + $0x370] sm:$0xf]
    %v2833 = vld [vmem:[#allocation8 + $0x374] sm:$0xf]
    %v2834 = vld [vmem:[#allocation8 + $0x378] sm:$0xf]
    %v2835 = vld [vmem:[#allocation8 + $0x37c] sm:$0xf]
    %v2836 = vld [vmem:[#allocation8 + $0x380] sm:$0xf]
    %v2837 = vld [vmem:[#allocation8 + $0x384] sm:$0xf]
    %v2838 = vld [vmem:[#allocation8 + $0x388] sm:$0xf]
    %v2839 = vld [vmem:[#allocation8 + $0x38c] sm:$0xf]
    %v2840 = vld [vmem:[#allocation8 + $0x390] sm:$0xf]
    %v2841 = vld [vmem:[#allocation8 + $0x394] sm:$0xf]
    %v2842 = vld [vmem:[#allocation8 + $0x398] sm:$0xf]
    %v2843 = vld [vmem:[#allocation8 + $0x39c] sm:$0xf]
    %v2844 = vld [vmem:[#allocation8 + $0x3a0] sm:$0xf]
    %v2845 = vld [vmem:[#allocation8 + $0x3a4] sm:$0xf]
    %v2846 = vld [vmem:[#allocation8 + $0x3a8] sm:$0xf]
    %v2847 = vld [vmem:[#allocation8 + $0x3ac] sm:$0xf]
    %v2848 = vld [vmem:[#allocation8 + $0x3b0] sm:$0xf]
    %v2849 = vld [vmem:[#allocation8 + $0x3b4] sm:$0xf]
    %v2850 = vld [vmem:[#allocation8 + $0x3b8] sm:$0xf]
    %v2851 = vld [vmem:[#allocation8 + $0x3bc] sm:$0xf]
    %v2852 = vld [vmem:[#allocation8 + $0x3c0] sm:$0xf]
    %v2853 = vld [vmem:[#allocation8 + $0x3c4] sm:$0xf]
    %v2854 = vld [vmem:[#allocation8 + $0x3c8] sm:$0xf]
    %v2855 = vld [vmem:[#allocation8 + $0x3cc] sm:$0xf]
    %v2856 = vld [vmem:[#allocation8 + $0x3d0] sm:$0xf]
    %v2857 = vld [vmem:[#allocation8 + $0x3d4] sm:$0xf]
    %v2858 = vld [vmem:[#allocation8 + $0x3d8] sm:$0xf]
    %v2859 = vld [vmem:[#allocation8 + $0x3dc] sm:$0xf]
    %v2860 = vld [vmem:[#allocation8 + $0x3e0] sm:$0xf]
    %v2861 = vld [vmem:[#allocation8 + $0x3e4] sm:$0xf]
    %v2862 = vld [vmem:[#allocation8 + $0x3e8] sm:$0xf]
    %v2863 = vld [vmem:[#allocation8 + $0x3ec] sm:$0xf]
    %v2864 = vld [vmem:[#allocation8 + $0x3f0] sm:$0xf]
    %v2865 = vld [vmem:[#allocation8 + $0x3f4] sm:$0xf]
    %v2866 = vld [vmem:[#allocation8 + $0x3f8] sm:$0xf]
    %v2867 = vld [vmem:[#allocation8 + $0x3fc] sm:$0xf]
    %v2868 = vld [vmem:[#allocation8 + $0x400] sm:$0xf]
    %v2869 = vld [vmem:[#allocation8 + $0x404] sm:$0xf]
    %v2870 = vld [vmem:[#allocation8 + $0x408] sm:$0xf]
    %v2871 = vld [vmem:[#allocation8 + $0x40c] sm:$0xf]
    %v2872 = vld [vmem:[#allocation8 + $0x410] sm:$0xf]
    %v2873 = vld [vmem:[#allocation8 + $0x414] sm:$0xf]
    %v2874 = vld [vmem:[#allocation8 + $0x418] sm:$0xf]
    %v2875 = vld [vmem:[#allocation8 + $0x41c] sm:$0xf]
    %v2876 = vld [vmem:[#allocation8 + $0x420] sm:$0xf]
    %v2877 = vld [vmem:[#allocation8 + $0x424] sm:$0xf]
    %v2878 = vld [vmem:[#allocation8 + $0x428] sm:$0xf]
    %v2879 = vld [vmem:[#allocation8 + $0x42c] sm:$0xf]
    %v2880 = vld [vmem:[#allocation8 + $0x430] sm:$0xf]
    %v2881 = vld [vmem:[#allocation8 + $0x434] sm:$0xf]
    %v2882 = vld [vmem:[#allocation8 + $0x438] sm:$0xf]
    %v2883 = vld [vmem:[#allocation8 + $0x43c] sm:$0xf]
    %v2884 = vld [vmem:[#allocation8 + $0x440] sm:$0xf]
    %v2885 = vld [vmem:[#allocation8 + $0x444] sm:$0xf]
    %v2886 = vld [vmem:[#allocation8 + $0x448] sm:$0xf]
    %v2887 = vld [vmem:[#allocation8 + $0x44c] sm:$0xf]
    %v2888 = vld [vmem:[#allocation8 + $0x450] sm:$0xf]
    %v2889 = vld [vmem:[#allocation8 + $0x454] sm:$0xf]
    %v2890 = vld [vmem:[#allocation8 + $0x458] sm:$0xf]
    %v2891 = vld [vmem:[#allocation8 + $0x45c] sm:$0xf]
    %v2892 = vld [vmem:[#allocation8 + $0x460] sm:$0xf]
    %v2893 = vld [vmem:[#allocation8 + $0x464] sm:$0xf]
    %v2894 = vld [vmem:[#allocation8 + $0x468] sm:$0xf]
    %v2895 = vld [vmem:[#allocation8 + $0x46c] sm:$0xf]
    %v2896 = vld [vmem:[#allocation8 + $0x470] sm:$0xf]
    %v2897 = vld [vmem:[#allocation8 + $0x474] sm:$0xf]
    %v2898 = vld [vmem:[#allocation8 + $0x478] sm:$0xf]
    %v2899 = vld [vmem:[#allocation8 + $0x47c] sm:$0xf]
    %v2900 = vld [vmem:[#allocation8 + $0x480] sm:$0xf]
    %v2901 = vld [vmem:[#allocation8 + $0x484] sm:$0xf]
    %v2902 = vld [vmem:[#allocation8 + $0x488] sm:$0xf]
    %v2903 = vld [vmem:[#allocation8 + $0x48c] sm:$0xf]
    %v2904 = vld [vmem:[#allocation8 + $0x490] sm:$0xf]
    %v2905 = vld [vmem:[#allocation8 + $0x494] sm:$0xf]
    %v2906 = vld [vmem:[#allocation8 + $0x498] sm:$0xf]
    %v2907 = vld [vmem:[#allocation8 + $0x49c] sm:$0xf]
    %v2908 = vld [vmem:[#allocation8 + $0x4a0] sm:$0xf]
    %v2909 = vld [vmem:[#allocation8 + $0x4a4] sm:$0xf]
    %v2910 = vld [vmem:[#allocation8 + $0x4a8] sm:$0xf]
    %v2911 = vld [vmem:[#allocation8 + $0x4ac] sm:$0xf]
    %v2912 = vld [vmem:[#allocation8 + $0x4b0] sm:$0xf]
    %v2913 = vld [vmem:[#allocation8 + $0x4b4] sm:$0xf]
    %v2914 = vld [vmem:[#allocation8 + $0x4b8] sm:$0xf]
    %v2915 = vld [vmem:[#allocation8 + $0x4bc] sm:$0xf]
    %v2916 = vld [vmem:[#allocation8 + $0x4c0] sm:$0xf]
    %v2917 = vld [vmem:[#allocation8 + $0x4c4] sm:$0xf]
    %v2918 = vld [vmem:[#allocation8 + $0x4c8] sm:$0xf]
    %v2919 = vld [vmem:[#allocation8 + $0x4cc] sm:$0xf]
    %v2920 = vld [vmem:[#allocation8 + $0x4d0] sm:$0xf]
    %v2921 = vld [vmem:[#allocation8 + $0x4d4] sm:$0xf]
    %v2922 = vld [vmem:[#allocation8 + $0x4d8] sm:$0xf]
    %v2923 = vld [vmem:[#allocation8 + $0x4dc] sm:$0xf]
    %v2924 = vld [vmem:[#allocation8 + $0x4e0] sm:$0xf]
    %v2925 = vld [vmem:[#allocation8 + $0x4e4] sm:$0xf]
    %v2926 = vld [vmem:[#allocation8 + $0x4e8] sm:$0xf]
    %v2927 = vld [vmem:[#allocation8 + $0x4ec] sm:$0xf]
    %v2928 = vld [vmem:[#allocation8 + $0x4f0] sm:$0xf]
    %v2929 = vld [vmem:[#allocation8 + $0x4f4] sm:$0xf]
    %v2930 = vld [vmem:[#allocation8 + $0x4f8] sm:$0xf]
    %v2931 = vld [vmem:[#allocation8 + $0x4fc] sm:$0xf]
    %v2932 = vld [vmem:[#allocation8 + $0x500] sm:$0xf]
    %v2933 = vld [vmem:[#allocation8 + $0x504] sm:$0xf]
    %v2934 = vld [vmem:[#allocation8 + $0x508] sm:$0xf]
    %v2935 = vld [vmem:[#allocation8 + $0x50c] sm:$0xf]
    %v2936 = vld [vmem:[#allocation8 + $0x510] sm:$0xf]
    %v2937 = vld [vmem:[#allocation8 + $0x514] sm:$0xf]
    %v2938 = vld [vmem:[#allocation8 + $0x518] sm:$0xf]
    %v2939 = vld [vmem:[#allocation8 + $0x51c] sm:$0xf]
    %v2940 = vld [vmem:[#allocation8 + $0x520] sm:$0xf]
    %v2941 = vld [vmem:[#allocation8 + $0x524] sm:$0xf]
    %v2942 = vld [vmem:[#allocation8 + $0x528] sm:$0xf]
    %v2943 = vld [vmem:[#allocation8 + $0x52c] sm:$0xf]
    %v2944 = vld [vmem:[#allocation8 + $0x530] sm:$0xf]
    %v2945 = vld [vmem:[#allocation8 + $0x534] sm:$0xf]
    %v2946 = vld [vmem:[#allocation8 + $0x538] sm:$0xf]
    %v2947 = vld [vmem:[#allocation8 + $0x53c] sm:$0xf]
    %v2948 = vld [vmem:[#allocation8 + $0x540] sm:$0xf]
    %v2949 = vld [vmem:[#allocation8 + $0x544] sm:$0xf]
    %v2950 = vld [vmem:[#allocation8 + $0x548] sm:$0xf]
    %v2951 = vld [vmem:[#allocation8 + $0x54c] sm:$0xf]
    %v2952 = vld [vmem:[#allocation8 + $0x550] sm:$0xf]
    %v2953 = vld [vmem:[#allocation8 + $0x554] sm:$0xf]
    %v2954 = vld [vmem:[#allocation8 + $0x558] sm:$0xf]
    %v2955 = vld [vmem:[#allocation8 + $0x55c] sm:$0xf]
    %v2956 = vld [vmem:[#allocation8 + $0x560] sm:$0xf]
    %v2957 = vld [vmem:[#allocation8 + $0x564] sm:$0xf]
    %v2958 = vld [vmem:[#allocation8 + $0x568] sm:$0xf]
    %v2959 = vld [vmem:[#allocation8 + $0x56c] sm:$0xf]
    %v2960 = vld [vmem:[#allocation8 + $0x570] sm:$0xf]
    %v2961 = vld [vmem:[#allocation8 + $0x574] sm:$0xf]
    %v2962 = vld [vmem:[#allocation8 + $0x578] sm:$0xf]
    %v2963 = vld [vmem:[#allocation8 + $0x57c] sm:$0xf]
    %v2964 = vld [vmem:[#allocation8 + $0x580] sm:$0xf]
    %v2965 = vld [vmem:[#allocation8 + $0x584] sm:$0xf]
    %v2966 = vld [vmem:[#allocation8 + $0x588] sm:$0xf]
    %v2967 = vld [vmem:[#allocation8 + $0x58c] sm:$0xf]
    %v2968 = vld [vmem:[#allocation8 + $0x590] sm:$0xf]
    %v2969 = vld [vmem:[#allocation8 + $0x594] sm:$0xf]
    %v2970 = vld [vmem:[#allocation8 + $0x598] sm:$0xf]
    %v2971 = vld [vmem:[#allocation8 + $0x59c] sm:$0xf]
    %v2972 = vld [vmem:[#allocation8 + $0x5a0] sm:$0xf]
    %v2973 = vld [vmem:[#allocation8 + $0x5a4] sm:$0xf]
    %v2974 = vld [vmem:[#allocation8 + $0x5a8] sm:$0xf]
    %v2975 = vld [vmem:[#allocation8 + $0x5ac] sm:$0xf]
    %v2976 = vld [vmem:[#allocation8 + $0x5b0] sm:$0xf]
    %v2977 = vld [vmem:[#allocation8 + $0x5b4] sm:$0xf]
    %v2978 = vld [vmem:[#allocation8 + $0x5b8] sm:$0xf]
    %v2979 = vld [vmem:[#allocation8 + $0x5bc] sm:$0xf]
    %v2980 = vld [vmem:[#allocation8 + $0x5c0] sm:$0xf]
    %v2981 = vld [vmem:[#allocation8 + $0x5c4] sm:$0xf]
    %v2982 = vld [vmem:[#allocation8 + $0x5c8] sm:$0xf]
    %v2983 = vld [vmem:[#allocation8 + $0x5cc] sm:$0xf]
    %v2984 = vld [vmem:[#allocation8 + $0x5d0] sm:$0xf]
    %v2985 = vld [vmem:[#allocation8 + $0x5d4] sm:$0xf]
    %v2986 = vld [vmem:[#allocation8 + $0x5d8] sm:$0xf]
    %v2987 = vld [vmem:[#allocation8 + $0x5dc] sm:$0xf]
    %v2988 = vld [vmem:[#allocation8 + $0x5e0] sm:$0xf]
    %v2989 = vld [vmem:[#allocation8 + $0x5e4] sm:$0xf]
    %v2990 = vld [vmem:[#allocation8 + $0x5e8] sm:$0xf]
    %v2991 = vld [vmem:[#allocation8 + $0x5ec] sm:$0xf]
    %v2992 = vld [vmem:[#allocation8 + $0x5f0] sm:$0xf]
    %v2993 = vld [vmem:[#allocation8 + $0x5f4] sm:$0xf]
    %v2994 = vld [vmem:[#allocation8 + $0x5f8] sm:$0xf]
    %v2995 = vld [vmem:[#allocation8 + $0x5fc] sm:$0xf]
    %v2996 = vld [vmem:[#allocation8 + $0x600] sm:$0xf]
    %v2997 = vld [vmem:[#allocation8 + $0x604] sm:$0xf]
    %v2998 = vld [vmem:[#allocation8 + $0x608] sm:$0xf]
    %v2999 = vld [vmem:[#allocation8 + $0x60c] sm:$0xf]
    %v3000 = vld [vmem:[#allocation8 + $0x610] sm:$0xf]
    %v3001 = vld [vmem:[#allocation8 + $0x614] sm:$0xf]
    %v3002 = vld [vmem:[#allocation8 + $0x618] sm:$0xf]
    %v3003 = vld [vmem:[#allocation8 + $0x61c] sm:$0xf]
    %v3004 = vld [vmem:[#allocation8 + $0x620] sm:$0xf]
    %v3005 = vld [vmem:[#allocation8 + $0x624] sm:$0xf]
    %v3006 = vld [vmem:[#allocation8 + $0x628] sm:$0xf]
    %v3007 = vld [vmem:[#allocation8 + $0x62c] sm:$0xf]
    %v3008 = vld [vmem:[#allocation8 + $0x630] sm:$0xf]
    %v3009 = vld [vmem:[#allocation8 + $0x634] sm:$0xf]
    %v3010 = vld [vmem:[#allocation8 + $0x638] sm:$0xf]
    %v3011 = vld [vmem:[#allocation8 + $0x63c] sm:$0xf]
    %v3012 = vld [vmem:[#allocation8 + $0x640] sm:$0xf]
    %v3013 = vld [vmem:[#allocation8 + $0x644] sm:$0xf]
    %v3014 = vld [vmem:[#allocation8 + $0x648] sm:$0xf]
    %v3015 = vld [vmem:[#allocation8 + $0x64c] sm:$0xf]
    %v3016 = vld [vmem:[#allocation8 + $0x650] sm:$0xf]
    %v3017 = vld [vmem:[#allocation8 + $0x654] sm:$0xf]
    %v3018 = vld [vmem:[#allocation8 + $0x658] sm:$0xf]
    %v3019 = vld [vmem:[#allocation8 + $0x65c] sm:$0xf]
    %v3020 = vld [vmem:[#allocation8 + $0x660] sm:$0xf]
    %v3021 = vld [vmem:[#allocation8 + $0x664] sm:$0xf]
    %v3022 = vld [vmem:[#allocation8 + $0x668] sm:$0xf]
    %v3023 = vld [vmem:[#allocation8 + $0x66c] sm:$0xf]
    %v3024 = vld [vmem:[#allocation8 + $0x670] sm:$0xf]
    %v3025 = vld [vmem:[#allocation8 + $0x674] sm:$0xf]
    %v3026 = vld [vmem:[#allocation8 + $0x678] sm:$0xf]
    %v3027 = vld [vmem:[#allocation8 + $0x67c] sm:$0xf]
    %v3028 = vld [vmem:[#allocation8 + $0x680] sm:$0xf]
    %v3029 = vld [vmem:[#allocation8 + $0x684] sm:$0xf]
    %v3030 = vld [vmem:[#allocation8 + $0x688] sm:$0xf]
    %v3031 = vld [vmem:[#allocation8 + $0x68c] sm:$0xf]
    %v3032 = vld [vmem:[#allocation8 + $0x690] sm:$0xf]
    %v3033 = vld [vmem:[#allocation8 + $0x694] sm:$0xf]
    %v3034 = vld [vmem:[#allocation8 + $0x698] sm:$0xf]
    %v3035 = vld [vmem:[#allocation8 + $0x69c] sm:$0xf]
    %v3036 = vld [vmem:[#allocation8 + $0x6a0] sm:$0xf]
    %v3037 = vld [vmem:[#allocation8 + $0x6a4] sm:$0xf]
    %v3038 = vld [vmem:[#allocation8 + $0x6a8] sm:$0xf]
    %v3039 = vld [vmem:[#allocation8 + $0x6ac] sm:$0xf]
    %v3040 = vld [vmem:[#allocation8 + $0x6b0] sm:$0xf]
    %v3041 = vld [vmem:[#allocation8 + $0x6b4] sm:$0xf]
    %v3042 = vld [vmem:[#allocation8 + $0x6b8] sm:$0xf]
    %v3043 = vld [vmem:[#allocation8 + $0x6bc] sm:$0xf]
    %v3044 = vld [vmem:[#allocation8 + $0x6c0] sm:$0xf]
    %v3045 = vld [vmem:[#allocation8 + $0x6c4] sm:$0xf]
    %v3046 = vld [vmem:[#allocation8 + $0x6c8] sm:$0xf]
    %v3047 = vld [vmem:[#allocation8 + $0x6cc] sm:$0xf]
    %v3048 = vld [vmem:[#allocation8 + $0x6d0] sm:$0xf]
    %v3049 = vld [vmem:[#allocation8 + $0x6d4] sm:$0xf]
    %v3050 = vld [vmem:[#allocation8 + $0x6d8] sm:$0xf]
    %v3051 = vld [vmem:[#allocation8 + $0x6dc] sm:$0xf]
    %v3052 = vld [vmem:[#allocation8 + $0x6e0] sm:$0xf]
    %v3053 = vld [vmem:[#allocation8 + $0x6e4] sm:$0xf]
    %v3054 = vld [vmem:[#allocation8 + $0x6e8] sm:$0xf]
    %v3055 = vld [vmem:[#allocation8 + $0x6ec] sm:$0xf]
    %v3056 = vld [vmem:[#allocation8 + $0x6f0] sm:$0xf]
    %v3057 = vld [vmem:[#allocation8 + $0x6f4] sm:$0xf]
    %v3058 = vld [vmem:[#allocation8 + $0x6f8] sm:$0xf]
    %v3059 = vld [vmem:[#allocation8 + $0x6fc] sm:$0xf]
    %v3060 = vld [vmem:[#allocation8 + $0x700] sm:$0xf]
    %v3061 = vld [vmem:[#allocation8 + $0x704] sm:$0xf]
    %v3062 = vld [vmem:[#allocation8 + $0x708] sm:$0xf]
    %v3063 = vld [vmem:[#allocation8 + $0x70c] sm:$0xf]
    %v3064 = vld [vmem:[#allocation8 + $0x710] sm:$0xf]
    %v3065 = vld [vmem:[#allocation8 + $0x714] sm:$0xf]
    %v3066 = vld [vmem:[#allocation8 + $0x718] sm:$0xf]
    %v3067 = vld [vmem:[#allocation8 + $0x71c] sm:$0xf]
    %v3068 = vld [vmem:[#allocation8 + $0x720] sm:$0xf]
    %v3069 = vld [vmem:[#allocation8 + $0x724] sm:$0xf]
    %v3070 = vld [vmem:[#allocation8 + $0x728] sm:$0xf]
    %v3071 = vld [vmem:[#allocation8 + $0x72c] sm:$0xf]
    %v3072 = vld [vmem:[#allocation8 + $0x730] sm:$0xf]
    %v3073 = vld [vmem:[#allocation8 + $0x734] sm:$0xf]
    %v3074 = vld [vmem:[#allocation8 + $0x738] sm:$0xf]
    %v3075 = vld [vmem:[#allocation8 + $0x73c] sm:$0xf]
    %v3076 = vld [vmem:[#allocation8 + $0x740] sm:$0xf]
    %v3077 = vld [vmem:[#allocation8 + $0x744] sm:$0xf]
    %v3078 = vld [vmem:[#allocation8 + $0x748] sm:$0xf]
    %v3079 = vld [vmem:[#allocation8 + $0x74c] sm:$0xf]
    %v3080 = vld [vmem:[#allocation8 + $0x750] sm:$0xf]
    %v3081 = vld [vmem:[#allocation8 + $0x754] sm:$0xf]
    %v3082 = vld [vmem:[#allocation8 + $0x758] sm:$0xf]
    %v3083 = vld [vmem:[#allocation8 + $0x75c] sm:$0xf]
    %v3084 = vld [vmem:[#allocation8 + $0x760] sm:$0xf]
    %v3085 = vld [vmem:[#allocation8 + $0x764] sm:$0xf]
    %v3086 = vld [vmem:[#allocation8 + $0x768] sm:$0xf]
    %v3087 = vld [vmem:[#allocation8 + $0x76c] sm:$0xf]
    %v3088 = vld [vmem:[#allocation8 + $0x770] sm:$0xf]
    %v3089 = vld [vmem:[#allocation8 + $0x774] sm:$0xf]
    %v3090 = vld [vmem:[#allocation8 + $0x778] sm:$0xf]
    %v3091 = vld [vmem:[#allocation8 + $0x77c] sm:$0xf]
    %v3092 = vld [vmem:[%s4] sm:$0x1]
    %v3094 = vperm.slane %v3092, 0
    %v3126 = vunpack.c.l.b16 %v2582
    %v3127 = vunpack.c.h.b16 %v2582
    %v3128 = vunpack.c.l.b16 %v2583
    %v3129 = vunpack.c.h.b16 %v2583
    %v3130 = vunpack.c.l.b16 %v2584
    %v3131 = vunpack.c.h.b16 %v2584
    %v3132 = vunpack.c.l.b16 %v2585
    %v3133 = vunpack.c.h.b16 %v2585
    %v3134 = vunpack.c.l.b16 %v2586
    %v3135 = vunpack.c.h.b16 %v2586
    %v3136 = vunpack.c.l.b16 %v2587
    %v3137 = vunpack.c.h.b16 %v2587
    %v3138 = vunpack.c.l.b16 %v2588
    %v3139 = vunpack.c.h.b16 %v2588
    %v3140 = vunpack.c.l.b16 %v2589
    %v3141 = vunpack.c.h.b16 %v2589
    %v3142 = vunpack.c.l.b16 %v2590
    %v3143 = vunpack.c.h.b16 %v2590
    %v3144 = vunpack.c.l.b16 %v2591
    %v3145 = vunpack.c.h.b16 %v2591
    %v3146 = vunpack.c.l.b16 %v2592
    %v3147 = vunpack.c.h.b16 %v2592
    %v3148 = vunpack.c.l.b16 %v2593
    %v3149 = vunpack.c.h.b16 %v2593
    %v3150 = vunpack.c.l.b16 %v2594
    %v3151 = vunpack.c.h.b16 %v2594
    %v3152 = vunpack.c.l.b16 %v2595
    %v3153 = vunpack.c.h.b16 %v2595
    %v3154 = vunpack.c.l.b16 %v2596
    %v3155 = vunpack.c.h.b16 %v2596
    %v3156 = vunpack.c.l.b16 %v2597
    %v3157 = vunpack.c.h.b16 %v2597
    %v3158 = vunpack.c.l.b16 %v2598
    %v3159 = vunpack.c.h.b16 %v2598
    %v3160 = vunpack.c.l.b16 %v2599
    %v3161 = vunpack.c.h.b16 %v2599
    %v3162 = vunpack.c.l.b16 %v2600
    %v3163 = vunpack.c.h.b16 %v2600
    %v3164 = vunpack.c.l.b16 %v2601
    %v3165 = vunpack.c.h.b16 %v2601
    %v3166 = vunpack.c.l.b16 %v2602
    %v3167 = vunpack.c.h.b16 %v2602
    %v3168 = vunpack.c.l.b16 %v2603
    %v3169 = vunpack.c.h.b16 %v2603
    %v3170 = vunpack.c.l.b16 %v2604
    %v3171 = vunpack.c.h.b16 %v2604
    %v3172 = vunpack.c.l.b16 %v2605
    %v3173 = vunpack.c.h.b16 %v2605
    %v3174 = vunpack.c.l.b16 %v2606
    %v3175 = vunpack.c.h.b16 %v2606
    %v3176 = vunpack.c.l.b16 %v2607
    %v3177 = vunpack.c.h.b16 %v2607
    %v3178 = vunpack.c.l.b16 %v2608
    %v3179 = vunpack.c.h.b16 %v2608
    %v3180 = vunpack.c.l.b16 %v2609
    %v3181 = vunpack.c.h.b16 %v2609
    %v3182 = vunpack.c.l.b16 %v2610
    %v3183 = vunpack.c.h.b16 %v2610
    %v3184 = vunpack.c.l.b16 %v2611
    %v3185 = vunpack.c.h.b16 %v2611
    %v3186 = vpack.c.b16 %v3156, %v3126
    %v3187 = vpack.c.b16 %v3157, %v3127
    %v3188 = vpack.c.b16 %v3158, %v3128
    %v3189 = vpack.c.b16 %v3159, %v3129
    %v3190 = vpack.c.b16 %v3160, %v3130
    %v3191 = vpack.c.b16 %v3161, %v3131
    %v3192 = vpack.c.b16 %v3162, %v3132
    %v3193 = vpack.c.b16 %v3163, %v3133
    %v3194 = vpack.c.b16 %v3164, %v3134
    %v3195 = vpack.c.b16 %v3165, %v3135
    %v3196 = vpack.c.b16 %v3166, %v3136
    %v3197 = vpack.c.b16 %v3167, %v3137
    %v3198 = vpack.c.b16 %v3168, %v3138
    %v3199 = vpack.c.b16 %v3169, %v3139
    %v3200 = vpack.c.b16 %v3170, %v3140
    %v3201 = vpack.c.b16 %v3171, %v3141
    %v3202 = vpack.c.b16 %v3172, %v3142
    %v3203 = vpack.c.b16 %v3173, %v3143
    %v3204 = vpack.c.b16 %v3174, %v3144
    %v3205 = vpack.c.b16 %v3175, %v3145
    %v3206 = vpack.c.b16 %v3176, %v3146
    %v3207 = vpack.c.b16 %v3177, %v3147
    %v3208 = vpack.c.b16 %v3178, %v3148
    %v3209 = vpack.c.b16 %v3179, %v3149
    %v3210 = vpack.c.b16 %v3180, %v3150
    %v3211 = vpack.c.b16 %v3181, %v3151
    %v3212 = vpack.c.b16 %v3182, %v3152
    %v3213 = vpack.c.b16 %v3183, %v3153
    %v3214 = vpack.c.b16 %v3184, %v3154
    %v3215 = vpack.c.b16 %v3185, %v3155
    %v3726 = vunpack.c.l.b16 %v2612
    %v3727 = vunpack.c.l.b16 %v2613
    %v3728 = vunpack.c.l.b16 %v2614
    %v3729 = vunpack.c.l.b16 %v2615
    %v3730 = vunpack.c.l.b16 %v2616
    %v3731 = vunpack.c.l.b16 %v2617
    %v3732 = vunpack.c.l.b16 %v2618
    %v3733 = vunpack.c.l.b16 %v2619
    %v3734 = vunpack.c.l.b16 %v2620
    %v3735 = vunpack.c.l.b16 %v2621
    %v3736 = vunpack.c.l.b16 %v2622
    %v3737 = vunpack.c.l.b16 %v2623
    %v3738 = vunpack.c.l.b16 %v2624
    %v3739 = vunpack.c.l.b16 %v2625
    %v3740 = vunpack.c.l.b16 %v2626
    %v3741 = vunpack.c.l.b16 %v2627
    %v3742 = vunpack.c.l.b16 %v2628
    %v3743 = vunpack.c.l.b16 %v2629
    %v3744 = vunpack.c.l.b16 %v2630
    %v3745 = vunpack.c.l.b16 %v2631
    %v3746 = vunpack.c.l.b16 %v2632
    %v3747 = vunpack.c.l.b16 %v2633
    %v3748 = vunpack.c.l.b16 %v2634
    %v3749 = vunpack.c.l.b16 %v2635
    %v3750 = vunpack.c.l.b16 %v2636
    %v3751 = vunpack.c.l.b16 %v2637
    %v3752 = vunpack.c.l.b16 %v2638
    %v3753 = vunpack.c.l.b16 %v2639
    %v3754 = vunpack.c.l.b16 %v2640
    %v3755 = vunpack.c.l.b16 %v2641
    %v3756 = vunpack.c.l.b16 %v2642
    %v3757 = vunpack.c.l.b16 %v2643
    %v3758 = vunpack.c.l.b16 %v2644
    %v3759 = vunpack.c.l.b16 %v2645
    %v3760 = vunpack.c.l.b16 %v2646
    %v3761 = vunpack.c.l.b16 %v2647
    %v3762 = vunpack.c.l.b16 %v2648
    %v3763 = vunpack.c.l.b16 %v2649
    %v3764 = vunpack.c.l.b16 %v2650
    %v3765 = vunpack.c.l.b16 %v2651
    %v3766 = vunpack.c.l.b16 %v2652
    %v3767 = vunpack.c.l.b16 %v2653
    %v3768 = vunpack.c.l.b16 %v2654
    %v3769 = vunpack.c.l.b16 %v2655
    %v3770 = vunpack.c.l.b16 %v2656
    %v3771 = vunpack.c.l.b16 %v2657
    %v3772 = vunpack.c.l.b16 %v2658
    %v3773 = vunpack.c.l.b16 %v2659
    %v3774 = vunpack.c.l.b16 %v2660
    %v3775 = vunpack.c.l.b16 %v2661
    %v3776 = vunpack.c.l.b16 %v2662
    %v3777 = vunpack.c.l.b16 %v2663
    %v3778 = vunpack.c.l.b16 %v2664
    %v3779 = vunpack.c.l.b16 %v2665
    %v3780 = vunpack.c.l.b16 %v2666
    %v3781 = vunpack.c.l.b16 %v2667
    %v3782 = vunpack.c.l.b16 %v2668
    %v3783 = vunpack.c.l.b16 %v2669
    %v3784 = vunpack.c.l.b16 %v2670
    %v3785 = vunpack.c.l.b16 %v2671
    %v3786 = vunpack.c.l.b16 %v2672
    %v3787 = vunpack.c.l.b16 %v2673
    %v3788 = vunpack.c.l.b16 %v2674
    %v3789 = vunpack.c.l.b16 %v2675
    %v3790 = vunpack.c.l.b16 %v2676
    %v3791 = vunpack.c.l.b16 %v2677
    %v3792 = vunpack.c.l.b16 %v2678
    %v3793 = vunpack.c.l.b16 %v2679
    %v3794 = vunpack.c.l.b16 %v2680
    %v3795 = vunpack.c.l.b16 %v2681
    %v3796 = vunpack.c.l.b16 %v2682
    %v3797 = vunpack.c.l.b16 %v2683
    %v3798 = vunpack.c.l.b16 %v2684
    %v3799 = vunpack.c.l.b16 %v2685
    %v3800 = vunpack.c.l.b16 %v2686
    %v3801 = vunpack.c.l.b16 %v2687
    %v3802 = vunpack.c.l.b16 %v2688
    %v3803 = vunpack.c.l.b16 %v2689
    %v3804 = vunpack.c.l.b16 %v2690
    %v3805 = vunpack.c.l.b16 %v2691
    %v3806 = vunpack.c.l.b16 %v2692
    %v3807 = vunpack.c.l.b16 %v2693
    %v3808 = vunpack.c.l.b16 %v2694
    %v3809 = vunpack.c.l.b16 %v2695
    %v3810 = vunpack.c.l.b16 %v2696
    %v3811 = vunpack.c.l.b16 %v2697
    %v3812 = vunpack.c.l.b16 %v2698
    %v3813 = vunpack.c.l.b16 %v2699
    %v3814 = vunpack.c.l.b16 %v2700
    %v3815 = vunpack.c.l.b16 %v2701
    %v3816 = vunpack.c.l.b16 %v2702
    %v3817 = vunpack.c.l.b16 %v2703
    %v3818 = vunpack.c.l.b16 %v2704
    %v3819 = vunpack.c.l.b16 %v2705
    %v3820 = vunpack.c.l.b16 %v2706
    %v3821 = vunpack.c.l.b16 %v2707
    %v3822 = vunpack.c.l.b16 %v2708
    %v3823 = vunpack.c.l.b16 %v2709
    %v3824 = vunpack.c.l.b16 %v2710
    %v3825 = vunpack.c.l.b16 %v2711
    %v3826 = vunpack.c.l.b16 %v2712
    %v3827 = vunpack.c.l.b16 %v2713
    %v3828 = vunpack.c.l.b16 %v2714
    %v3829 = vunpack.c.l.b16 %v2715
    %v3830 = vunpack.c.l.b16 %v2716
    %v3831 = vunpack.c.l.b16 %v2717
    %v3832 = vunpack.c.l.b16 %v2718
    %v3833 = vunpack.c.l.b16 %v2719
    %v3834 = vunpack.c.l.b16 %v2720
    %v3835 = vunpack.c.l.b16 %v2721
    %v3836 = vunpack.c.l.b16 %v2722
    %v3837 = vunpack.c.l.b16 %v2723
    %v3838 = vunpack.c.l.b16 %v2724
    %v3839 = vunpack.c.l.b16 %v2725
    %v3840 = vunpack.c.l.b16 %v2726
    %v3841 = vunpack.c.l.b16 %v2727
    %v3842 = vunpack.c.l.b16 %v2728
    %v3843 = vunpack.c.l.b16 %v2729
    %v3844 = vunpack.c.l.b16 %v2730
    %v3845 = vunpack.c.l.b16 %v2731
    %v3846 = vunpack.c.l.b16 %v2732
    %v3847 = vunpack.c.l.b16 %v2733
    %v3848 = vunpack.c.l.b16 %v2734
    %v3849 = vunpack.c.l.b16 %v2735
    %v3850 = vunpack.c.l.b16 %v2736
    %v3851 = vunpack.c.l.b16 %v2737
    %v3852 = vunpack.c.l.b16 %v2738
    %v3853 = vunpack.c.l.b16 %v2739
    %v3854 = vunpack.c.l.b16 %v2740
    %v3855 = vunpack.c.l.b16 %v2741
    %v3856 = vunpack.c.l.b16 %v2742
    %v3857 = vunpack.c.l.b16 %v2743
    %v3858 = vunpack.c.l.b16 %v2744
    %v3859 = vunpack.c.l.b16 %v2745
    %v3860 = vunpack.c.l.b16 %v2746
    %v3861 = vunpack.c.l.b16 %v2747
    %v3862 = vunpack.c.l.b16 %v2748
    %v3863 = vunpack.c.l.b16 %v2749
    %v3864 = vunpack.c.l.b16 %v2750
    %v3865 = vunpack.c.l.b16 %v2751
    %v3866 = vunpack.c.l.b16 %v2752
    %v3867 = vunpack.c.l.b16 %v2753
    %v3868 = vunpack.c.l.b16 %v2754
    %v3869 = vunpack.c.l.b16 %v2755
    %v3870 = vunpack.c.l.b16 %v2756
    %v3871 = vunpack.c.l.b16 %v2757
    %v3872 = vunpack.c.l.b16 %v2758
    %v3873 = vunpack.c.l.b16 %v2759
    %v3874 = vunpack.c.l.b16 %v2760
    %v3875 = vunpack.c.l.b16 %v2761
    %v3876 = vunpack.c.l.b16 %v2762
    %v3877 = vunpack.c.l.b16 %v2763
    %v3878 = vunpack.c.l.b16 %v2764
    %v3879 = vunpack.c.l.b16 %v2765
    %v3880 = vunpack.c.l.b16 %v2766
    %v3881 = vunpack.c.l.b16 %v2767
    %v3882 = vunpack.c.l.b16 %v2768
    %v3883 = vunpack.c.l.b16 %v2769
    %v3884 = vunpack.c.l.b16 %v2770
    %v3885 = vunpack.c.l.b16 %v2771
    %v3886 = vunpack.c.l.b16 %v2772
    %v3887 = vunpack.c.l.b16 %v2773
    %v3888 = vunpack.c.l.b16 %v2774
    %v3889 = vunpack.c.l.b16 %v2775
    %v3890 = vunpack.c.l.b16 %v2776
    %v3891 = vunpack.c.l.b16 %v2777
    %v3892 = vunpack.c.l.b16 %v2778
    %v3893 = vunpack.c.l.b16 %v2779
    %v3894 = vunpack.c.l.b16 %v2780
    %v3895 = vunpack.c.l.b16 %v2781
    %v3896 = vunpack.c.l.b16 %v2782
    %v3897 = vunpack.c.l.b16 %v2783
    %v3898 = vunpack.c.l.b16 %v2784
    %v3899 = vunpack.c.l.b16 %v2785
    %v3900 = vunpack.c.l.b16 %v2786
    %v3901 = vunpack.c.l.b16 %v2787
    %v3902 = vunpack.c.l.b16 %v2788
    %v3903 = vunpack.c.l.b16 %v2789
    %v3904 = vunpack.c.l.b16 %v2790
    %v3905 = vunpack.c.l.b16 %v2791
    %v3906 = vunpack.c.l.b16 %v2792
    %v3907 = vunpack.c.l.b16 %v2793
    %v3908 = vunpack.c.l.b16 %v2794
    %v3909 = vunpack.c.l.b16 %v2795
    %v3910 = vunpack.c.l.b16 %v2796
    %v3911 = vunpack.c.l.b16 %v2797
    %v3912 = vunpack.c.l.b16 %v2798
    %v3913 = vunpack.c.l.b16 %v2799
    %v3914 = vunpack.c.l.b16 %v2800
    %v3915 = vunpack.c.l.b16 %v2801
    %v3916 = vunpack.c.l.b16 %v2802
    %v3917 = vunpack.c.l.b16 %v2803
    %v3918 = vunpack.c.l.b16 %v2804
    %v3919 = vunpack.c.l.b16 %v2805
    %v3920 = vunpack.c.l.b16 %v2806
    %v3921 = vunpack.c.l.b16 %v2807
    %v3922 = vunpack.c.l.b16 %v2808
    %v3923 = vunpack.c.l.b16 %v2809
    %v3924 = vunpack.c.l.b16 %v2810
    %v3925 = vunpack.c.l.b16 %v2811
    %v3926 = vunpack.c.l.b16 %v2812
    %v3927 = vunpack.c.l.b16 %v2813
    %v3928 = vunpack.c.l.b16 %v2814
    %v3929 = vunpack.c.l.b16 %v2815
    %v3930 = vunpack.c.l.b16 %v2816
    %v3931 = vunpack.c.l.b16 %v2817
    %v3932 = vunpack.c.l.b16 %v2818
    %v3933 = vunpack.c.l.b16 %v2819
    %v3934 = vunpack.c.l.b16 %v2820
    %v3935 = vunpack.c.l.b16 %v2821
    %v3936 = vunpack.c.l.b16 %v2822
    %v3937 = vunpack.c.l.b16 %v2823
    %v3938 = vunpack.c.l.b16 %v2824
    %v3939 = vunpack.c.l.b16 %v2825
    %v3940 = vunpack.c.l.b16 %v2826
    %v3941 = vunpack.c.l.b16 %v2827
    %v3942 = vunpack.c.l.b16 %v2828
    %v3943 = vunpack.c.l.b16 %v2829
    %v3944 = vunpack.c.l.b16 %v2830
    %v3945 = vunpack.c.l.b16 %v2831
    %v3946 = vunpack.c.l.b16 %v2832
    %v3947 = vunpack.c.l.b16 %v2833
    %v3948 = vunpack.c.l.b16 %v2834
    %v3949 = vunpack.c.l.b16 %v2835
    %v3950 = vunpack.c.l.b16 %v2836
    %v3951 = vunpack.c.l.b16 %v2837
    %v3952 = vunpack.c.l.b16 %v2838
    %v3953 = vunpack.c.l.b16 %v2839
    %v3954 = vunpack.c.l.b16 %v2840
    %v3955 = vunpack.c.l.b16 %v2841
    %v3956 = vunpack.c.l.b16 %v2842
    %v3957 = vunpack.c.l.b16 %v2843
    %v3958 = vunpack.c.l.b16 %v2844
    %v3959 = vunpack.c.l.b16 %v2845
    %v3960 = vunpack.c.l.b16 %v2846
    %v3961 = vunpack.c.l.b16 %v2847
    %v3962 = vunpack.c.l.b16 %v2848
    %v3963 = vunpack.c.l.b16 %v2849
    %v3964 = vunpack.c.l.b16 %v2850
    %v3965 = vunpack.c.l.b16 %v2851
    %v3966 = vunpack.c.l.b16 %v2852
    %v3967 = vunpack.c.l.b16 %v2853
    %v3968 = vunpack.c.l.b16 %v2854
    %v3969 = vunpack.c.l.b16 %v2855
    %v3970 = vunpack.c.l.b16 %v2856
    %v3971 = vunpack.c.l.b16 %v2857
    %v3972 = vunpack.c.l.b16 %v2858
    %v3973 = vunpack.c.l.b16 %v2859
    %v3974 = vunpack.c.l.b16 %v2860
    %v3975 = vunpack.c.l.b16 %v2861
    %v3976 = vunpack.c.l.b16 %v2862
    %v3977 = vunpack.c.l.b16 %v2863
    %v3978 = vunpack.c.l.b16 %v2864
    %v3979 = vunpack.c.l.b16 %v2865
    %v3980 = vunpack.c.l.b16 %v2866
    %v3981 = vunpack.c.l.b16 %v2867
    %v3982 = vunpack.c.l.b16 %v2868
    %v3983 = vunpack.c.l.b16 %v2869
    %v3984 = vunpack.c.l.b16 %v2870
    %v3985 = vunpack.c.l.b16 %v2871
    %v3986 = vunpack.c.l.b16 %v2872
    %v3987 = vunpack.c.l.b16 %v2873
    %v3988 = vunpack.c.l.b16 %v2874
    %v3989 = vunpack.c.l.b16 %v2875
    %v3990 = vunpack.c.l.b16 %v2876
    %v3991 = vunpack.c.l.b16 %v2877
    %v3992 = vunpack.c.l.b16 %v2878
    %v3993 = vunpack.c.l.b16 %v2879
    %v3994 = vunpack.c.l.b16 %v2880
    %v3995 = vunpack.c.l.b16 %v2881
    %v3996 = vunpack.c.l.b16 %v2882
    %v3997 = vunpack.c.l.b16 %v2883
    %v3998 = vunpack.c.l.b16 %v2884
    %v3999 = vunpack.c.l.b16 %v2885
    %v4000 = vunpack.c.l.b16 %v2886
    %v4001 = vunpack.c.l.b16 %v2887
    %v4002 = vunpack.c.l.b16 %v2888
    %v4003 = vunpack.c.l.b16 %v2889
    %v4004 = vunpack.c.l.b16 %v2890
    %v4005 = vunpack.c.l.b16 %v2891
    %v4006 = vunpack.c.l.b16 %v2892
    %v4007 = vunpack.c.l.b16 %v2893
    %v4008 = vunpack.c.l.b16 %v2894
    %v4009 = vunpack.c.l.b16 %v2895
    %v4010 = vunpack.c.l.b16 %v2896
    %v4011 = vunpack.c.l.b16 %v2897
    %v4012 = vunpack.c.l.b16 %v2898
    %v4013 = vunpack.c.l.b16 %v2899
    %v4014 = vunpack.c.l.b16 %v2900
    %v4015 = vunpack.c.l.b16 %v2901
    %v4016 = vunpack.c.l.b16 %v2902
    %v4017 = vunpack.c.l.b16 %v2903
    %v4018 = vunpack.c.l.b16 %v2904
    %v4019 = vunpack.c.l.b16 %v2905
    %v4020 = vunpack.c.l.b16 %v2906
    %v4021 = vunpack.c.l.b16 %v2907
    %v4022 = vunpack.c.l.b16 %v2908
    %v4023 = vunpack.c.l.b16 %v2909
    %v4024 = vunpack.c.l.b16 %v2910
    %v4025 = vunpack.c.l.b16 %v2911
    %v4026 = vunpack.c.l.b16 %v2912
    %v4027 = vunpack.c.l.b16 %v2913
    %v4028 = vunpack.c.l.b16 %v2914
    %v4029 = vunpack.c.l.b16 %v2915
    %v4030 = vunpack.c.l.b16 %v2916
    %v4031 = vunpack.c.l.b16 %v2917
    %v4032 = vunpack.c.l.b16 %v2918
    %v4033 = vunpack.c.l.b16 %v2919
    %v4034 = vunpack.c.l.b16 %v2920
    %v4035 = vunpack.c.l.b16 %v2921
    %v4036 = vunpack.c.l.b16 %v2922
    %v4037 = vunpack.c.l.b16 %v2923
    %v4038 = vunpack.c.l.b16 %v2924
    %v4039 = vunpack.c.l.b16 %v2925
    %v4040 = vunpack.c.l.b16 %v2926
    %v4041 = vunpack.c.l.b16 %v2927
    %v4042 = vunpack.c.l.b16 %v2928
    %v4043 = vunpack.c.l.b16 %v2929
    %v4044 = vunpack.c.l.b16 %v2930
    %v4045 = vunpack.c.l.b16 %v2931
    %v4046 = vunpack.c.l.b16 %v2932
    %v4047 = vunpack.c.l.b16 %v2933
    %v4048 = vunpack.c.l.b16 %v2934
    %v4049 = vunpack.c.l.b16 %v2935
    %v4050 = vunpack.c.l.b16 %v2936
    %v4051 = vunpack.c.l.b16 %v2937
    %v4052 = vunpack.c.l.b16 %v2938
    %v4053 = vunpack.c.l.b16 %v2939
    %v4054 = vunpack.c.l.b16 %v2940
    %v4055 = vunpack.c.l.b16 %v2941
    %v4056 = vunpack.c.l.b16 %v2942
    %v4057 = vunpack.c.l.b16 %v2943
    %v4058 = vunpack.c.l.b16 %v2944
    %v4059 = vunpack.c.l.b16 %v2945
    %v4060 = vunpack.c.l.b16 %v2946
    %v4061 = vunpack.c.l.b16 %v2947
    %v4062 = vunpack.c.l.b16 %v2948
    %v4063 = vunpack.c.l.b16 %v2949
    %v4064 = vunpack.c.l.b16 %v2950
    %v4065 = vunpack.c.l.b16 %v2951
    %v4066 = vunpack.c.l.b16 %v2952
    %v4067 = vunpack.c.l.b16 %v2953
    %v4068 = vunpack.c.l.b16 %v2954
    %v4069 = vunpack.c.l.b16 %v2955
    %v4070 = vunpack.c.l.b16 %v2956
    %v4071 = vunpack.c.l.b16 %v2957
    %v4072 = vunpack.c.l.b16 %v2958
    %v4073 = vunpack.c.l.b16 %v2959
    %v4074 = vunpack.c.l.b16 %v2960
    %v4075 = vunpack.c.l.b16 %v2961
    %v4076 = vunpack.c.l.b16 %v2962
    %v4077 = vunpack.c.l.b16 %v2963
    %v4078 = vunpack.c.l.b16 %v2964
    %v4079 = vunpack.c.l.b16 %v2965
    %v4080 = vunpack.c.l.b16 %v2966
    %v4081 = vunpack.c.l.b16 %v2967
    %v4082 = vunpack.c.l.b16 %v2968
    %v4083 = vunpack.c.l.b16 %v2969
    %v4084 = vunpack.c.l.b16 %v2970
    %v4085 = vunpack.c.l.b16 %v2971
    %v4086 = vunpack.c.l.b16 %v2972
    %v4087 = vunpack.c.l.b16 %v2973
    %v4088 = vunpack.c.l.b16 %v2974
    %v4089 = vunpack.c.l.b16 %v2975
    %v4090 = vunpack.c.l.b16 %v2976
    %v4091 = vunpack.c.l.b16 %v2977
    %v4092 = vunpack.c.l.b16 %v2978
    %v4093 = vunpack.c.l.b16 %v2979
    %v4094 = vunpack.c.l.b16 %v2980
    %v4095 = vunpack.c.l.b16 %v2981
    %v4096 = vunpack.c.l.b16 %v2982
    %v4097 = vunpack.c.l.b16 %v2983
    %v4098 = vunpack.c.l.b16 %v2984
    %v4099 = vunpack.c.l.b16 %v2985
    %v4100 = vunpack.c.l.b16 %v2986
    %v4101 = vunpack.c.l.b16 %v2987
    %v4102 = vunpack.c.l.b16 %v2988
    %v4103 = vunpack.c.l.b16 %v2989
    %v4104 = vunpack.c.l.b16 %v2990
    %v4105 = vunpack.c.l.b16 %v2991
    %v4106 = vunpack.c.l.b16 %v2992
    %v4107 = vunpack.c.l.b16 %v2993
    %v4108 = vunpack.c.l.b16 %v2994
    %v4109 = vunpack.c.l.b16 %v2995
    %v4110 = vunpack.c.l.b16 %v2996
    %v4111 = vunpack.c.l.b16 %v2997
    %v4112 = vunpack.c.l.b16 %v2998
    %v4113 = vunpack.c.l.b16 %v2999
    %v4114 = vunpack.c.l.b16 %v3000
    %v4115 = vunpack.c.l.b16 %v3001
    %v4116 = vunpack.c.l.b16 %v3002
    %v4117 = vunpack.c.l.b16 %v3003
    %v4118 = vunpack.c.l.b16 %v3004
    %v4119 = vunpack.c.l.b16 %v3005
    %v4120 = vunpack.c.l.b16 %v3006
    %v4121 = vunpack.c.l.b16 %v3007
    %v4122 = vunpack.c.l.b16 %v3008
    %v4123 = vunpack.c.l.b16 %v3009
    %v4124 = vunpack.c.l.b16 %v3010
    %v4125 = vunpack.c.l.b16 %v3011
    %v4126 = vunpack.c.l.b16 %v3012
    %v4127 = vunpack.c.l.b16 %v3013
    %v4128 = vunpack.c.l.b16 %v3014
    %v4129 = vunpack.c.l.b16 %v3015
    %v4130 = vunpack.c.l.b16 %v3016
    %v4131 = vunpack.c.l.b16 %v3017
    %v4132 = vunpack.c.l.b16 %v3018
    %v4133 = vunpack.c.l.b16 %v3019
    %v4134 = vunpack.c.l.b16 %v3020
    %v4135 = vunpack.c.l.b16 %v3021
    %v4136 = vunpack.c.l.b16 %v3022
    %v4137 = vunpack.c.l.b16 %v3023
    %v4138 = vunpack.c.l.b16 %v3024
    %v4139 = vunpack.c.l.b16 %v3025
    %v4140 = vunpack.c.l.b16 %v3026
    %v4141 = vunpack.c.l.b16 %v3027
    %v4142 = vunpack.c.l.b16 %v3028
    %v4143 = vunpack.c.l.b16 %v3029
    %v4144 = vunpack.c.l.b16 %v3030
    %v4145 = vunpack.c.l.b16 %v3031
    %v4146 = vunpack.c.l.b16 %v3032
    %v4147 = vunpack.c.l.b16 %v3033
    %v4148 = vunpack.c.l.b16 %v3034
    %v4149 = vunpack.c.l.b16 %v3035
    %v4150 = vunpack.c.l.b16 %v3036
    %v4151 = vunpack.c.l.b16 %v3037
    %v4152 = vunpack.c.l.b16 %v3038
    %v4153 = vunpack.c.l.b16 %v3039
    %v4154 = vunpack.c.l.b16 %v3040
    %v4155 = vunpack.c.l.b16 %v3041
    %v4156 = vunpack.c.l.b16 %v3042
    %v4157 = vunpack.c.l.b16 %v3043
    %v4158 = vunpack.c.l.b16 %v3044
    %v4159 = vunpack.c.l.b16 %v3045
    %v4160 = vunpack.c.l.b16 %v3046
    %v4161 = vunpack.c.l.b16 %v3047
    %v4162 = vunpack.c.l.b16 %v3048
    %v4163 = vunpack.c.l.b16 %v3049
    %v4164 = vunpack.c.l.b16 %v3050
    %v4165 = vunpack.c.l.b16 %v3051
    %v4166 = vunpack.c.l.b16 %v3052
    %v4167 = vunpack.c.l.b16 %v3053
    %v4168 = vunpack.c.l.b16 %v3054
    %v4169 = vunpack.c.l.b16 %v3055
    %v4170 = vunpack.c.l.b16 %v3056
    %v4171 = vunpack.c.l.b16 %v3057
    %v4172 = vunpack.c.l.b16 %v3058
    %v4173 = vunpack.c.l.b16 %v3059
    %v4174 = vunpack.c.l.b16 %v3060
    %v4175 = vunpack.c.l.b16 %v3061
    %v4176 = vunpack.c.l.b16 %v3062
    %v4177 = vunpack.c.l.b16 %v3063
    %v4178 = vunpack.c.l.b16 %v3064
    %v4179 = vunpack.c.l.b16 %v3065
    %v4180 = vunpack.c.l.b16 %v3066
    %v4181 = vunpack.c.l.b16 %v3067
    %v4182 = vunpack.c.l.b16 %v3068
    %v4183 = vunpack.c.l.b16 %v3069
    %v4184 = vunpack.c.l.b16 %v3070
    %v4185 = vunpack.c.l.b16 %v3071
    %v4186 = vunpack.c.l.b16 %v3072
    %v4187 = vunpack.c.l.b16 %v3073
    %v4188 = vunpack.c.l.b16 %v3074
    %v4189 = vunpack.c.l.b16 %v3075
    %v4190 = vunpack.c.l.b16 %v3076
    %v4191 = vunpack.c.l.b16 %v3077
    %v4192 = vunpack.c.l.b16 %v3078
    %v4193 = vunpack.c.l.b16 %v3079
    %v4194 = vunpack.c.l.b16 %v3080
    %v4195 = vunpack.c.l.b16 %v3081
    %v4196 = vunpack.c.l.b16 %v3082
    %v4197 = vunpack.c.l.b16 %v3083
    %v4198 = vunpack.c.l.b16 %v3084
    %v4199 = vunpack.c.l.b16 %v3085
    %v4200 = vunpack.c.l.b16 %v3086
    %v4201 = vunpack.c.l.b16 %v3087
    %v4202 = vunpack.c.l.b16 %v3088
    %v4203 = vunpack.c.l.b16 %v3089
    %v4204 = vunpack.c.l.b16 %v3090
    %v4205 = vunpack.c.l.b16 %v3091
    %v4206 = vpack.c.b16 %v3727, %v3726
    %v4207 = vpack.c.b16 %v3729, %v3728
    %v4208 = vpack.c.b16 %v3731, %v3730
    %v4209 = vpack.c.b16 %v3733, %v3732
    %v4210 = vpack.c.b16 %v3735, %v3734
    %v4211 = vpack.c.b16 %v3737, %v3736
    %v4212 = vpack.c.b16 %v3739, %v3738
    %v4213 = vpack.c.b16 %v3741, %v3740
    %v4214 = vpack.c.b16 %v3743, %v3742
    %v4215 = vpack.c.b16 %v3745, %v3744
    %v4216 = vpack.c.b16 %v3747, %v3746
    %v4217 = vpack.c.b16 %v3749, %v3748
    %v4218 = vpack.c.b16 %v3751, %v3750
    %v4219 = vpack.c.b16 %v3753, %v3752
    %v4220 = vpack.c.b16 %v3755, %v3754
    %v4221 = vpack.c.b16 %v3757, %v3756
    %v4222 = vpack.c.b16 %v3759, %v3758
    %v4223 = vpack.c.b16 %v3761, %v3760
    %v4224 = vpack.c.b16 %v3763, %v3762
    %v4225 = vpack.c.b16 %v3765, %v3764
    %v4226 = vpack.c.b16 %v3767, %v3766
    %v4227 = vpack.c.b16 %v3769, %v3768
    %v4228 = vpack.c.b16 %v3771, %v3770
    %v4229 = vpack.c.b16 %v3773, %v3772
    %v4230 = vpack.c.b16 %v3775, %v3774
    %v4231 = vpack.c.b16 %v3777, %v3776
    %v4232 = vpack.c.b16 %v3779, %v3778
    %v4233 = vpack.c.b16 %v3781, %v3780
    %v4234 = vpack.c.b16 %v3783, %v3782
    %v4235 = vpack.c.b16 %v3785, %v3784
    %v4236 = vpack.c.b16 %v3787, %v3786
    %v4237 = vpack.c.b16 %v3789, %v3788
    %v4238 = vpack.c.b16 %v3791, %v3790
    %v4239 = vpack.c.b16 %v3793, %v3792
    %v4240 = vpack.c.b16 %v3795, %v3794
    %v4241 = vpack.c.b16 %v3797, %v3796
    %v4242 = vpack.c.b16 %v3799, %v3798
    %v4243 = vpack.c.b16 %v3801, %v3800
    %v4244 = vpack.c.b16 %v3803, %v3802
    %v4245 = vpack.c.b16 %v3805, %v3804
    %v4246 = vpack.c.b16 %v3807, %v3806
    %v4247 = vpack.c.b16 %v3809, %v3808
    %v4248 = vpack.c.b16 %v3811, %v3810
    %v4249 = vpack.c.b16 %v3813, %v3812
    %v4250 = vpack.c.b16 %v3815, %v3814
    %v4251 = vpack.c.b16 %v3817, %v3816
    %v4252 = vpack.c.b16 %v3819, %v3818
    %v4253 = vpack.c.b16 %v3821, %v3820
    %v4254 = vpack.c.b16 %v3823, %v3822
    %v4255 = vpack.c.b16 %v3825, %v3824
    %v4256 = vpack.c.b16 %v3827, %v3826
    %v4257 = vpack.c.b16 %v3829, %v3828
    %v4258 = vpack.c.b16 %v3831, %v3830
    %v4259 = vpack.c.b16 %v3833, %v3832
    %v4260 = vpack.c.b16 %v3835, %v3834
    %v4261 = vpack.c.b16 %v3837, %v3836
    %v4262 = vpack.c.b16 %v3839, %v3838
    %v4263 = vpack.c.b16 %v3841, %v3840
    %v4264 = vpack.c.b16 %v3843, %v3842
    %v4265 = vpack.c.b16 %v3845, %v3844
    %v4266 = vpack.c.b16 %v3847, %v3846
    %v4267 = vpack.c.b16 %v3849, %v3848
    %v4268 = vpack.c.b16 %v3851, %v3850
    %v4269 = vpack.c.b16 %v3853, %v3852
    %v4270 = vpack.c.b16 %v3855, %v3854
    %v4271 = vpack.c.b16 %v3857, %v3856
    %v4272 = vpack.c.b16 %v3859, %v3858
    %v4273 = vpack.c.b16 %v3861, %v3860
    %v4274 = vpack.c.b16 %v3863, %v3862
    %v4275 = vpack.c.b16 %v3865, %v3864
    %v4276 = vpack.c.b16 %v3867, %v3866
    %v4277 = vpack.c.b16 %v3869, %v3868
    %v4278 = vpack.c.b16 %v3871, %v3870
    %v4279 = vpack.c.b16 %v3873, %v3872
    %v4280 = vpack.c.b16 %v3875, %v3874
    %v4281 = vpack.c.b16 %v3877, %v3876
    %v4282 = vpack.c.b16 %v3879, %v3878
    %v4283 = vpack.c.b16 %v3881, %v3880
    %v4284 = vpack.c.b16 %v3883, %v3882
    %v4285 = vpack.c.b16 %v3885, %v3884
    %v4286 = vpack.c.b16 %v3887, %v3886
    %v4287 = vpack.c.b16 %v3889, %v3888
    %v4288 = vpack.c.b16 %v3891, %v3890
    %v4289 = vpack.c.b16 %v3893, %v3892
    %v4290 = vpack.c.b16 %v3895, %v3894
    %v4291 = vpack.c.b16 %v3897, %v3896
    %v4292 = vpack.c.b16 %v3899, %v3898
    %v4293 = vpack.c.b16 %v3901, %v3900
    %v4294 = vpack.c.b16 %v3903, %v3902
    %v4295 = vpack.c.b16 %v3905, %v3904
    %v4296 = vpack.c.b16 %v3907, %v3906
    %v4297 = vpack.c.b16 %v3909, %v3908
    %v4298 = vpack.c.b16 %v3911, %v3910
    %v4299 = vpack.c.b16 %v3913, %v3912
    %v4300 = vpack.c.b16 %v3915, %v3914
    %v4301 = vpack.c.b16 %v3917, %v3916
    %v4302 = vpack.c.b16 %v3919, %v3918
    %v4303 = vpack.c.b16 %v3921, %v3920
    %v4304 = vpack.c.b16 %v3923, %v3922
    %v4305 = vpack.c.b16 %v3925, %v3924
    %v4306 = vpack.c.b16 %v3927, %v3926
    %v4307 = vpack.c.b16 %v3929, %v3928
    %v4308 = vpack.c.b16 %v3931, %v3930
    %v4309 = vpack.c.b16 %v3933, %v3932
    %v4310 = vpack.c.b16 %v3935, %v3934
    %v4311 = vpack.c.b16 %v3937, %v3936
    %v4312 = vpack.c.b16 %v3939, %v3938
    %v4313 = vpack.c.b16 %v3941, %v3940
    %v4314 = vpack.c.b16 %v3943, %v3942
    %v4315 = vpack.c.b16 %v3945, %v3944
    %v4316 = vpack.c.b16 %v3947, %v3946
    %v4317 = vpack.c.b16 %v3949, %v3948
    %v4318 = vpack.c.b16 %v3951, %v3950
    %v4319 = vpack.c.b16 %v3953, %v3952
    %v4320 = vpack.c.b16 %v3955, %v3954
    %v4321 = vpack.c.b16 %v3957, %v3956
    %v4322 = vpack.c.b16 %v3959, %v3958
    %v4323 = vpack.c.b16 %v3961, %v3960
    %v4324 = vpack.c.b16 %v3963, %v3962
    %v4325 = vpack.c.b16 %v3965, %v3964
    %v4326 = vpack.c.b16 %v3967, %v3966
    %v4327 = vpack.c.b16 %v3969, %v3968
    %v4328 = vpack.c.b16 %v3971, %v3970
    %v4329 = vpack.c.b16 %v3973, %v3972
    %v4330 = vpack.c.b16 %v3975, %v3974
    %v4331 = vpack.c.b16 %v3977, %v3976
    %v4332 = vpack.c.b16 %v3979, %v3978
    %v4333 = vpack.c.b16 %v3981, %v3980
    %v4334 = vpack.c.b16 %v3983, %v3982
    %v4335 = vpack.c.b16 %v3985, %v3984
    %v4336 = vpack.c.b16 %v3987, %v3986
    %v4337 = vpack.c.b16 %v3989, %v3988
    %v4338 = vpack.c.b16 %v3991, %v3990
    %v4339 = vpack.c.b16 %v3993, %v3992
    %v4340 = vpack.c.b16 %v3995, %v3994
    %v4341 = vpack.c.b16 %v3997, %v3996
    %v4342 = vpack.c.b16 %v3999, %v3998
    %v4343 = vpack.c.b16 %v4001, %v4000
    %v4344 = vpack.c.b16 %v4003, %v4002
    %v4345 = vpack.c.b16 %v4005, %v4004
    %v4346 = vpack.c.b16 %v4007, %v4006
    %v4347 = vpack.c.b16 %v4009, %v4008
    %v4348 = vpack.c.b16 %v4011, %v4010
    %v4349 = vpack.c.b16 %v4013, %v4012
    %v4350 = vpack.c.b16 %v4015, %v4014
    %v4351 = vpack.c.b16 %v4017, %v4016
    %v4352 = vpack.c.b16 %v4019, %v4018
    %v4353 = vpack.c.b16 %v4021, %v4020
    %v4354 = vpack.c.b16 %v4023, %v4022
    %v4355 = vpack.c.b16 %v4025, %v4024
    %v4356 = vpack.c.b16 %v4027, %v4026
    %v4357 = vpack.c.b16 %v4029, %v4028
    %v4358 = vpack.c.b16 %v4031, %v4030
    %v4359 = vpack.c.b16 %v4033, %v4032
    %v4360 = vpack.c.b16 %v4035, %v4034
    %v4361 = vpack.c.b16 %v4037, %v4036
    %v4362 = vpack.c.b16 %v4039, %v4038
    %v4363 = vpack.c.b16 %v4041, %v4040
    %v4364 = vpack.c.b16 %v4043, %v4042
    %v4365 = vpack.c.b16 %v4045, %v4044
    %v4366 = vpack.c.b16 %v4047, %v4046
    %v4367 = vpack.c.b16 %v4049, %v4048
    %v4368 = vpack.c.b16 %v4051, %v4050
    %v4369 = vpack.c.b16 %v4053, %v4052
    %v4370 = vpack.c.b16 %v4055, %v4054
    %v4371 = vpack.c.b16 %v4057, %v4056
    %v4372 = vpack.c.b16 %v4059, %v4058
    %v4373 = vpack.c.b16 %v4061, %v4060
    %v4374 = vpack.c.b16 %v4063, %v4062
    %v4375 = vpack.c.b16 %v4065, %v4064
    %v4376 = vpack.c.b16 %v4067, %v4066
    %v4377 = vpack.c.b16 %v4069, %v4068
    %v4378 = vpack.c.b16 %v4071, %v4070
    %v4379 = vpack.c.b16 %v4073, %v4072
    %v4380 = vpack.c.b16 %v4075, %v4074
    %v4381 = vpack.c.b16 %v4077, %v4076
    %v4382 = vpack.c.b16 %v4079, %v4078
    %v4383 = vpack.c.b16 %v4081, %v4080
    %v4384 = vpack.c.b16 %v4083, %v4082
    %v4385 = vpack.c.b16 %v4085, %v4084
    %v4386 = vpack.c.b16 %v4087, %v4086
    %v4387 = vpack.c.b16 %v4089, %v4088
    %v4388 = vpack.c.b16 %v4091, %v4090
    %v4389 = vpack.c.b16 %v4093, %v4092
    %v4390 = vpack.c.b16 %v4095, %v4094
    %v4391 = vpack.c.b16 %v4097, %v4096
    %v4392 = vpack.c.b16 %v4099, %v4098
    %v4393 = vpack.c.b16 %v4101, %v4100
    %v4394 = vpack.c.b16 %v4103, %v4102
    %v4395 = vpack.c.b16 %v4105, %v4104
    %v4396 = vpack.c.b16 %v4107, %v4106
    %v4397 = vpack.c.b16 %v4109, %v4108
    %v4398 = vpack.c.b16 %v4111, %v4110
    %v4399 = vpack.c.b16 %v4113, %v4112
    %v4400 = vpack.c.b16 %v4115, %v4114
    %v4401 = vpack.c.b16 %v4117, %v4116
    %v4402 = vpack.c.b16 %v4119, %v4118
    %v4403 = vpack.c.b16 %v4121, %v4120
    %v4404 = vpack.c.b16 %v4123, %v4122
    %v4405 = vpack.c.b16 %v4125, %v4124
    %v4406 = vpack.c.b16 %v4127, %v4126
    %v4407 = vpack.c.b16 %v4129, %v4128
    %v4408 = vpack.c.b16 %v4131, %v4130
    %v4409 = vpack.c.b16 %v4133, %v4132
    %v4410 = vpack.c.b16 %v4135, %v4134
    %v4411 = vpack.c.b16 %v4137, %v4136
    %v4412 = vpack.c.b16 %v4139, %v4138
    %v4413 = vpack.c.b16 %v4141, %v4140
    %v4414 = vpack.c.b16 %v4143, %v4142
    %v4415 = vpack.c.b16 %v4145, %v4144
    %v4416 = vpack.c.b16 %v4147, %v4146
    %v4417 = vpack.c.b16 %v4149, %v4148
    %v4418 = vpack.c.b16 %v4151, %v4150
    %v4419 = vpack.c.b16 %v4153, %v4152
    %v4420 = vpack.c.b16 %v4155, %v4154
    %v4421 = vpack.c.b16 %v4157, %v4156
    %v4422 = vpack.c.b16 %v4159, %v4158
    %v4423 = vpack.c.b16 %v4161, %v4160
    %v4424 = vpack.c.b16 %v4163, %v4162
    %v4425 = vpack.c.b16 %v4165, %v4164
    %v4426 = vpack.c.b16 %v4167, %v4166
    %v4427 = vpack.c.b16 %v4169, %v4168
    %v4428 = vpack.c.b16 %v4171, %v4170
    %v4429 = vpack.c.b16 %v4173, %v4172
    %v4430 = vpack.c.b16 %v4175, %v4174
    %v4431 = vpack.c.b16 %v4177, %v4176
    %v4432 = vpack.c.b16 %v4179, %v4178
    %v4433 = vpack.c.b16 %v4181, %v4180
    %v4434 = vpack.c.b16 %v4183, %v4182
    %v4435 = vpack.c.b16 %v4185, %v4184
    %v4436 = vpack.c.b16 %v4187, %v4186
    %v4437 = vpack.c.b16 %v4189, %v4188
    %v4438 = vpack.c.b16 %v4191, %v4190
    %v4439 = vpack.c.b16 %v4193, %v4192
    %v4440 = vpack.c.b16 %v4195, %v4194
    %v4441 = vpack.c.b16 %v4197, %v4196
    %v4442 = vpack.c.b16 %v4199, %v4198
    %v4443 = vpack.c.b16 %v4201, %v4200
    %v4444 = vpack.c.b16 %v4203, %v4202
    %v4445 = vpack.c.b16 %v4205, %v4204
    %4686 = vmatpush.bf16.msra.mxu0 %v4213
    %4687 = vmatpush.bf16.msra.mxu0 %v4212
    %4688 = vmatpush.bf16.msra.mxu0 %v4211
    %4689 = vmatpush.bf16.msra.mxu0 %v4210
    %4690 = vmatpush.bf16.msra.mxu0 %v4209
    %4691 = vmatpush.bf16.msra.mxu0 %v4208
    %4692 = vmatpush.bf16.msra.mxu0 %v4207
    %4693 = vmatpush.bf16.msra.mxu0 %v4206
    %4694 = vmatmul.bf16.gmra.mxu0 %v3186
    %v4695 = vpop.f32.mrf.mxu0
    %v4696 = vadd.f32 %v3094, %v4695
    %v4697 = vpop.f32.mrf.mxu0
    %v4698 = vadd.f32 %v3094, %v4697
    %4699 = vdwg.mxu0
    %4700 = vmatpush.bf16.msra.mxu0 %v4221
    %4701 = vmatpush.bf16.msra.mxu0 %v4220
    %4702 = vmatpush.bf16.msra.mxu0 %v4219
    %4703 = vmatpush.bf16.msra.mxu0 %v4218
    %4704 = vmatpush.bf16.msra.mxu0 %v4217
    %4705 = vmatpush.bf16.msra.mxu0 %v4216
    %4706 = vmatpush.bf16.msra.mxu0 %v4215
    %4707 = vmatpush.bf16.msra.mxu0 %v4214
    %4708 = vmatmul.bf16.gmra.mxu0 %v3187
    %v4709 = vpop.f32.mrf.mxu0
    %v4710 = vadd.f32 %v4696, %v4709
    %v4711 = vpop.f32.mrf.mxu0
    %v4712 = vadd.f32 %v4698, %v4711
    %4713 = vdwg.mxu0
    %4714 = vmatpush.bf16.msra.mxu0 %v4229
    %4715 = vmatpush.bf16.msra.mxu0 %v4228
    %4716 = vmatpush.bf16.msra.mxu0 %v4227
    %4717 = vmatpush.bf16.msra.mxu0 %v4226
    %4718 = vmatpush.bf16.msra.mxu0 %v4225
    %4719 = vmatpush.bf16.msra.mxu0 %v4224
    %4720 = vmatpush.bf16.msra.mxu0 %v4223
    %4721 = vmatpush.bf16.msra.mxu0 %v4222
    %4722 = vmatmul.bf16.gmra.mxu0 %v3188
    %v4723 = vpop.f32.mrf.mxu0
    %v4724 = vadd.f32 %v4710, %v4723
    %v4725 = vpop.f32.mrf.mxu0
    %v4726 = vadd.f32 %v4712, %v4725
    %4727 = vdwg.mxu0
    %4728 = vmatpush.bf16.msra.mxu0 %v4237
    %4729 = vmatpush.bf16.msra.mxu0 %v4236
    %4730 = vmatpush.bf16.msra.mxu0 %v4235
    %4731 = vmatpush.bf16.msra.mxu0 %v4234
    %4732 = vmatpush.bf16.msra.mxu0 %v4233
    %4733 = vmatpush.bf16.msra.mxu0 %v4232
    %4734 = vmatpush.bf16.msra.mxu0 %v4231
    %4735 = vmatpush.bf16.msra.mxu0 %v4230
    %4736 = vmatmul.bf16.gmra.mxu0 %v3189
    %v4737 = vpop.f32.mrf.mxu0
    %v4738 = vadd.f32 %v4724, %v4737
    %v4739 = vpop.f32.mrf.mxu0
    %v4740 = vadd.f32 %v4726, %v4739
    %4741 = vdwg.mxu0
    %4742 = vmatpush.bf16.msra.mxu0 %v4245
    %4743 = vmatpush.bf16.msra.mxu0 %v4244
    %4744 = vmatpush.bf16.msra.mxu0 %v4243
    %4745 = vmatpush.bf16.msra.mxu0 %v4242
    %4746 = vmatpush.bf16.msra.mxu0 %v4241
    %4747 = vmatpush.bf16.msra.mxu0 %v4240
    %4748 = vmatpush.bf16.msra.mxu0 %v4239
    %4749 = vmatpush.bf16.msra.mxu0 %v4238
    %4750 = vmatmul.bf16.gmra.mxu0 %v3190
    %v4751 = vpop.f32.mrf.mxu0
    %v4752 = vadd.f32 %v4738, %v4751
    %v4753 = vpop.f32.mrf.mxu0
    %v4754 = vadd.f32 %v4740, %v4753
    %4755 = vdwg.mxu0
    %4756 = vmatpush.bf16.msra.mxu0 %v4253
    %4757 = vmatpush.bf16.msra.mxu0 %v4252
    %4758 = vmatpush.bf16.msra.mxu0 %v4251
    %4759 = vmatpush.bf16.msra.mxu0 %v4250
    %4760 = vmatpush.bf16.msra.mxu0 %v4249
    %4761 = vmatpush.bf16.msra.mxu0 %v4248
    %4762 = vmatpush.bf16.msra.mxu0 %v4247
    %4763 = vmatpush.bf16.msra.mxu0 %v4246
    %4764 = vmatmul.bf16.gmra.mxu0 %v3191
    %v4765 = vpop.f32.mrf.mxu0
    %v4766 = vadd.f32 %v4752, %v4765
    %v4767 = vpop.f32.mrf.mxu0
    %v4768 = vadd.f32 %v4754, %v4767
    %4769 = vdwg.mxu0
    %4770 = vmatpush.bf16.msra.mxu0 %v4261
    %4771 = vmatpush.bf16.msra.mxu0 %v4260
    %4772 = vmatpush.bf16.msra.mxu0 %v4259
    %4773 = vmatpush.bf16.msra.mxu0 %v4258
    %4774 = vmatpush.bf16.msra.mxu0 %v4257
    %4775 = vmatpush.bf16.msra.mxu0 %v4256
    %4776 = vmatpush.bf16.msra.mxu0 %v4255
    %4777 = vmatpush.bf16.msra.mxu0 %v4254
    %4778 = vmatmul.bf16.gmra.mxu0 %v3192
    %v4779 = vpop.f32.mrf.mxu0
    %v4780 = vadd.f32 %v4766, %v4779
    %v4781 = vpop.f32.mrf.mxu0
    %v4782 = vadd.f32 %v4768, %v4781
    %4783 = vdwg.mxu0
    %4784 = vmatpush.bf16.msra.mxu0 %v4269
    %4785 = vmatpush.bf16.msra.mxu0 %v4268
    %4786 = vmatpush.bf16.msra.mxu0 %v4267
    %4787 = vmatpush.bf16.msra.mxu0 %v4266
    %4788 = vmatpush.bf16.msra.mxu0 %v4265
    %4789 = vmatpush.bf16.msra.mxu0 %v4264
    %4790 = vmatpush.bf16.msra.mxu0 %v4263
    %4791 = vmatpush.bf16.msra.mxu0 %v4262
    %4792 = vmatmul.bf16.gmra.mxu0 %v3193
    %v4793 = vpop.f32.mrf.mxu0
    %v4794 = vadd.f32 %v4780, %v4793
    %v4795 = vpop.f32.mrf.mxu0
    %v4796 = vadd.f32 %v4782, %v4795
    %4797 = vdwg.mxu0
    %4798 = vmatpush.bf16.msra.mxu0 %v4277
    %4799 = vmatpush.bf16.msra.mxu0 %v4276
    %4800 = vmatpush.bf16.msra.mxu0 %v4275
    %4801 = vmatpush.bf16.msra.mxu0 %v4274
    %4802 = vmatpush.bf16.msra.mxu0 %v4273
    %4803 = vmatpush.bf16.msra.mxu0 %v4272
    %4804 = vmatpush.bf16.msra.mxu0 %v4271
    %4805 = vmatpush.bf16.msra.mxu0 %v4270
    %4806 = vmatmul.bf16.gmra.mxu0 %v3194
    %v4807 = vpop.f32.mrf.mxu0
    %v4808 = vadd.f32 %v4794, %v4807
    %v4809 = vpop.f32.mrf.mxu0
    %v4810 = vadd.f32 %v4796, %v4809
    %4811 = vdwg.mxu0
    %4812 = vmatpush.bf16.msra.mxu0 %v4285
    %4813 = vmatpush.bf16.msra.mxu0 %v4284
    %4814 = vmatpush.bf16.msra.mxu0 %v4283
    %4815 = vmatpush.bf16.msra.mxu0 %v4282
    %4816 = vmatpush.bf16.msra.mxu0 %v4281
    %4817 = vmatpush.bf16.msra.mxu0 %v4280
    %4818 = vmatpush.bf16.msra.mxu0 %v4279
    %4819 = vmatpush.bf16.msra.mxu0 %v4278
    %4820 = vmatmul.bf16.gmra.mxu0 %v3195
    %v4821 = vpop.f32.mrf.mxu0
    %v4822 = vadd.f32 %v4808, %v4821
    %v4823 = vpop.f32.mrf.mxu0
    %v4824 = vadd.f32 %v4810, %v4823
    %4825 = vdwg.mxu0
    %4826 = vmatpush.bf16.msra.mxu0 %v4293
    %4827 = vmatpush.bf16.msra.mxu0 %v4292
    %4828 = vmatpush.bf16.msra.mxu0 %v4291
    %4829 = vmatpush.bf16.msra.mxu0 %v4290
    %4830 = vmatpush.bf16.msra.mxu0 %v4289
    %4831 = vmatpush.bf16.msra.mxu0 %v4288
    %4832 = vmatpush.bf16.msra.mxu0 %v4287
    %4833 = vmatpush.bf16.msra.mxu0 %v4286
    %4834 = vmatmul.bf16.gmra.mxu0 %v3196
    %v4835 = vpop.f32.mrf.mxu0
    %v4836 = vadd.f32 %v4822, %v4835
    %v4837 = vpop.f32.mrf.mxu0
    %v4838 = vadd.f32 %v4824, %v4837
    %4839 = vdwg.mxu0
    %4840 = vmatpush.bf16.msra.mxu0 %v4301
    %4841 = vmatpush.bf16.msra.mxu0 %v4300
    %4842 = vmatpush.bf16.msra.mxu0 %v4299
    %4843 = vmatpush.bf16.msra.mxu0 %v4298
    %4844 = vmatpush.bf16.msra.mxu0 %v4297
    %4845 = vmatpush.bf16.msra.mxu0 %v4296
    %4846 = vmatpush.bf16.msra.mxu0 %v4295
    %4847 = vmatpush.bf16.msra.mxu0 %v4294
    %4848 = vmatmul.bf16.gmra.mxu0 %v3197
    %v4849 = vpop.f32.mrf.mxu0
    %v4850 = vadd.f32 %v4836, %v4849
    %v4851 = vpop.f32.mrf.mxu0
    %v4852 = vadd.f32 %v4838, %v4851
    %4853 = vdwg.mxu0
    %4854 = vmatpush.bf16.msra.mxu0 %v4309
    %4855 = vmatpush.bf16.msra.mxu0 %v4308
    %4856 = vmatpush.bf16.msra.mxu0 %v4307
    %4857 = vmatpush.bf16.msra.mxu0 %v4306
    %4858 = vmatpush.bf16.msra.mxu0 %v4305
    %4859 = vmatpush.bf16.msra.mxu0 %v4304
    %4860 = vmatpush.bf16.msra.mxu0 %v4303
    %4861 = vmatpush.bf16.msra.mxu0 %v4302
    %4862 = vmatmul.bf16.gmra.mxu0 %v3198
    %v4863 = vpop.f32.mrf.mxu0
    %v4864 = vadd.f32 %v4850, %v4863
    %v4865 = vpop.f32.mrf.mxu0
    %v4866 = vadd.f32 %v4852, %v4865
    %4867 = vdwg.mxu0
    %4868 = vmatpush.bf16.msra.mxu0 %v4317
    %4869 = vmatpush.bf16.msra.mxu0 %v4316
    %4870 = vmatpush.bf16.msra.mxu0 %v4315
    %4871 = vmatpush.bf16.msra.mxu0 %v4314
    %4872 = vmatpush.bf16.msra.mxu0 %v4313
    %4873 = vmatpush.bf16.msra.mxu0 %v4312
    %4874 = vmatpush.bf16.msra.mxu0 %v4311
    %4875 = vmatpush.bf16.msra.mxu0 %v4310
    %4876 = vmatmul.bf16.gmra.mxu0 %v3199
    %v4877 = vpop.f32.mrf.mxu0
    %v4878 = vadd.f32 %v4864, %v4877
    %v4879 = vpop.f32.mrf.mxu0
    %v4880 = vadd.f32 %v4866, %v4879
    %4881 = vdwg.mxu0
    %4882 = vmatpush.bf16.msra.mxu0 %v4325
    %4883 = vmatpush.bf16.msra.mxu0 %v4324
    %4884 = vmatpush.bf16.msra.mxu0 %v4323
    %4885 = vmatpush.bf16.msra.mxu0 %v4322
    %4886 = vmatpush.bf16.msra.mxu0 %v4321
    %4887 = vmatpush.bf16.msra.mxu0 %v4320
    %4888 = vmatpush.bf16.msra.mxu0 %v4319
    %4889 = vmatpush.bf16.msra.mxu0 %v4318
    %4890 = vmatmul.bf16.gmra.mxu0 %v3200
    %v4891 = vpop.f32.mrf.mxu0
    %v4892 = vadd.f32 %v4878, %v4891
    %v4893 = vpop.f32.mrf.mxu0
    %v4894 = vadd.f32 %v4880, %v4893
    %4895 = vdwg.mxu0
    %4896 = vmatpush.bf16.msra.mxu0 %v4333
    %4897 = vmatpush.bf16.msra.mxu0 %v4332
    %4898 = vmatpush.bf16.msra.mxu0 %v4331
    %4899 = vmatpush.bf16.msra.mxu0 %v4330
    %4900 = vmatpush.bf16.msra.mxu0 %v4329
    %4901 = vmatpush.bf16.msra.mxu0 %v4328
    %4902 = vmatpush.bf16.msra.mxu0 %v4327
    %4903 = vmatpush.bf16.msra.mxu0 %v4326
    %4904 = vmatmul.bf16.gmra.mxu0 %v3201
    %v4905 = vpop.f32.mrf.mxu0
    %v4906 = vadd.f32 %v4892, %v4905
    %v4907 = vpop.f32.mrf.mxu0
    %v4908 = vadd.f32 %v4894, %v4907
    %4909 = vdwg.mxu0
    %4910 = vmatpush.bf16.msra.mxu0 %v4341
    %4911 = vmatpush.bf16.msra.mxu0 %v4340
    %4912 = vmatpush.bf16.msra.mxu0 %v4339
    %4913 = vmatpush.bf16.msra.mxu0 %v4338
    %4914 = vmatpush.bf16.msra.mxu0 %v4337
    %4915 = vmatpush.bf16.msra.mxu0 %v4336
    %4916 = vmatpush.bf16.msra.mxu0 %v4335
    %4917 = vmatpush.bf16.msra.mxu0 %v4334
    %4918 = vmatmul.bf16.gmra.mxu0 %v3202
    %v4919 = vpop.f32.mrf.mxu0
    %v4920 = vadd.f32 %v4906, %v4919
    %v4921 = vpop.f32.mrf.mxu0
    %v4922 = vadd.f32 %v4908, %v4921
    %4923 = vdwg.mxu0
    %4924 = vmatpush.bf16.msra.mxu0 %v4349
    %4925 = vmatpush.bf16.msra.mxu0 %v4348
    %4926 = vmatpush.bf16.msra.mxu0 %v4347
    %4927 = vmatpush.bf16.msra.mxu0 %v4346
    %4928 = vmatpush.bf16.msra.mxu0 %v4345
    %4929 = vmatpush.bf16.msra.mxu0 %v4344
    %4930 = vmatpush.bf16.msra.mxu0 %v4343
    %4931 = vmatpush.bf16.msra.mxu0 %v4342
    %4932 = vmatmul.bf16.gmra.mxu0 %v3203
    %v4933 = vpop.f32.mrf.mxu0
    %v4934 = vadd.f32 %v4920, %v4933
    %v4935 = vpop.f32.mrf.mxu0
    %v4936 = vadd.f32 %v4922, %v4935
    %4937 = vdwg.mxu0
    %4938 = vmatpush.bf16.msra.mxu0 %v4357
    %4939 = vmatpush.bf16.msra.mxu0 %v4356
    %4940 = vmatpush.bf16.msra.mxu0 %v4355
    %4941 = vmatpush.bf16.msra.mxu0 %v4354
    %4942 = vmatpush.bf16.msra.mxu0 %v4353
    %4943 = vmatpush.bf16.msra.mxu0 %v4352
    %4944 = vmatpush.bf16.msra.mxu0 %v4351
    %4945 = vmatpush.bf16.msra.mxu0 %v4350
    %4946 = vmatmul.bf16.gmra.mxu0 %v3204
    %v4947 = vpop.f32.mrf.mxu0
    %v4948 = vadd.f32 %v4934, %v4947
    %v4949 = vpop.f32.mrf.mxu0
    %v4950 = vadd.f32 %v4936, %v4949
    %4951 = vdwg.mxu0
    %4952 = vmatpush.bf16.msra.mxu0 %v4365
    %4953 = vmatpush.bf16.msra.mxu0 %v4364
    %4954 = vmatpush.bf16.msra.mxu0 %v4363
    %4955 = vmatpush.bf16.msra.mxu0 %v4362
    %4956 = vmatpush.bf16.msra.mxu0 %v4361
    %4957 = vmatpush.bf16.msra.mxu0 %v4360
    %4958 = vmatpush.bf16.msra.mxu0 %v4359
    %4959 = vmatpush.bf16.msra.mxu0 %v4358
    %4960 = vmatmul.bf16.gmra.mxu0 %v3205
    %v4961 = vpop.f32.mrf.mxu0
    %v4962 = vadd.f32 %v4948, %v4961
    %v4963 = vpop.f32.mrf.mxu0
    %v4964 = vadd.f32 %v4950, %v4963
    %4965 = vdwg.mxu0
    %4966 = vmatpush.bf16.msra.mxu0 %v4373
    %4967 = vmatpush.bf16.msra.mxu0 %v4372
    %4968 = vmatpush.bf16.msra.mxu0 %v4371
    %4969 = vmatpush.bf16.msra.mxu0 %v4370
    %4970 = vmatpush.bf16.msra.mxu0 %v4369
    %4971 = vmatpush.bf16.msra.mxu0 %v4368
    %4972 = vmatpush.bf16.msra.mxu0 %v4367
    %4973 = vmatpush.bf16.msra.mxu0 %v4366
    %4974 = vmatmul.bf16.gmra.mxu0 %v3206
    %v4975 = vpop.f32.mrf.mxu0
    %v4976 = vadd.f32 %v4962, %v4975
    %v4977 = vpop.f32.mrf.mxu0
    %v4978 = vadd.f32 %v4964, %v4977
    %4979 = vdwg.mxu0
    %4980 = vmatpush.bf16.msra.mxu0 %v4381
    %4981 = vmatpush.bf16.msra.mxu0 %v4380
    %4982 = vmatpush.bf16.msra.mxu0 %v4379
    %4983 = vmatpush.bf16.msra.mxu0 %v4378
    %4984 = vmatpush.bf16.msra.mxu0 %v4377
    %4985 = vmatpush.bf16.msra.mxu0 %v4376
    %4986 = vmatpush.bf16.msra.mxu0 %v4375
    %4987 = vmatpush.bf16.msra.mxu0 %v4374
    %4988 = vmatmul.bf16.gmra.mxu0 %v3207
    %v4989 = vpop.f32.mrf.mxu0
    %v4990 = vadd.f32 %v4976, %v4989
    %v4991 = vpop.f32.mrf.mxu0
    %v4992 = vadd.f32 %v4978, %v4991
    %4993 = vdwg.mxu0
    %4994 = vmatpush.bf16.msra.mxu0 %v4389
    %4995 = vmatpush.bf16.msra.mxu0 %v4388
    %4996 = vmatpush.bf16.msra.mxu0 %v4387
    %4997 = vmatpush.bf16.msra.mxu0 %v4386
    %4998 = vmatpush.bf16.msra.mxu0 %v4385
    %4999 = vmatpush.bf16.msra.mxu0 %v4384
    %5000 = vmatpush.bf16.msra.mxu0 %v4383
    %5001 = vmatpush.bf16.msra.mxu0 %v4382
    %5002 = vmatmul.bf16.gmra.mxu0 %v3208
    %v5003 = vpop.f32.mrf.mxu0
    %v5004 = vadd.f32 %v4990, %v5003
    %v5005 = vpop.f32.mrf.mxu0
    %v5006 = vadd.f32 %v4992, %v5005
    %5007 = vdwg.mxu0
    %5008 = vmatpush.bf16.msra.mxu0 %v4397
    %5009 = vmatpush.bf16.msra.mxu0 %v4396
    %5010 = vmatpush.bf16.msra.mxu0 %v4395
    %5011 = vmatpush.bf16.msra.mxu0 %v4394
    %5012 = vmatpush.bf16.msra.mxu0 %v4393
    %5013 = vmatpush.bf16.msra.mxu0 %v4392
    %5014 = vmatpush.bf16.msra.mxu0 %v4391
    %5015 = vmatpush.bf16.msra.mxu0 %v4390
    %5016 = vmatmul.bf16.gmra.mxu0 %v3209
    %v5017 = vpop.f32.mrf.mxu0
    %v5018 = vadd.f32 %v5004, %v5017
    %v5019 = vpop.f32.mrf.mxu0
    %v5020 = vadd.f32 %v5006, %v5019
    %5021 = vdwg.mxu0
    %5022 = vmatpush.bf16.msra.mxu0 %v4405
    %5023 = vmatpush.bf16.msra.mxu0 %v4404
    %5024 = vmatpush.bf16.msra.mxu0 %v4403
    %5025 = vmatpush.bf16.msra.mxu0 %v4402
    %5026 = vmatpush.bf16.msra.mxu0 %v4401
    %5027 = vmatpush.bf16.msra.mxu0 %v4400
    %5028 = vmatpush.bf16.msra.mxu0 %v4399
    %5029 = vmatpush.bf16.msra.mxu0 %v4398
    %5030 = vmatmul.bf16.gmra.mxu0 %v3210
    %v5031 = vpop.f32.mrf.mxu0
    %v5032 = vadd.f32 %v5018, %v5031
    %v5033 = vpop.f32.mrf.mxu0
    %v5034 = vadd.f32 %v5020, %v5033
    %5035 = vdwg.mxu0
    %5036 = vmatpush.bf16.msra.mxu0 %v4413
    %5037 = vmatpush.bf16.msra.mxu0 %v4412
    %5038 = vmatpush.bf16.msra.mxu0 %v4411
    %5039 = vmatpush.bf16.msra.mxu0 %v4410
    %5040 = vmatpush.bf16.msra.mxu0 %v4409
    %5041 = vmatpush.bf16.msra.mxu0 %v4408
    %5042 = vmatpush.bf16.msra.mxu0 %v4407
    %5043 = vmatpush.bf16.msra.mxu0 %v4406
    %5044 = vmatmul.bf16.gmra.mxu0 %v3211
    %v5045 = vpop.f32.mrf.mxu0
    %v5046 = vadd.f32 %v5032, %v5045
    %v5047 = vpop.f32.mrf.mxu0
    %v5048 = vadd.f32 %v5034, %v5047
    %5049 = vdwg.mxu0
    %5050 = vmatpush.bf16.msra.mxu0 %v4421
    %5051 = vmatpush.bf16.msra.mxu0 %v4420
    %5052 = vmatpush.bf16.msra.mxu0 %v4419
    %5053 = vmatpush.bf16.msra.mxu0 %v4418
    %5054 = vmatpush.bf16.msra.mxu0 %v4417
    %5055 = vmatpush.bf16.msra.mxu0 %v4416
    %5056 = vmatpush.bf16.msra.mxu0 %v4415
    %5057 = vmatpush.bf16.msra.mxu0 %v4414
    %5058 = vmatmul.bf16.gmra.mxu0 %v3212
    %v5059 = vpop.f32.mrf.mxu0
    %v5060 = vadd.f32 %v5046, %v5059
    %v5061 = vpop.f32.mrf.mxu0
    %v5062 = vadd.f32 %v5048, %v5061
    %5063 = vdwg.mxu0
    %5064 = vmatpush.bf16.msra.mxu0 %v4429
    %5065 = vmatpush.bf16.msra.mxu0 %v4428
    %5066 = vmatpush.bf16.msra.mxu0 %v4427
    %5067 = vmatpush.bf16.msra.mxu0 %v4426
    %5068 = vmatpush.bf16.msra.mxu0 %v4425
    %5069 = vmatpush.bf16.msra.mxu0 %v4424
    %5070 = vmatpush.bf16.msra.mxu0 %v4423
    %5071 = vmatpush.bf16.msra.mxu0 %v4422
    %5072 = vmatmul.bf16.gmra.mxu0 %v3213
    %v5073 = vpop.f32.mrf.mxu0
    %v5074 = vadd.f32 %v5060, %v5073
    %v5075 = vpop.f32.mrf.mxu0
    %v5076 = vadd.f32 %v5062, %v5075
    %5077 = vdwg.mxu0
    %5078 = vmatpush.bf16.msra.mxu0 %v4437
    %5079 = vmatpush.bf16.msra.mxu0 %v4436
    %5080 = vmatpush.bf16.msra.mxu0 %v4435
    %5081 = vmatpush.bf16.msra.mxu0 %v4434
    %5082 = vmatpush.bf16.msra.mxu0 %v4433
    %5083 = vmatpush.bf16.msra.mxu0 %v4432
    %5084 = vmatpush.bf16.msra.mxu0 %v4431
    %5085 = vmatpush.bf16.msra.mxu0 %v4430
    %5086 = vmatmul.bf16.gmra.mxu0 %v3214
    %v5087 = vpop.f32.mrf.mxu0
    %v5088 = vadd.f32 %v5074, %v5087
    %v5089 = vpop.f32.mrf.mxu0
    %v5090 = vadd.f32 %v5076, %v5089
    %5091 = vdwg.mxu0
    %5092 = vmatpush.bf16.msra.mxu0 %v4445
    %5093 = vmatpush.bf16.msra.mxu0 %v4444
    %5094 = vmatpush.bf16.msra.mxu0 %v4443
    %5095 = vmatpush.bf16.msra.mxu0 %v4442
    %5096 = vmatpush.bf16.msra.mxu0 %v4441
    %5097 = vmatpush.bf16.msra.mxu0 %v4440
    %5098 = vmatpush.bf16.msra.mxu0 %v4439
    %5099 = vmatpush.bf16.msra.mxu0 %v4438
    %5100 = vmatmul.bf16.gmra.mxu0 %v3215
    %v5101 = vpop.f32.mrf.mxu0
    %v5102 = vadd.f32 %v5088, %v5101
    %v5103 = vpop.f32.mrf.mxu0
    %v5104 = vadd.f32 %v5090, %v5103
    %5105 = vdwg.mxu0
    %v5106 = vmax.f32 %v5102, 0.0
    %v5107 = vmax.f32 %v5104, 0.0
    %v5108 = vpack.c.bf16 %v5107, %v5106
    %v5109 = vld [vmem:[%s5] sm:$0xf]
    %v5110 = vld [vmem:[%s5 + $0x4] sm:$0xf]
    %v5111 = vld [vmem:[%s5 + $0x8] sm:$0xf]
    %v5112 = vld [vmem:[%s5 + $0xc] sm:$0xf]
    %v5113 = vld [vmem:[%s5 + $0x10] sm:$0xf]
    %v5114 = vld [vmem:[%s5 + $0x14] sm:$0xf]
    %v5115 = vld [vmem:[%s5 + $0x18] sm:$0xf]
    %v5116 = vld [vmem:[%s5 + $0x1c] sm:$0xf]
    %v5117 = vld [vmem:[%s5 + $0x20] sm:$0xf]
    %v5118 = vld [vmem:[%s5 + $0x24] sm:$0xf]
    %v5119 = vld [vmem:[%s5 + $0x28] sm:$0xf]
    %v5120 = vld [vmem:[%s5 + $0x2c] sm:$0xf]
    %v5121 = vld [vmem:[%s5 + $0x30] sm:$0xf]
    %v5122 = vld [vmem:[%s5 + $0x34] sm:$0xf]
    %v5123 = vld [vmem:[%s5 + $0x38] sm:$0xf]
    %v5124 = vld [vmem:[%s5 + $0x3c] sm:$0xf]
    %v5125 = vld [vmem:[%s6] sm:$0x1]
    %v5127 = vperm.slane %v5125, 0
    %v5145 = vunpack.c.l.b16 %v5109
    %v5146 = vunpack.c.l.b16 %v5110
    %v5147 = vunpack.c.l.b16 %v5111
    %v5148 = vunpack.c.l.b16 %v5112
    %v5149 = vunpack.c.l.b16 %v5113
    %v5150 = vunpack.c.l.b16 %v5114
    %v5151 = vunpack.c.l.b16 %v5115
    %v5152 = vunpack.c.l.b16 %v5116
    %v5153 = vunpack.c.l.b16 %v5117
    %v5154 = vunpack.c.l.b16 %v5118
    %v5155 = vunpack.c.l.b16 %v5119
    %v5156 = vunpack.c.l.b16 %v5120
    %v5157 = vunpack.c.l.b16 %v5121
    %v5158 = vunpack.c.l.b16 %v5122
    %v5159 = vunpack.c.l.b16 %v5123
    %v5160 = vunpack.c.l.b16 %v5124
    %v5161 = vpack.c.b16 %v5146, %v5145
    %v5162 = vpack.c.b16 %v5148, %v5147
    %v5163 = vpack.c.b16 %v5150, %v5149
    %v5164 = vpack.c.b16 %v5152, %v5151
    %v5165 = vpack.c.b16 %v5154, %v5153
    %v5166 = vpack.c.b16 %v5156, %v5155
    %v5167 = vpack.c.b16 %v5158, %v5157
    %v5168 = vpack.c.b16 %v5160, %v5159
    %5177 = vmatpush.bf16.msra.mxu0 %v5168
    %5178 = vmatpush.bf16.msra.mxu0 %v5167
    %5179 = vmatpush.bf16.msra.mxu0 %v5166
    %5180 = vmatpush.bf16.msra.mxu0 %v5165
    %5181 = vmatpush.bf16.msra.mxu0 %v5164
    %5182 = vmatpush.bf16.msra.mxu0 %v5163
    %5183 = vmatpush.bf16.msra.mxu0 %v5162
    %5184 = vmatpush.bf16.msra.mxu0 %v5161
    %5185 = vmatmul.bf16.gmra.mxu0 %v5108
    %v5186 = vpop.f32.mrf.mxu0
    %v5187 = vadd.f32 %v5127, %v5186
    %v5188 = vpop.f32.mrf.mxu0
    %v5189 = vadd.f32 %v5127, %v5188
    %5190 = vdwg.mxu0
    %vm5191 = vcmask 48128
    %v5192 = vsel %vm5191, %v5187, -inf
    %5193 = vmax.xlane.f32.xlu0 %v5192
    %v5194 = vpop.xlane.xlu0 %5193
    %vm5195 = vcmask 41984
    %v5196 = vsel %vm5195, %v5189, -inf
    %5197 = vmax.xlane.f32.xlu0 %v5196
    %v5198 = vpop.xlane.xlu0 %5197
    %v5199 = vsub.f32 %v5187, %v5194
    %v5200 = vsub.f32 %v5189, %v5198
    %v5201 = vmul.f32 %v5199, 1.442695
    %v5202 = vpow.pop %v5201
    %v5203 = vmul.f32 %v5200, 1.442695
    %v5204 = vpow.pop %v5203
    %v5205 = vsel %vm5191, %v5202, 0.0
    %5206 = vadd.xlane.f32.xlu0 %v5205
    %v5207 = vpop.xlane.xlu0 %5206
    %v5208 = vsel %vm5195, %v5204, 0.0
    %5209 = vadd.xlane.f32.xlu0 %v5208
    %v5210 = vpop.xlane.xlu0 %5209
    %v5211 = vrcp.pop %v5207
    %v5212 = vmul.f32 %v5207, %v5211
    %v5213 = vsub.f32 1.0, %v5212
    %v5214 = vmul.f32 %v5211, %v5213
    %v5215 = vadd.f32 %v5211, %v5214
    %vm5216 = vweird.f32 %v5207
    %vm5217 = vweird.f32 %v5211
    %vm5218 = vmor %vm5216, %vm5217
    %v5219 = vsel %vm5218, %v5211, %v5215
    %v5220 = vand.u32 2147483647, %v5207
    %vm5221 = vcmp.eq.f32.partialorder %v5220, 8.507059e+37
    %v5222 = vand.u32 %v5207, 2147483648
    %v5223 = vor.u32 1.1754944e-38, %v5222
    %v5224 = vsel %vm5221, %v5223, %v5219
    %v5225 = vmul.f32 %v5202, %v5224
    %v5226 = vrcp.pop %v5210
    %v5227 = vmul.f32 %v5210, %v5226
    %v5228 = vsub.f32 1.0, %v5227
    %v5229 = vmul.f32 %v5226, %v5228
    %v5230 = vadd.f32 %v5226, %v5229
    %vm5231 = vweird.f32 %v5210
    %vm5232 = vweird.f32 %v5226
    %vm5233 = vmor %vm5231, %vm5232
    %v5234 = vsel %vm5233, %v5226, %v5230
    %v5235 = vand.u32 2147483647, %v5210
    %vm5236 = vcmp.eq.f32.partialorder %v5235, 8.507059e+37
    %v5237 = vand.u32 %v5210, 2147483648
    %v5238 = vor.u32 1.1754944e-38, %v5237
    %v5239 = vsel %vm5236, %v5238, %v5234
    %v5240 = vmul.f32 %v5204, %v5239
    %5241 = vst.msk [vmem:[%s7] sm:$0xff] %vm5191, %v5225
    %5242 = vst.msk [vmem:[%s7 + $0x8] sm:$0x3] %vm5195, %v5240
    // Predicated region
    $region46: #{multihead_attention_forward.1} parent=1 // pred_check
      _
    $region47: #{multihead_attention_forward.1} parent=1 // pred_check_branch
      %5244 = sbr.rel (0) target = $region49
    $region48: #{multihead_attention_forward.1} parent=1 // pred_region
      _
    $region49: #{multihead_attention_forward.1} parent=1 // pred_fallthru
      _
    // Predicated region
    $region50: #{multihead_attention_forward.1} parent=1 // pred_check
      _
    $region51: #{multihead_attention_forward.1} parent=1 // pred_check_branch
      %5246 = sbr.rel (0) target = $region53
    $region52: #{multihead_attention_forward.1} parent=1 // pred_region
      _
    $region53: #{multihead_attention_forward.1} parent=1 // pred_fallthru
      _
    %5247 = vsyncpa [#allocation4], 1
    %5248 = vsyncpa [#allocation6], 1
    %5249 = vsyncpa [#allocation9], 1

</llo_original>
